<compile_context>
chip_gen: v6e
topology: v6e:2x2x1
jax: 0.10.0
libtpu: 0.0.40
codegen_flags: <defaults>
</compile_context>

<pallas_src>
import functools

import jax
import jax.numpy as jnp
from jax.experimental import pallas as pl
from jax.experimental.pallas import tpu as pltpu


# --------------------------------------------------------------------------- #
# tiling helpers
# --------------------------------------------------------------------------- #
def _row_tiling(m, target=512):
    """Fixed row tile + padded row count.

    Guarantees >= 2 grid steps whenever m > 8 (v7x has two TensorCores) and a
    hard VMEM-bounding cap of `target` rows per step (safe on v7x's 64 MiB
    physical / 32 MiB scoped VMEM; v5e/v6e could go larger but this works on
    all three generations)."""
    if m <= 8:
        return 8, 8
    tm = min(target, ((m + 15) // 16) * 8)      # ~m/2 rounded to 8, capped
    mp = ((m + tm - 1) // tm) * tm
    return tm, mp


def _pick_col_tile(w, target=512):
    """Largest lane-aligned column tile <= target that divides w, else w."""
    if w <= target:
        return w
    for tn in range(target, 127, -128):
        if w % tn == 0:
            return tn
    return w


def _mxu_is_256_wide():
    """v6e / v7x have 256-wide MXUs (sign-folded deconv3 is free); v5e and
    older generations are 128-wide (folding would double deconv3 MXU work)."""
    try:
        kind = jax.devices()[0].device_kind.lower()
    except Exception:
        return True
    return not any(tag in kind for tag in ("v2", "v3", "v4", "v5"))


# --------------------------------------------------------------------------- #
# Pallas kernels
# --------------------------------------------------------------------------- #
def _linear_bias_kernel(x_ref, w_ref, b_ref, o_ref):
    # (Bp, K) @ (K, TN) + bias  -- column-tiled, weight-streaming matmul.
    o_ref[...] = (jnp.dot(x_ref[...], w_ref[...],
                          preferred_element_type=jnp.float32)
                  + b_ref[...]).astype(o_ref.dtype)


def _decoder_kernel(x_ref, skip_ref, w2_ref, b2_ref, w3_ref, b3_ref,
                    w4_ref, b4_ref, out_ref, *, w3_folded):
    """Fused decoder for a tile of TM input pixels.

    x_ref    (TM, 512)   bf16  input pixels (480 channels + 32 zero-pad)
    skip_ref (TM, 4*256) bf16  skip per (kh2,kw2) sub-pixel, 224 ch + 32 zero-pad
    w2_ref   (512, 512)  bf16  deconv2 as (Cin_pad, kh2*kw2*128)
    w3_ref   (256, 128|256) bf16  deconv3; 256-wide if AntiRectifier sign folded
    w4_ref   (1024, 128) bf16  deconv4, block-diagonal over the 16 sub-pixels
    out_ref  (TM, 128)   f32   cols = (kh2, kw2, kh3, kw3, kh4, kw4, re/im)
    """
    # deconv2
    y2 = jnp.dot(x_ref[...], w2_ref[...],
                 preferred_element_type=jnp.float32) + b2_ref[...]
    w3 = w3_ref[...]
    b3 = b3_ref[...]

    ar3_parts = []
    for j in range(4):                          # static unroll over (kh2, kw2)
        y2_j = y2[:, j * 128:(j + 1) * 128]
        # lane-aligned (multiples of 128) skip slice; pad channels are zero.
        skip_j = skip_ref[:, j * 256:(j + 1) * 256].astype(jnp.float32)
        # AntiRectifier + skip add on the first 224 of 256 channels
        pos = jnp.maximum(y2_j, 0.0) + skip_j[:, :128]
        neg = jnp.maximum(-y2_j, 0.0) + skip_j[:, 128:]
        ar2_j = jnp.concatenate([pos, neg], axis=-1).astype(jnp.bfloat16)
        # deconv3 for this sub-pixel
        y3_j = jnp.dot(ar2_j, w3, preferred_element_type=jnp.float32) + b3
        if w3_folded:
            # w3 = [w3, -w3]: relu gives [relu(y3), relu(-y3)] in one matmul
            ar3_parts.append(jnp.maximum(y3_j, 0.0))
        else:
            ar3_parts.append(jnp.maximum(y3_j, 0.0))    # AntiRectifier (+)
            ar3_parts.append(jnp.maximum(-y3_j, 0.0))   # AntiRectifier (-)

    # TODO(synk): nn.Dropout(p=0.3) applied as eval-mode identity
    #             (torch RNG not reproducible on TPU).
    # deconv4 fused as one block-diagonal matmul -> lane-dense 128-wide output
    ar3 = jnp.concatenate(ar3_parts, axis=-1).astype(jnp.bfloat16)   # (TM, 1024)
    y4 = jnp.dot(ar3, w4_ref[...],
                 preferred_element_type=jnp.float32) + b4_ref[...]
    out_ref[...] = y4.astype(out_ref.dtype)


def _hermitian_normalize_kernel(rr_ref, rrt_ref, ri_ref, rit_ref,
                                re_ref, im_ref):
    # Rz = (K + K^H)/2 ; Rz = Rz / max(||Rz||_F, eps) + I_N   (per batch elem)
    # TODO(synk): torch casts to complex128; TPU has no float64 -> f32/complex64.
    re = 0.5 * (rr_ref[...] + rrt_ref[...])
    im = 0.5 * (ri_ref[...] - rit_ref[...])
    norm = jnp.sqrt(jnp.sum(re * re + im * im, axis=(1, 2), keepdims=True))
    inv = 1.0 / jnp.maximum(norm, 1e-12)
    rows = jax.lax.broadcasted_iota(jnp.int32, re.shape, 1)
    cols = jax.lax.broadcasted_iota(jnp.int32, re.shape, 2)
    eye = (rows == cols).astype(re.dtype)
    re_ref[...] = re * inv + eye
    im_ref[...] = im * inv


# --------------------------------------------------------------------------- #
# pallas_call wrappers
# --------------------------------------------------------------------------- #
def _tiled_linear(x, w, b, out_dtype=jnp.bfloat16):
    """x (B, K) f32, w (K, Wtot) bf16 (pre-cast), b (1, Wtot) f32."""
    B, K = x.shape
    Wtot = w.shape[1]
    tn = _pick_col_tile(Wtot)
    Bp = max(8, ((B + 7) // 8) * 8)            # at least 8 sublanes of rows
    xp = jnp.pad(x, ((0, Bp - B), (0, 0))).astype(jnp.bfloat16)
    out = pl.pallas_call(
        _linear_bias_kernel,
        grid=(Wtot // tn,),
        in_specs=[
            # constant-index activations: no need for a second VMEM buffer
            pl.BlockSpec((Bp, K), lambda j: (0, 0), pipeline_mode=pl.Buffered(1)),
            pl.BlockSpec((K, tn), lambda j: (0, j)),
            pl.BlockSpec((1, tn), lambda j: (0, j)),
        ],
        out_specs=pl.BlockSpec((Bp, tn), lambda j: (0, j)),
        out_shape=jax.ShapeDtypeStruct((Bp, Wtot), out_dtype),
        compiler_params=pltpu.CompilerParams(
            dimension_semantics=("parallel",)),
    )(xp, w, b)
    return out[:B]


def hermitian_normalize(rr, ri):
    # Batch-tiled; K^H operands fed pre-transposed (tiny (B,N,N) tensors).
    B, N, _ = rr.shape
    spec = pl.BlockSpec((1, N, N), lambda b: (b, 0, 0))
    sds = jax.ShapeDtypeStruct((B, N, N), jnp.float32)
    re, im = pl.pallas_call(
        _hermitian_normalize_kernel,
        grid=(B,),
        in_specs=[spec, spec, spec, spec],
        out_specs=[spec, spec],
        out_shape=[sds, sds],
        compiler_params=pltpu.CompilerParams(
            dimension_semantics=("parallel",)),
    )(rr, jnp.swapaxes(rr, 1, 2), ri, jnp.swapaxes(ri, 1, 2))
    return re, im


# --------------------------------------------------------------------------- #
# Decoder / encoder / full model forward
# --------------------------------------------------------------------------- #
def decoder_forward(params, x_enc_m, skip_m, B, H, W):
    """x_enc_m (M,512) bf16, skip_m (M,4*256) bf16; M = B*H*W."""
    M = B * H * W
    TM, Mp = _row_tiling(M)
    if Mp != M:
        x_enc_m = jnp.pad(x_enc_m, ((0, Mp - M), (0, 0)))
        skip_m = jnp.pad(skip_m, ((0, Mp - M), (0, 0)))

    c3w = params["w3"].shape[1]                 # 256 if sign-folded, else 128
    kernel = functools.partial(_decoder_kernel, w3_folded=(c3w == 256))

    def wspec(shape):                           # constant-index weights/biases
        return pl.BlockSpec(shape, lambda i: (0, 0),
                            pipeline_mode=pl.Buffered(1))

    out = pl.pallas_call(
        kernel,
        grid=(Mp // TM,),
        in_specs=[
            pl.BlockSpec((TM, 512), lambda i: (i, 0)),
            pl.BlockSpec((TM, 4 * 256), lambda i: (i, 0)),
            wspec((512, 512)),
            wspec((1, 512)),
            wspec((256, c3w)),
            wspec((1, c3w)),
            wspec((1024, 128)),
            wspec((1, 128)),
        ],
        out_specs=pl.BlockSpec((TM, 128), lambda i: (i, 0)),
        out_shape=jax.ShapeDtypeStruct((Mp, 128), jnp.float32),
        compiler_params=pltpu.CompilerParams(
            dimension_semantics=("parallel",),
            vmem_limit_bytes=32 * 1024 * 1024),
    )(x_enc_m, skip_m, params["w2"], params["b2"], params["w3"], params["b3"],
      params["w4"], params["b4"])

    # (b,h,w, kh2,kw2,kh3,kw3,kh4,kw4,c)  ->  (B, 8H, 8W, 2)
    o = out[:M].reshape(B, H, W, 2, 2, 2, 2, 2, 2, 2)
    o = jnp.transpose(o, (0, 1, 3, 5, 7, 2, 4, 6, 8, 9))
    o = o.reshape(B, 8 * H, 8 * W, 2)

    re, im = hermitian_normalize(o[..., 0], o[..., 1])
    return jax.lax.complex(re, im)


def encoder_forward(params, x):
    """Deterministic linear stand-in for the injected encoder.

    Emits decoder-ready layouts directly (no NCHW->NHWC glue):
      x_enc_m (M, 512)  bf16 : channel-last, 480 real + 32 zero-pad channels
      skip_m  (M, 4*256) bf16 : per (kh2,kw2) sub-pixel, 224 real + 32 zero-pad
    """
    B, tau, N = x.shape
    H = W = N // 8
    M = B * H * W
    xf = x.reshape(B, tau * N)
    o_enc = _tiled_linear(xf, params["w_enc"], params["b_enc"])
    o_skip = _tiled_linear(xf, params["w_skip"], params["b_skip"])
    return o_enc.reshape(M, 512), o_skip.reshape(M, 4 * 256)


def init_single_band_subspacenet_forward(params, x):
    # x: (batch, tau, N)  ->  Rz: (batch, N, N) complex
    B, tau, N = x.shape
    H = W = N // 8
    x_enc_m, skip_m = encoder_forward(params, x)
    return decoder_forward(params, x_enc_m, skip_m, B, H, W)


# --------------------------------------------------------------------------- #
# one-time parameter preparation (hoisted out of the forward pass)
# --------------------------------------------------------------------------- #
def prepare_params(raw, fold_w3_sign=None):
    """Transpose/reshape/pad/cast all weights once into MXU-ready layouts."""
    if fold_w3_sign is None:
        fold_w3_sign = _mxu_is_256_wide()
    Cin = raw["w2"].shape[0]                                   # 480

    # deconv2: (Cin, 128, 2, 2) -> (512, kh2*kw2*128) bf16, zero rows 480..511
    w2 = jnp.transpose(raw["w2"], (0, 2, 3, 1)).reshape(Cin, 512)
    w2 = jnp.pad(w2, ((0, 512 - Cin), (0, 0))).astype(jnp.bfloat16)
    b2 = jnp.tile(raw["b2"], (4,)).reshape(1, 512).astype(jnp.float32)

    # deconv3: (256, 32, 2, 2) -> (256, kh3*kw3*32); optionally sign-folded
    w3 = jnp.transpose(raw["w3"], (0, 2, 3, 1)).reshape(256, 128)
    b3 = jnp.tile(raw["b3"], (4,)).reshape(1, 128)
    if fold_w3_sign:
        w3 = jnp.concatenate([w3, -w3], axis=1)                # (256, 256)
        b3 = jnp.concatenate([b3, -b3], axis=1)                # (1, 256)
    w3 = w3.astype(jnp.bfloat16)
    b3 = b3.astype(jnp.float32)

    # deconv4 as a block-diagonal (1024, 128) matrix matching the in-kernel
    # ar3 layout (kh2kw2, sign, kh3kw3, c3) and out layout (kh2kw2, kh3kw3, 8).
    w4p = jnp.transpose(raw["w4"], (0, 2, 3, 1)).reshape(64, 8)
    w4r = w4p.reshape(2, 32, 8)                                # (sign, c3, kh4kw4c)
    eye4 = jnp.eye(4, dtype=w4p.dtype)
    w4 = jnp.einsum("sco,jJ,lL->jslcJLo", w4r, eye4, eye4)
    w4 = w4.reshape(1024, 128).astype(jnp.bfloat16)
    b4 = jnp.tile(raw["b4"], (64,)).reshape(1, 128).astype(jnp.float32)

    # encoder stand-in weights: columns in decoder-ready order, bf16,
    # zero-padded channels baked in (480->512, 224->256).
    K, H, W, _ = raw["w_enc"].shape
    w_enc = jnp.pad(raw["w_enc"], ((0, 0), (0, 0), (0, 0), (0, 512 - Cin)))
    w_enc = w_enc.reshape(K, H * W * 512).astype(jnp.bfloat16)
    b_enc = jnp.pad(raw["b_enc"], ((0, 0), (0, 0), (0, 512 - Cin)))
    b_enc = b_enc.reshape(1, H * W * 512).astype(jnp.float32)
    w_skip = jnp.pad(raw["w_skip"], ((0, 0),) * 5 + ((0, 32),))
    w_skip = w_skip.reshape(K, H * W * 4 * 256).astype(jnp.bfloat16)
    b_skip = jnp.pad(raw["b_skip"], ((0, 0),) * 4 + ((0, 32),))
    b_skip = b_skip.reshape(1, H * W * 4 * 256).astype(jnp.float32)

    return dict(w2=w2, b2=b2, w3=w3, b3=b3, w4=w4, b4=b4,
                w_enc=w_enc, b_enc=b_enc, w_skip=w_skip, b_skip=b_skip)


# --------------------------------------------------------------------------- #
# deterministic parameter init (shapes from Decoder.__init__ + encoder stand-in)
# --------------------------------------------------------------------------- #
def init_params(key, tau, N):
    H = W = N // 8
    ks = jax.random.split(key, 10)
    s = 0.05
    return {
        "w2": jax.random.normal(ks[0], (480, 128, 2, 2), jnp.float32) * s,
        "b2": jax.random.normal(ks[1], (128,), jnp.float32) * s,
        "w3": jax.random.normal(ks[2], (256, 32, 2, 2), jnp.float32) * s,
        "b3": jax.random.normal(ks[3], (32,), jnp.float32) * s,
        "w4": jax.random.normal(ks[4], (64, 2, 2, 2), jnp.float32) * s,
        "b4": jax.random.normal(ks[5], (2,), jnp.float32) * s,
        # encoder stand-in (injected dependency in the reference code)
        "w_enc": jax.random.normal(ks[6], (tau * N, H, W, 480), jnp.float32) * s,
        "b_enc": jax.random.normal(ks[7], (H, W, 480), jnp.float32) * s,
        "w_skip": jax.random.normal(ks[8], (tau * N, H, W, 2, 2, 224), jnp.float32) * s,
        "b_skip": jax.random.normal(ks[9], (H, W, 2, 2, 224), jnp.float32) * s,
    }


# --------------------------------------------------------------------------- #
# pure-JAX reference of the Decoder (NCHW, mirrors the torch code and the
# kernel's bf16 rounding points) used for the correctness check
# --------------------------------------------------------------------------- #
def _ref_deconv(x, w, b):
    y = jnp.einsum("bchw,cdij->bdhiwj",
                   x.astype(jnp.bfloat16), w.astype(jnp.bfloat16),
                   preferred_element_type=jnp.float32)
    Bb, Cout, Hh, _, Ww, _ = y.shape
    return y.reshape(Bb, Cout, 2 * Hh, 2 * Ww) + b[None, :, None, None]


def _ref_antirect(x):
    return jnp.concatenate([jnp.maximum(x, 0.0), jnp.maximum(-x, 0.0)], axis=1)


def reference_decoder(params, x_encoded, x_skip):
    x = _ref_antirect(_ref_deconv(x_encoded, params["w2"], params["b2"]))
    x = x.at[:, :224].add(x_skip.astype(jnp.bfloat16).astype(jnp.float32))
    x = _ref_antirect(_ref_deconv(x, params["w3"], params["b3"]))
    x = _ref_deconv(x, params["w4"], params["b4"])          # dropout = identity
    rr, ri = x[:, 0], x[:, 1]
    re = 0.5 * (rr + jnp.swapaxes(rr, 1, 2))
    im = 0.5 * (ri - jnp.swapaxes(ri, 1, 2))
    norm = jnp.sqrt(jnp.sum(re * re + im * im, axis=(1, 2), keepdims=True))
    inv = 1.0 / jnp.maximum(norm, 1e-12)
    eye = jnp.eye(rr.shape[-1], dtype=re.dtype)[None]
    return jax.lax.complex(re * inv + eye, im * inv)


if __name__ == "__main__":
    B, tau, N = 2, 4, 16
    key = jax.random.PRNGKey(0)
    pkey, xkey = jax.random.split(key)
    raw = init_params(pkey, tau, N)
    params = prepare_params(raw)          # one-time weight layout / bf16 cast
    x = jax.random.normal(xkey, (B, tau, N), jnp.float32)

    forward = jax.jit(init_single_band_subspacenet_forward)
    rz = jax.block_until_ready(forward(params, x))
    assert rz.shape == (B, N, N) and jnp.iscomplexobj(rz)

    # correctness check vs. pure-JAX reference of the decoder (NCHW views are
    # reconstructed from the decoder-ready encoder outputs, check-time only)
    H = W = N // 8
    x_enc_m, skip_m = encoder_forward(params, x)
    x_encoded = jnp.transpose(
        x_enc_m.astype(jnp.float32).reshape(B, H, W, 512)[..., :480],
        (0, 3, 1, 2))
    xs = skip_m.astype(jnp.float32).reshape(B, H, W, 2, 2, 256)[..., :224]
    x_skip = jnp.transpose(xs, (0, 5, 1, 3, 2, 4)).reshape(B, 224, 2 * H, 2 * W)
    rz_ref = reference_decoder(raw, x_encoded, x_skip)
    err_re = float(jnp.max(jnp.abs(rz.real - rz_ref.real)))
    err_im = float(jnp.max(jnp.abs(rz.imag - rz_ref.imag)))
    assert err_re < 1e-3 and err_im < 1e-3, (err_re, err_im)

    print("KERNEL_OK")
</pallas_src>

<mosaic_0001>
module attributes {stable_mosaic.version = 11 : i64} {
  func.func @_linear_bias_kernel(%arg0: i32, %arg1: memref<8x64xbf16, #tpu.memory_space<vmem>>, %arg2: memref<64x512xbf16, #tpu.memory_space<vmem>>, %arg3: memref<1x512xf32, #tpu.memory_space<vmem>>, %arg4: memref<8x512xbf16, #tpu.memory_space<vmem>>) attributes {dimension_semantics = [#tpu.dimension_semantics<parallel>], iteration_bounds = array<i64: 4>, scalar_prefetch = 0 : i64, scratch_operands = 0 : i64, tpu.core_type = #tpu.core_type<tc>, window_params = [{pipeline_mode = #tpu.pipeline_mode<synchronous>, transform_indices = @transform_0, window_bounds = array<i64: 8, 64>}, {transform_indices = @transform_1, window_bounds = array<i64: 64, 512>}, {transform_indices = @transform_2, window_bounds = array<i64: 1, 512>}, {transform_indices = @transform_3, window_bounds = array<i64: 8, 512>}]} {
    %c0 = arith.constant 0 : index
    %c0_0 = arith.constant 0 : index
    %0 = vector.load %arg1[%c0, %c0_0] : memref<8x64xbf16, #tpu.memory_space<vmem>>, vector<8x64xbf16>
    %c0_1 = arith.constant 0 : index
    %c0_2 = arith.constant 0 : index
    %1 = vector.load %arg2[%c0_1, %c0_2] : memref<64x512xbf16, #tpu.memory_space<vmem>>, vector<64x512xbf16>
    %cst = arith.constant dense<0.000000e+00> : vector<8x512xf32>
    %2 = tpu.matmul %0, %1, %cst {dimension_numbers = #tpu.dot_dimension_numbers<[1], [0], [0], [1], [0, 0, 1, 1], [], []>} : vector<8x64xbf16>, vector<64x512xbf16>, vector<8x512xf32> -> vector<8x512xf32>
    %c0_3 = arith.constant 0 : index
    %c0_4 = arith.constant 0 : index
    %3 = vector.load %arg3[%c0_3, %c0_4] : memref<1x512xf32, #tpu.memory_space<vmem>>, vector<1x512xf32>
    %4 = vector.broadcast %3 : vector<1x512xf32> to vector<8x512xf32>
    %5 = arith.addf %2, %4 : vector<8x512xf32>
    %6 = arith.truncf %5 : vector<8x512xf32> to vector<8x512xbf16>
    %c0_5 = arith.constant 0 : index
    %c0_6 = arith.constant 0 : index
    %7 = vector.load %arg4[%c0_5, %c0_6] : memref<8x512xbf16, #tpu.memory_space<vmem>>, vector<8x512xbf16>
    tpu.vector_store %arg4[%c0_5, %c0_6], %6 {strides = array<i32>} : memref<8x512xbf16, #tpu.memory_space<vmem>>, vector<8x512xbf16>,
    return
  }
  func.func @transform_0(%arg0: i32) -> (i32, i32) {
    %c0_i32 = arith.constant 0 : i32
    %c0_i32_0 = arith.constant 0 : i32
    %c0_i32_1 = arith.constant 0 : i32
    return %c0_i32, %c0_i32_0 : i32, i32
  }
  func.func @transform_1(%arg0: i32) -> (i32, i32) {
    %c0_i32 = arith.constant 0 : i32
    %c0_i32_0 = arith.constant 0 : i32
    return %c0_i32, %arg0 : i32, i32
  }
  func.func @transform_2(%arg0: i32) -> (i32, i32) {
    %c0_i32 = arith.constant 0 : i32
    %c0_i32_0 = arith.constant 0 : i32
    return %c0_i32, %arg0 : i32, i32
  }
  func.func @transform_3(%arg0: i32) -> (i32, i32) {
    %c0_i32 = arith.constant 0 : i32
    %c0_i32_0 = arith.constant 0 : i32
    return %c0_i32, %arg0 : i32, i32
  }
}

module attributes {stable_mosaic.version = 11 : i64} {
  func.func @_linear_bias_kernel(%arg0: i32, %arg1: memref<8x64xbf16, #tpu.memory_space<vmem>>, %arg2: memref<64x512xbf16, #tpu.memory_space<vmem>>, %arg3: memref<1x512xf32, #tpu.memory_space<vmem>>, %arg4: memref<8x512xbf16, #tpu.memory_space<vmem>>) attributes {dimension_semantics = [#tpu.dimension_semantics<parallel>], iteration_bounds = array<i64: 8>, scalar_prefetch = 0 : i64, scratch_operands = 0 : i64, tpu.core_type = #tpu.core_type<tc>, window_params = [{pipeline_mode = #tpu.pipeline_mode<synchronous>, transform_indices = @transform_0, window_bounds = array<i64: 8, 64>}, {transform_indices = @transform_1, window_bounds = array<i64: 64, 512>}, {transform_indices = @transform_2, window_bounds = array<i64: 1, 512>}, {transform_indices = @transform_3, window_bounds = array<i64: 8, 512>}]} {
    %c0 = arith.constant 0 : index
    %c0_0 = arith.constant 0 : index
    %0 = vector.load %arg1[%c0, %c0_0] : memref<8x64xbf16, #tpu.memory_space<vmem>>, vector<8x64xbf16>
    %c0_1 = arith.constant 0 : index
    %c0_2 = arith.constant 0 : index
    %1 = vector.load %arg2[%c0_1, %c0_2] : memref<64x512xbf16, #tpu.memory_space<vmem>>, vector<64x512xbf16>
    %cst = arith.constant dense<0.000000e+00> : vector<8x512xf32>
    %2 = tpu.matmul %0, %1, %cst {dimension_numbers = #tpu.dot_dimension_numbers<[1], [0], [0], [1], [0, 0, 1, 1], [], []>} : vector<8x64xbf16>, vector<64x512xbf16>, vector<8x512xf32> -> vector<8x512xf32>
    %c0_3 = arith.constant 0 : index
    %c0_4 = arith.constant 0 : index
    %3 = vector.load %arg3[%c0_3, %c0_4] : memref<1x512xf32, #tpu.memory_space<vmem>>, vector<1x512xf32>
    %4 = vector.broadcast %3 : vector<1x512xf32> to vector<8x512xf32>
    %5 = arith.addf %2, %4 : vector<8x512xf32>
    %6 = arith.truncf %5 : vector<8x512xf32> to vector<8x512xbf16>
    %c0_5 = arith.constant 0 : index
    %c0_6 = arith.constant 0 : index
    %7 = vector.load %arg4[%c0_5, %c0_6] : memref<8x512xbf16, #tpu.memory_space<vmem>>, vector<8x512xbf16>
    tpu.vector_store %arg4[%c0_5, %c0_6], %6 {strides = array<i32>} : memref<8x512xbf16, #tpu.memory_space<vmem>>, vector<8x512xbf16>,
    return
  }
  func.func @transform_0(%arg0: i32) -> (i32, i32) {
    %c0_i32 = arith.constant 0 : i32
    %c0_i32_0 = arith.constant 0 : i32
    %c0_i32_1 = arith.constant 0 : i32
    return %c0_i32, %c0_i32_0 : i32, i32
  }
  func.func @transform_1(%arg0: i32) -> (i32, i32) {
    %c0_i32 = arith.constant 0 : i32
    %c0_i32_0 = arith.constant 0 : i32
    return %c0_i32, %arg0 : i32, i32
  }
  func.func @transform_2(%arg0: i32) -> (i32, i32) {
    %c0_i32 = arith.constant 0 : i32
    %c0_i32_0 = arith.constant 0 : i32
    return %c0_i32, %arg0 : i32, i32
  }
  func.func @transform_3(%arg0: i32) -> (i32, i32) {
    %c0_i32 = arith.constant 0 : i32
    %c0_i32_0 = arith.constant 0 : i32
    return %c0_i32, %arg0 : i32, i32
  }
}

module attributes {stable_mosaic.version = 11 : i64} {
  func.func @_decoder_kernel(%arg0: i32, %arg1: memref<8x512xbf16, #tpu.memory_space<vmem>>, %arg2: memref<8x1024xbf16, #tpu.memory_space<vmem>>, %arg3: memref<512x512xbf16, #tpu.memory_space<vmem>>, %arg4: memref<1x512xf32, #tpu.memory_space<vmem>>, %arg5: memref<256x256xbf16, #tpu.memory_space<vmem>>, %arg6: memref<1x256xf32, #tpu.memory_space<vmem>>, %arg7: memref<1024x128xbf16, #tpu.memory_space<vmem>>, %arg8: memref<1x128xf32, #tpu.memory_space<vmem>>, %arg9: memref<8x128xf32, #tpu.memory_space<vmem>>) attributes {dimension_semantics = [#tpu.dimension_semantics<parallel>], iteration_bounds = array<i64: 1>, scalar_prefetch = 0 : i64, scratch_operands = 0 : i64, tpu.core_type = #tpu.core_type<tc>, window_params = [{transform_indices = @transform_0, window_bounds = array<i64: 8, 512>}, {transform_indices = @transform_1, window_bounds = array<i64: 8, 1024>}, {pipeline_mode = #tpu.pipeline_mode<synchronous>, transform_indices = @transform_2, window_bounds = array<i64: 512, 512>}, {pipeline_mode = #tpu.pipeline_mode<synchronous>, transform_indices = @transform_3, window_bounds = array<i64: 1, 512>}, {pipeline_mode = #tpu.pipeline_mode<synchronous>, transform_indices = @transform_4, window_bounds = array<i64: 256, 256>}, {pipeline_mode = #tpu.pipeline_mode<synchronous>, transform_indices = @transform_5, window_bounds = array<i64: 1, 256>}, {pipeline_mode = #tpu.pipeline_mode<synchronous>, transform_indices = @transform_6, window_bounds = array<i64: 1024, 128>}, {pipeline_mode = #tpu.pipeline_mode<synchronous>, transform_indices = @transform_7, window_bounds = array<i64: 1, 128>}, {transform_indices = @transform_8, window_bounds = array<i64: 8, 128>}]} {
    %c0 = arith.constant 0 : index
    %c0_0 = arith.constant 0 : index
    %0 = vector.load %arg1[%c0, %c0_0] : memref<8x512xbf16, #tpu.memory_space<vmem>>, vector<8x512xbf16>
    %c0_1 = arith.constant 0 : index
    %c0_2 = arith.constant 0 : index
    %1 = vector.load %arg3[%c0_1, %c0_2] : memref<512x512xbf16, #tpu.memory_space<vmem>>, vector<512x512xbf16>
    %cst = arith.constant dense<0.000000e+00> : vector<8x512xf32>
    %2 = tpu.matmul %0, %1, %cst {dimension_numbers = #tpu.dot_dimension_numbers<[1], [0], [0], [1], [0, 0, 1, 1], [], []>} : vector<8x512xbf16>, vector<512x512xbf16>, vector<8x512xf32> -> vector<8x512xf32>
    %c0_3 = arith.constant 0 : index
    %c0_4 = arith.constant 0 : index
    %3 = vector.load %arg4[%c0_3, %c0_4] : memref<1x512xf32, #tpu.memory_space<vmem>>, vector<1x512xf32>
    %4 = vector.broadcast %3 : vector<1x512xf32> to vector<8x512xf32>
    %5 = arith.addf %2, %4 : vector<8x512xf32>
    %c0_5 = arith.constant 0 : index
    %c0_6 = arith.constant 0 : index
    %6 = vector.load %arg5[%c0_5, %c0_6] : memref<256x256xbf16, #tpu.memory_space<vmem>>, vector<256x256xbf16>
    %c0_7 = arith.constant 0 : index
    %c0_8 = arith.constant 0 : index
    %7 = vector.load %arg6[%c0_7, %c0_8] : memref<1x256xf32, #tpu.memory_space<vmem>>, vector<1x256xf32>
    %8 = vector.extract_strided_slice %5 {offsets = [0, 0], sizes = [8, 128], strides = [1, 1]} : vector<8x512xf32> to vector<8x128xf32>
    %c0_9 = arith.constant 0 : index
    %c0_10 = arith.constant 0 : index
    %9 = vector.load %arg2[%c0_9, %c0_10] : memref<8x1024xbf16, #tpu.memory_space<vmem>>, vector<8x256xbf16>
    %10 = arith.extf %9 : vector<8x256xbf16> to vector<8x256xf32>
    %cst_11 = arith.constant 0.000000e+00 : f32
    %11 = vector.broadcast %cst_11 : f32 to vector<8x128xf32>
    %12 = arith.maximumf %8, %11 : vector<8x128xf32>
    %13 = vector.extract_strided_slice %10 {offsets = [0, 0], sizes = [8, 128], strides = [1, 1]} : vector<8x256xf32> to vector<8x128xf32>
    %14 = arith.addf %12, %13 : vector<8x128xf32>
    %cst_12 = arith.constant 0.000000e+00 : f32
    %15 = vector.broadcast %cst_12 : f32 to vector<8x128xf32>
    %16 = arith.subf %15, %8 : vector<8x128xf32>
    %cst_13 = arith.constant 0.000000e+00 : f32
    %17 = vector.broadcast %cst_13 : f32 to vector<8x128xf32>
    %18 = arith.maximumf %16, %17 : vector<8x128xf32>
    %19 = vector.extract_strided_slice %10 {offsets = [0, 128], sizes = [8, 128], strides = [1, 1]} : vector<8x256xf32> to vector<8x128xf32>
    %20 = arith.addf %18, %19 : vector<8x128xf32>
    %21 = tpu.concatenate %14, %20 in 1 : vector<8x128xf32>, vector<8x128xf32> -> vector<8x256xf32>
    %22 = arith.truncf %21 : vector<8x256xf32> to vector<8x256xbf16>
    %cst_14 = arith.constant dense<0.000000e+00> : vector<8x256xf32>
    %23 = tpu.matmul %22, %6, %cst_14 {dimension_numbers = #tpu.dot_dimension_numbers<[1], [0], [0], [1], [0, 0, 1, 1], [], []>} : vector<8x256xbf16>, vector<256x256xbf16>, vector<8x256xf32> -> vector<8x256xf32>
    %24 = vector.broadcast %7 : vector<1x256xf32> to vector<8x256xf32>
    %25 = arith.addf %23, %24 : vector<8x256xf32>
    %cst_15 = arith.constant 0.000000e+00 : f32
    %26 = vector.broadcast %cst_15 : f32 to vector<8x256xf32>
    %27 = arith.maximumf %25, %26 : vector<8x256xf32>
    %28 = vector.extract_strided_slice %5 {offsets = [0, 128], sizes = [8, 128], strides = [1, 1]} : vector<8x512xf32> to vector<8x128xf32>
    %c0_16 = arith.constant 0 : index
    %c256 = arith.constant 256 : index
    %29 = vector.load %arg2[%c0_16, %c256] : memref<8x1024xbf16, #tpu.memory_space<vmem>>, vector<8x256xbf16>
    %30 = arith.extf %29 : vector<8x256xbf16> to vector<8x256xf32>
    %cst_17 = arith.constant 0.000000e+00 : f32
    %31 = vector.broadcast %cst_17 : f32 to vector<8x128xf32>
    %32 = arith.maximumf %28, %31 : vector<8x128xf32>
    %33 = vector.extract_strided_slice %30 {offsets = [0, 0], sizes = [8, 128], strides = [1, 1]} : vector<8x256xf32> to vector<8x128xf32>
    %34 = arith.addf %32, %33 : vector<8x128xf32>
    %cst_18 = arith.constant 0.000000e+00 : f32
    %35 = vector.broadcast %cst_18 : f32 to vector<8x128xf32>
    %36 = arith.subf %35, %28 : vector<8x128xf32>
    %cst_19 = arith.constant 0.000000e+00 : f32
    %37 = vector.broadcast %cst_19 : f32 to vector<8x128xf32>
    %38 = arith.maximumf %36, %37 : vector<8x128xf32>
    %39 = vector.extract_strided_slice %30 {offsets = [0, 128], sizes = [8, 128], strides = [1, 1]} : vector<8x256xf32> to vector<8x128xf32>
    %40 = arith.addf %38, %39 : vector<8x128xf32>
    %41 = tpu.concatenate %34, %40 in 1 : vector<8x128xf32>, vector<8x128xf32> -> vector<8x256xf32>
    %42 = arith.truncf %41 : vector<8x256xf32> to vector<8x256xbf16>
    %cst_20 = arith.constant dense<0.000000e+00> : vector<8x256xf32>
    %43 = tpu.matmul %42, %6, %cst_20 {dimension_numbers = #tpu.dot_dimension_numbers<[1], [0], [0], [1], [0, 0, 1, 1], [], []>} : vector<8x256xbf16>, vector<256x256xbf16>, vector<8x256xf32> -> vector<8x256xf32>
    %44 = vector.broadcast %7 : vector<1x256xf32> to vector<8x256xf32>
    %45 = arith.addf %43, %44 : vector<8x256xf32>
    %cst_21 = arith.constant 0.000000e+00 : f32
    %46 = vector.broadcast %cst_21 : f32 to vector<8x256xf32>
    %47 = arith.maximumf %45, %46 : vector<8x256xf32>
    %48 = vector.extract_strided_slice %5 {offsets = [0, 256], sizes = [8, 128], strides = [1, 1]} : vector<8x512xf32> to vector<8x128xf32>
    %c0_22 = arith.constant 0 : index
    %c512 = arith.constant 512 : index
    %49 = vector.load %arg2[%c0_22, %c512] : memref<8x1024xbf16, #tpu.memory_space<vmem>>, vector<8x256xbf16>
    %50 = arith.extf %49 : vector<8x256xbf16> to vector<8x256xf32>
    %cst_23 = arith.constant 0.000000e+00 : f32
    %51 = vector.broadcast %cst_23 : f32 to vector<8x128xf32>
    %52 = arith.maximumf %48, %51 : vector<8x128xf32>
    %53 = vector.extract_strided_slice %50 {offsets = [0, 0], sizes = [8, 128], strides = [1, 1]} : vector<8x256xf32> to vector<8x128xf32>
    %54 = arith.addf %52, %53 : vector<8x128xf32>
    %cst_24 = arith.constant 0.000000e+00 : f32
    %55 = vector.broadcast %cst_24 : f32 to vector<8x128xf32>
    %56 = arith.subf %55, %48 : vector<8x128xf32>
    %cst_25 = arith.constant 0.000000e+00 : f32
    %57 = vector.broadcast %cst_25 : f32 to vector<8x128xf32>
    %58 = arith.maximumf %56, %57 : vector<8x128xf32>
    %59 = vector.extract_strided_slice %50 {offsets = [0, 128], sizes = [8, 128], strides = [1, 1]} : vector<8x256xf32> to vector<8x128xf32>
    %60 = arith.addf %58, %59 : vector<8x128xf32>
    %61 = tpu.concatenate %54, %60 in 1 : vector<8x128xf32>, vector<8x128xf32> -> vector<8x256xf32>
    %62 = arith.truncf %61 : vector<8x256xf32> to vector<8x256xbf16>
    %cst_26 = arith.constant dense<0.000000e+00> : vector<8x256xf32>
    %63 = tpu.matmul %62, %6, %cst_26 {dimension_numbers = #tpu.dot_dimension_numbers<[1], [0], [0], [1], [0, 0, 1, 1], [], []>} : vector<8x256xbf16>, vector<256x256xbf16>, vector<8x256xf32> -> vector<8x256xf32>
    %64 = vector.broadcast %7 : vector<1x256xf32> to vector<8x256xf32>
    %65 = arith.addf %63, %64 : vector<8x256xf32>
    %cst_27 = arith.constant 0.000000e+00 : f32
    %66 = vector.broadcast %cst_27 : f32 to vector<8x256xf32>
    %67 = arith.maximumf %65, %66 : vector<8x256xf32>
    %68 = vector.extract_strided_slice %5 {offsets = [0, 384], sizes = [8, 128], strides = [1, 1]} : vector<8x512xf32> to vector<8x128xf32>
    %c0_28 = arith.constant 0 : index
    %c768 = arith.constant 768 : index
    %69 = vector.load %arg2[%c0_28, %c768] : memref<8x1024xbf16, #tpu.memory_space<vmem>>, vector<8x256xbf16>
    %70 = arith.extf %69 : vector<8x256xbf16> to vector<8x256xf32>
    %cst_29 = arith.constant 0.000000e+00 : f32
    %71 = vector.broadcast %cst_29 : f32 to vector<8x128xf32>
    %72 = arith.maximumf %68, %71 : vector<8x128xf32>
    %73 = vector.extract_strided_slice %70 {offsets = [0, 0], sizes = [8, 128], strides = [1, 1]} : vector<8x256xf32> to vector<8x128xf32>
    %74 = arith.addf %72, %73 : vector<8x128xf32>
    %cst_30 = arith.constant 0.000000e+00 : f32
    %75 = vector.broadcast %cst_30 : f32 to vector<8x128xf32>
    %76 = arith.subf %75, %68 : vector<8x128xf32>
    %cst_31 = arith.constant 0.000000e+00 : f32
    %77 = vector.broadcast %cst_31 : f32 to vector<8x128xf32>
    %78 = arith.maximumf %76, %77 : vector<8x128xf32>
    %79 = vector.extract_strided_slice %70 {offsets = [0, 128], sizes = [8, 128], strides = [1, 1]} : vector<8x256xf32> to vector<8x128xf32>
    %80 = arith.addf %78, %79 : vector<8x128xf32>
    %81 = tpu.concatenate %74, %80 in 1 : vector<8x128xf32>, vector<8x128xf32> -> vector<8x256xf32>
    %82 = arith.truncf %81 : vector<8x256xf32> to vector<8x256xbf16>
    %cst_32 = arith.constant dense<0.000000e+00> : vector<8x256xf32>
    %83 = tpu.matmul %82, %6, %cst_32 {dimension_numbers = #tpu.dot_dimension_numbers<[1], [0], [0], [1], [0, 0, 1, 1], [], []>} : vector<8x256xbf16>, vector<256x256xbf16>, vector<8x256xf32> -> vector<8x256xf32>
    %84 = vector.broadcast %7 : vector<1x256xf32> to vector<8x256xf32>
    %85 = arith.addf %83, %84 : vector<8x256xf32>
    %cst_33 = arith.constant 0.000000e+00 : f32
    %86 = vector.broadcast %cst_33 : f32 to vector<8x256xf32>
    %87 = arith.maximumf %85, %86 : vector<8x256xf32>
    %88 = tpu.concatenate %27, %47, %67, %87 in 1 : vector<8x256xf32>, vector<8x256xf32>, vector<8x256xf32>, vector<8x256xf32> -> vector<8x1024xf32>
    %89 = arith.truncf %88 : vector<8x1024xf32> to vector<8x1024xbf16>
    %c0_34 = arith.constant 0 : index
    %c0_35 = arith.constant 0 : index
    %90 = vector.load %arg7[%c0_34, %c0_35] : memref<1024x128xbf16, #tpu.memory_space<vmem>>, vector<1024x128xbf16>
    %cst_36 = arith.constant dense<0.000000e+00> : vector<8x128xf32>
    %91 = tpu.matmul %89, %90, %cst_36 {dimension_numbers = #tpu.dot_dimension_numbers<[1], [0], [0], [1], [0, 0, 1, 1], [], []>} : vector<8x1024xbf16>, vector<1024x128xbf16>, vector<8x128xf32> -> vector<8x128xf32>
    %c0_37 = arith.constant 0 : index
    %c0_38 = arith.constant 0 : index
    %92 = vector.load %arg8[%c0_37, %c0_38] : memref<1x128xf32, #tpu.memory_space<vmem>>, vector<1x128xf32>
    %93 = vector.broadcast %92 : vector<1x128xf32> to vector<8x128xf32>
    %94 = arith.addf %91, %93 : vector<8x128xf32>
    %c0_39 = arith.constant 0 : index
    %c0_40 = arith.constant 0 : index
    %95 = vector.load %arg9[%c0_39, %c0_40] : memref<8x128xf32, #tpu.memory_space<vmem>>, vector<8x128xf32>
    tpu.vector_store %arg9[%c0_39, %c0_40], %94 {strides = array<i32>} : memref<8x128xf32, #tpu.memory_space<vmem>>, vector<8x128xf32>,
    return
  }
  func.func @transform_0(%arg0: i32) -> (i32, i32) {
    %c0_i32 = arith.constant 0 : i32
    %c0_i32_0 = arith.constant 0 : i32
    return %arg0, %c0_i32 : i32, i32
  }
  func.func @transform_1(%arg0: i32) -> (i32, i32) {
    %c0_i32 = arith.constant 0 : i32
    %c0_i32_0 = arith.constant 0 : i32
    return %arg0, %c0_i32 : i32, i32
  }
  func.func @transform_2(%arg0: i32) -> (i32, i32) {
    %c0_i32 = arith.constant 0 : i32
    %c0_i32_0 = arith.constant 0 : i32
    %c0_i32_1 = arith.constant 0 : i32
    return %c0_i32, %c0_i32_0 : i32, i32
  }
  func.func @transform_3(%arg0: i32) -> (i32, i32) {
    %c0_i32 = arith.constant 0 : i32
    %c0_i32_0 = arith.constant 0 : i32
    %c0_i32_1 = arith.constant 0 : i32
    return %c0_i32, %c0_i32_0 : i32, i32
  }
  func.func @transform_4(%arg0: i32) -> (i32, i32) {
    %c0_i32 = arith.constant 0 : i32
    %c0_i32_0 = arith.constant 0 : i32
    %c0_i32_1 = arith.constant 0 : i32
    return %c0_i32, %c0_i32_0 : i32, i32
  }
  func.func @transform_5(%arg0: i32) -> (i32, i32) {
    %c0_i32 = arith.constant 0 : i32
    %c0_i32_0 = arith.constant 0 : i32
    %c0_i32_1 = arith.constant 0 : i32
    return %c0_i32, %c0_i32_0 : i32, i32
  }
  func.func @transform_6(%arg0: i32) -> (i32, i32) {
    %c0_i32 = arith.constant 0 : i32
    %c0_i32_0 = arith.constant 0 : i32
    %c0_i32_1 = arith.constant 0 : i32
    return %c0_i32, %c0_i32_0 : i32, i32
  }
  func.func @transform_7(%arg0: i32) -> (i32, i32) {
    %c0_i32 = arith.constant 0 : i32
    %c0_i32_0 = arith.constant 0 : i32
    %c0_i32_1 = arith.constant 0 : i32
    return %c0_i32, %c0_i32_0 : i32, i32
  }
  func.func @transform_8(%arg0: i32) -> (i32, i32) {
    %c0_i32 = arith.constant 0 : i32
    %c0_i32_0 = arith.constant 0 : i32
    return %arg0, %c0_i32 : i32, i32
  }
}

module attributes {stable_mosaic.version = 11 : i64} {
  func.func @_hermitian_normalize_kernel(%arg0: i32, %arg1: memref<1x16x16xf32, #tpu.memory_space<vmem>>, %arg2: memref<1x16x16xf32, #tpu.memory_space<vmem>>, %arg3: memref<1x16x16xf32, #tpu.memory_space<vmem>>, %arg4: memref<1x16x16xf32, #tpu.memory_space<vmem>>, %arg5: memref<1x16x16xf32, #tpu.memory_space<vmem>>, %arg6: memref<1x16x16xf32, #tpu.memory_space<vmem>>) attributes {dimension_semantics = [#tpu.dimension_semantics<parallel>], iteration_bounds = array<i64: 2>, scalar_prefetch = 0 : i64, scratch_operands = 0 : i64, tpu.core_type = #tpu.core_type<tc>, window_params = [{transform_indices = @transform_0, window_bounds = array<i64: 1, 16, 16>}, {transform_indices = @transform_1, window_bounds = array<i64: 1, 16, 16>}, {transform_indices = @transform_2, window_bounds = array<i64: 1, 16, 16>}, {transform_indices = @transform_3, window_bounds = array<i64: 1, 16, 16>}, {transform_indices = @transform_4, window_bounds = array<i64: 1, 16, 16>}, {transform_indices = @transform_5, window_bounds = array<i64: 1, 16, 16>}]} {
    %c0 = arith.constant 0 : index
    %c0_0 = arith.constant 0 : index
    %c0_1 = arith.constant 0 : index
    %0 = vector.load %arg1[%c0, %c0_0, %c0_1] : memref<1x16x16xf32, #tpu.memory_space<vmem>>, vector<1x16x16xf32>
    %c0_2 = arith.constant 0 : index
    %c0_3 = arith.constant 0 : index
    %c0_4 = arith.constant 0 : index
    %1 = vector.load %arg2[%c0_2, %c0_3, %c0_4] : memref<1x16x16xf32, #tpu.memory_space<vmem>>, vector<1x16x16xf32>
    %2 = arith.addf %0, %1 : vector<1x16x16xf32>
    %cst = arith.constant 5.000000e-01 : f32
    %3 = vector.broadcast %cst : f32 to vector<1x16x16xf32>
    %4 = arith.mulf %3, %2 : vector<1x16x16xf32>
    %c0_5 = arith.constant 0 : index
    %c0_6 = arith.constant 0 : index
    %c0_7 = arith.constant 0 : index
    %5 = vector.load %arg3[%c0_5, %c0_6, %c0_7] : memref<1x16x16xf32, #tpu.memory_space<vmem>>, vector<1x16x16xf32>
    %c0_8 = arith.constant 0 : index
    %c0_9 = arith.constant 0 : index
    %c0_10 = arith.constant 0 : index
    %6 = vector.load %arg4[%c0_8, %c0_9, %c0_10] : memref<1x16x16xf32, #tpu.memory_space<vmem>>, vector<1x16x16xf32>
    %7 = arith.subf %5, %6 : vector<1x16x16xf32>
    %cst_11 = arith.constant 5.000000e-01 : f32
    %8 = vector.broadcast %cst_11 : f32 to vector<1x16x16xf32>
    %9 = arith.mulf %8, %7 : vector<1x16x16xf32>
    %10 = arith.mulf %4, %4 : vector<1x16x16xf32>
    %11 = arith.mulf %9, %9 : vector<1x16x16xf32>
    %12 = arith.addf %10, %11 : vector<1x16x16xf32>
    %cst_12 = arith.constant dense<0.000000e+00> : vector<1xf32>
    %13 = vector.multi_reduction <add>, %12, %cst_12 [1, 2] : vector<1x16x16xf32> to vector<1xf32>
    %14 = vector.shape_cast %13 : vector<1xf32> to vector<1x1x1xf32>
    %15 = math.sqrt %14 : vector<1x1x1xf32>
    %cst_13 = arith.constant 9.99999996E-13 : f32
    %16 = vector.broadcast %cst_13 : f32 to vector<1x1x1xf32>
    %17 = arith.maximumf %15, %16 : vector<1x1x1xf32>
    %cst_14 = arith.constant 1.000000e+00 : f32
    %18 = vector.broadcast %cst_14 : f32 to vector<1x1x1xf32>
    %19 = arith.divf %18, %17 : vector<1x1x1xf32>
    %20 = tpu.iota {dimensions = array<i32: 1>} : vector<1x16x16xi32>
    %21 = tpu.iota {dimensions = array<i32: 2>} : vector<1x16x16xi32>
    %22 = arith.cmpi eq, %20, %21 : vector<1x16x16xi32>
    %23 = arith.extui %22 : vector<1x16x16xi1> to vector<1x16x16xi32>
    %24 = arith.sitofp %23 : vector<1x16x16xi32> to vector<1x16x16xf32>
    %25 = vector.broadcast %19 : vector<1x1x1xf32> to vector<1x16x16xf32>
    %26 = arith.mulf %4, %25 : vector<1x16x16xf32>
    %27 = arith.addf %26, %24 : vector<1x16x16xf32>
    %c0_15 = arith.constant 0 : index
    %c0_16 = arith.constant 0 : index
    %c0_17 = arith.constant 0 : index
    %28 = vector.load %arg5[%c0_15, %c0_16, %c0_17] : memref<1x16x16xf32, #tpu.memory_space<vmem>>, vector<1x16x16xf32>
    tpu.vector_store %arg5[%c0_15, %c0_16, %c0_17], %27 {strides = array<i32>} : memref<1x16x16xf32, #tpu.memory_space<vmem>>, vector<1x16x16xf32>,
    %29 = vector.broadcast %19 : vector<1x1x1xf32> to vector<1x16x16xf32>
    %30 = arith.mulf %9, %29 : vector<1x16x16xf32>
    %c0_18 = arith.constant 0 : index
    %c0_19 = arith.constant 0 : index
    %c0_20 = arith.constant 0 : index
    %31 = vector.load %arg6[%c0_18, %c0_19, %c0_20] : memref<1x16x16xf32, #tpu.memory_space<vmem>>, vector<1x16x16xf32>
    tpu.vector_store %arg6[%c0_18, %c0_19, %c0_20], %30 {strides = array<i32>} : memref<1x16x16xf32, #tpu.memory_space<vmem>>, vector<1x16x16xf32>,
    return
  }
  func.func @transform_0(%arg0: i32) -> (i32, i32, i32) {
    %c0_i32 = arith.constant 0 : i32
    %c0_i32_0 = arith.constant 0 : i32
    %c0_i32_1 = arith.constant 0 : i32
    return %arg0, %c0_i32, %c0_i32_0 : i32, i32, i32
  }
  func.func @transform_1(%arg0: i32) -> (i32, i32, i32) {
    %c0_i32 = arith.constant 0 : i32
    %c0_i32_0 = arith.constant 0 : i32
    %c0_i32_1 = arith.constant 0 : i32
    return %arg0, %c0_i32, %c0_i32_0 : i32, i32, i32
  }
  func.func @transform_2(%arg0: i32) -> (i32, i32, i32) {
    %c0_i32 = arith.constant 0 : i32
    %c0_i32_0 = arith.constant 0 : i32
    %c0_i32_1 = arith.constant 0 : i32
    return %arg0, %c0_i32, %c0_i32_0 : i32, i32, i32
  }
  func.func @transform_3(%arg0: i32) -> (i32, i32, i32) {
    %c0_i32 = arith.constant 0 : i32
    %c0_i32_0 = arith.constant 0 : i32
    %c0_i32_1 = arith.constant 0 : i32
    return %arg0, %c0_i32, %c0_i32_0 : i32, i32, i32
  }
  func.func @transform_4(%arg0: i32) -> (i32, i32, i32) {
    %c0_i32 = arith.constant 0 : i32
    %c0_i32_0 = arith.constant 0 : i32
    %c0_i32_1 = arith.constant 0 : i32
    return %arg0, %c0_i32, %c0_i32_0 : i32, i32, i32
  }
  func.func @transform_5(%arg0: i32) -> (i32, i32, i32) {
    %c0_i32 = arith.constant 0 : i32
    %c0_i32_0 = arith.constant 0 : i32
    %c0_i32_1 = arith.constant 0 : i32
    return %arg0, %c0_i32, %c0_i32_0 : i32, i32, i32
  }
}

</mosaic_0001>

<llo_original>
// kernel: init_single_band_subspacenet_forward.4
$region0: #{init_single_band_subspacenet_forward.4}
  #allocation0 [shape = 'u32[]', space=smem, size = 0x4, offset = 0x4, fixed_abs, tag = 'smem constant byte address 0x4 - core index']
  #allocation1 [shape = 'u32[144,128]{1,0:T(1,128)}', space=vmem, size = 0x12000, scoped, tag = 'internal scratch']
  %s0 = inlined_call_operand.vmem [shape: bf16[8,64], index: 0, kind: input, shape index: {}]
  %s1 = inlined_call_operand.hbm [shape: bf16[64,2048], index: 1, kind: input, shape index: {}]
  %s2 = inlined_call_operand.hbm [shape: f32[1,2048], index: 2, kind: input, shape index: {}]
  %s3 = inlined_call_operand.vmem [shape: bf16[8,2048], index: 3, kind: output, shape index: {}]
  %s4 = sld [smem:[#allocation0]]
  $region53: #{init_single_band_subspacenet_forward.4} parent=0
    _
  %s6 = ssub.s32 1, %s4
  %s7 = scalar_select 0, %s6, %s4
  $region1: #{init_single_band_subspacenet_forward.4} parent=0
    #allocation2 [shape = 'u8[131072]{0}', space=vmem, size = 0x20000, scoped, tag = 'input window, operand 1']
    #allocation3 [shape = 's32[2]{0}', space=sflag, size = 0x8, scoped, tag = 'scoped memory for init_single_band_subspacenet_forward.4']
    #allocation4 [shape = 'u8[4096]{0}', space=vmem, size = 0x1000, scoped, tag = 'input window, operand 2']
    #allocation5 [shape = 's32[2]{0}', space=sflag, size = 0x8, scoped, tag = 'scoped memory for init_single_band_subspacenet_forward.4']
    %8 = vsyncpa [#allocation3], 0
    %s9 = scalar_lea.sflag [#allocation3], 1
    %10 = vsyncpa %s9, 0
    %11 = vsyncpa [#allocation5], 0
    %s12 = scalar_lea.sflag [#allocation5], 1
    %13 = vsyncpa %s12, 0
    loop: start=0, step=1, limit=6
    $region2: #{init_single_band_subspacenet_forward.4} parent=1 // loop_pre_header
      _
    $region3: #{init_single_band_subspacenet_forward.4} parent=1 // loop_header
      %s15 = sphi 0, %s19
      %p16 = scmp.ge.s32.totalorder %s15, 6
      %s23 = sphi 0, %s23
      %s25 = sphi 0, %s23
      %s26 = sphi 0, %s25
      %s40 = sphi 0, %s26
      %s46 = sphi 0, %s48
      %s49 = sphi 0, %s46
      %s50 = sphi 0, %s49
      %s66 = sphi 0, %s50
      %s72 = sphi 0, %s74
      %s75 = sphi 0, %s72
      %s76 = sphi 0, %s75
      %s92 = sphi 0, %s76
      %s98 = sphi 0, %s100
      %s101 = sphi 0, %s98
      %s102 = sphi 0, %s101
      %s118 = sphi 0, %s102
    $region4: #{init_single_band_subspacenet_forward.4} parent=1 // loop_header_branch
      %18 = sbr.rel (%p16) target = $region8
    $region5: #{init_single_band_subspacenet_forward.4} parent=1 // loop_body
      %s20 = ssub.s32 %s15, 1
      %s21 = ssub.s32 %s15, 2
      %s22 = sadd.s32 %s15, 1
      %s24 = sadd.s32 %s23, 1
      %p27 = scmp.eq.s32.totalorder %s15, 3
      %p28 = scmp.ne.s32.totalorder %s23, %s25
      %p29 = scmp.eq.s32.totalorder %s15, 0
      %p30 = por %p28, %p29
      %p31 = scmp.ne.s32.totalorder %s23, %s25
      %p32 = scmp.eq.s32.totalorder %s20, 3
      %p33 = por %p31, %p32
      %p34 = scmp.ne.s32.totalorder %s25, %s26
      %p35 = scmp.eq.s32.totalorder %s20, 0
      %p36 = por %p34, %p35
      %p37 = scmp.ne.s32.totalorder %s25, %s26
      %p38 = scmp.eq.s32.totalorder %s21, 3
      %p39 = por %p37, %p38
      %p41 = scmp.ne.s32.totalorder %s26, %s40
      %p42 = scmp.eq.s32.totalorder %s21, 0
      %p43 = por %p41, %p42
      %s44 = ssub.s32 %s15, %s22
      %p45 = scmp.eq.s32.totalorder %s44, 0
      %s47 = sadd.s32 %s46, 1
      %s48 = scalar_select %p45, %s46, %s47
      %p51 = pneg %p45
      %p52 = scmp.eq.s32.totalorder %s15, 3
      %p53 = por %p51, %p52
      %p54 = scmp.ne.s32.totalorder %s46, %s49
      %p55 = scmp.eq.s32.totalorder %s15, 0
      %p56 = por %p54, %p55
      %p57 = scmp.ne.s32.totalorder %s46, %s49
      %p58 = scmp.eq.s32.totalorder %s20, 3
      %p59 = por %p57, %p58
      %p60 = scmp.ne.s32.totalorder %s49, %s50
      %p61 = scmp.eq.s32.totalorder %s20, 0
      %p62 = por %p60, %p61
      %p63 = scmp.ne.s32.totalorder %s49, %s50
      %p64 = scmp.eq.s32.totalorder %s21, 3
      %p65 = por %p63, %p64
      %p67 = scmp.ne.s32.totalorder %s50, %s66
      %p68 = scmp.eq.s32.totalorder %s21, 0
      %p69 = por %p67, %p68
      %s70 = ssub.s32 %s15, %s22
      %p71 = scmp.eq.s32.totalorder %s70, 0
      %s73 = sadd.s32 %s72, 1
      %s74 = scalar_select %p71, %s72, %s73
      %p77 = pneg %p71
      %p78 = scmp.eq.s32.totalorder %s15, 3
      %p79 = por %p77, %p78
      %p80 = scmp.ne.s32.totalorder %s72, %s75
      %p81 = scmp.eq.s32.totalorder %s15, 0
      %p82 = por %p80, %p81
      %p83 = scmp.ne.s32.totalorder %s72, %s75
      %p84 = scmp.eq.s32.totalorder %s20, 3
      %p85 = por %p83, %p84
      %p86 = scmp.ne.s32.totalorder %s75, %s76
      %p87 = scmp.eq.s32.totalorder %s20, 0
      %p88 = por %p86, %p87
      %p89 = scmp.ne.s32.totalorder %s75, %s76
      %p90 = scmp.eq.s32.totalorder %s21, 3
      %p91 = por %p89, %p90
      %p93 = scmp.ne.s32.totalorder %s76, %s92
      %p94 = scmp.eq.s32.totalorder %s21, 0
      %p95 = por %p93, %p94
      %s96 = ssub.s32 %s15, %s22
      %p97 = scmp.eq.s32.totalorder %s96, 0
      %s99 = sadd.s32 %s98, 1
      %s100 = scalar_select %p97, %s98, %s99
      %p103 = pneg %p97
      %p104 = scmp.eq.s32.totalorder %s15, 3
      %p105 = por %p103, %p104
      %p106 = scmp.ne.s32.totalorder %s98, %s101
      %p107 = scmp.eq.s32.totalorder %s15, 0
      %p108 = por %p106, %p107
      %p109 = scmp.ne.s32.totalorder %s98, %s101
      %p110 = scmp.eq.s32.totalorder %s20, 3
      %p111 = por %p109, %p110
      %p112 = scmp.ne.s32.totalorder %s101, %s102
      %p113 = scmp.eq.s32.totalorder %s20, 0
      %p114 = por %p112, %p113
      %p115 = scmp.ne.s32.totalorder %s101, %s102
      %p116 = scmp.eq.s32.totalorder %s21, 3
      %p117 = por %p115, %p116
      %p119 = scmp.ne.s32.totalorder %s102, %s118
      %p120 = scmp.eq.s32.totalorder %s21, 0
      %p121 = por %p119, %p120
      %p122 = scmp.le.s32.totalorder 1, %s15
      %p123 = scmp.lt.s32.totalorder %s15, 5
      %p124 = pnand %p122, %p123
      %p125 = pneg %p124
      // Predicated region
      $region9: #{init_single_band_subspacenet_forward.4} parent=5 // pred_check
        _
      $region10: #{init_single_band_subspacenet_forward.4} parent=5 // pred_check_branch
        %127 = sbr.rel (%p124) target = $region12
      $region11: #{init_single_band_subspacenet_forward.4} parent=5 // pred_region
        %s128 = ssub.s32 %s15, 1
        // Predicated region
        $region13: #{init_single_band_subspacenet_forward.4} parent=11 // pred_check
          %p129 = pneg %p36
        $region14: #{init_single_band_subspacenet_forward.4} parent=11 // pred_check_branch
          %131 = sbr.rel (%p129) target = $region16
        $region15: #{init_single_band_subspacenet_forward.4} parent=11 // pred_region
          _
        $region16: #{init_single_band_subspacenet_forward.4} parent=11 // pred_fallthru
          _
      $region12: #{init_single_band_subspacenet_forward.4} parent=5 // pred_fallthru
        _
      %p132 = scmp.lt.s32.totalorder %s15, 4
      // Predicated region
      $region17: #{init_single_band_subspacenet_forward.4} parent=5 // pred_check
        %p133 = pneg %p132
      $region18: #{init_single_band_subspacenet_forward.4} parent=5 // pred_check_branch
        %135 = sbr.rel (%p133) target = $region20
      $region19: #{init_single_band_subspacenet_forward.4} parent=5 // pred_region
        // Predicated region
        $region21: #{init_single_band_subspacenet_forward.4} parent=19 // pred_check
          %p136 = pneg %p56
        $region22: #{init_single_band_subspacenet_forward.4} parent=19 // pred_check_branch
          %138 = sbr.rel (%p136) target = $region24
        $region23: #{init_single_band_subspacenet_forward.4} parent=19 // pred_region
          %s139 = sand.u32 %s46, 1
          %s140 = scalar_lea.sflag [#allocation3], %s139
          %s141 = sand.u32 %s46, 1
          %s142 = smul.addr %s141, 128
          %s143 = scalar_lea.vmem [#allocation2], %s142
          %s144 = smul.u32 4, %s15
          %s146 = ssub.s32 2048, 2048
          %147 = vsyncadd %s140, %s146
          %s148 = smul.addr %s144, 64
          %s149 = scalar_lea.hbm %s1, %s148
          %s150 = sshll.u32 %s143, 4
          %s151 = int_to_ptr.vmem [resolvable:$true] %s150
          %156 = dma.hbm_to_vmem [thread:$0]  %s149, 2048, %s151, %s140, 1024, 256, 16
        $region24: #{init_single_band_subspacenet_forward.4} parent=19 // pred_fallthru
          _
        // Predicated region
        $region25: #{init_single_band_subspacenet_forward.4} parent=19 // pred_check
          %p157 = pneg %p82
        $region26: #{init_single_band_subspacenet_forward.4} parent=19 // pred_check_branch
          %159 = sbr.rel (%p157) target = $region28
        $region27: #{init_single_band_subspacenet_forward.4} parent=19 // pred_region
          %s160 = sand.u32 %s72, 1
          %s161 = scalar_lea.sflag [#allocation5], %s160
          %s162 = sand.u32 %s72, 1
          %s163 = smul.addr %s162, 4
          %s164 = scalar_lea.vmem [#allocation4], %s163
          %s165 = smul.u32 4, %s15
          %s167 = ssub.s32 64, 64
          %168 = vsyncadd %s161, %s167
          %s169 = smul.addr %s165, 16
          %s170 = scalar_lea.hbm %s2, %s169
          %s172 = sshll.u32 %s164, 4
          %s173 = int_to_ptr.vmem [resolvable:$true] %s172
          %175 = dma.hbm_to_vmem [thread:$0]  %s170, 64, %s173, %s161
        $region28: #{init_single_band_subspacenet_forward.4} parent=19 // pred_fallthru
          _
      $region20: #{init_single_band_subspacenet_forward.4} parent=5 // pred_fallthru
        _
      %p176 = scmp.le.s32.totalorder 1, %s15
      %p177 = scmp.lt.s32.totalorder %s15, 5
      %p178 = pnand %p176, %p177
      %p179 = pneg %p178
      // Predicated region
      $region29: #{init_single_band_subspacenet_forward.4} parent=5 // pred_check
        _
      $region30: #{init_single_band_subspacenet_forward.4} parent=5 // pred_check_branch
        %181 = sbr.rel (%p178) target = $region32
      $region31: #{init_single_band_subspacenet_forward.4} parent=5 // pred_region
        %s182 = ssub.s32 %s15, 1
        %s183 = sand.u32 %s49, 1
        %s184 = scalar_lea.sflag [#allocation3], %s183
        %s185 = sand.u32 %s49, 1
        %s186 = smul.addr %s185, 128
        %s187 = scalar_lea.vmem [#allocation2], %s186
        // Predicated region
        $region33: #{init_single_band_subspacenet_forward.4} parent=31 // pred_check
          %p188 = pneg %p62
        $region34: #{init_single_band_subspacenet_forward.4} parent=31 // pred_check_branch
          %190 = sbr.rel (%p188) target = $region36
        $region35: #{init_single_band_subspacenet_forward.4} parent=31 // pred_region
          %191 = dma.done %s184, 2048
        $region36: #{init_single_band_subspacenet_forward.4} parent=31 // pred_fallthru
          _
        %s192 = sand.u32 %s75, 1
        %s193 = scalar_lea.sflag [#allocation5], %s192
        %s194 = sand.u32 %s75, 1
        %s195 = smul.addr %s194, 4
        %s196 = scalar_lea.vmem [#allocation4], %s195
        // Predicated region
        $region37: #{init_single_band_subspacenet_forward.4} parent=31 // pred_check
          %p197 = pneg %p88
        $region38: #{init_single_band_subspacenet_forward.4} parent=31 // pred_check_branch
          %199 = sbr.rel (%p197) target = $region40
        $region39: #{init_single_band_subspacenet_forward.4} parent=31 // pred_region
          %200 = dma.done %s193, 64
        $region40: #{init_single_band_subspacenet_forward.4} parent=31 // pred_fallthru
          _
        %p201 = pneg %p36
        %p202 = pneg %p33
        %s203 = sand.u32 %s49, 1
        %s204 = scalar_lea.sflag [#allocation3], %s203
        %s205 = sand.u32 %s49, 1
        %s206 = smul.addr %s205, 128
        %s207 = scalar_lea.vmem [#allocation2], %s206
        %p208 = pneg %p62
        %p209 = pneg %p59
        %s210 = sand.u32 %s75, 1
        %s211 = scalar_lea.sflag [#allocation5], %s210
        %s212 = sand.u32 %s75, 1
        %s213 = smul.addr %s212, 4
        %s214 = scalar_lea.vmem [#allocation4], %s213
        %p215 = pneg %p88
        %p216 = pneg %p85
        %p217 = pneg %p114
        %p218 = pneg %p111
        %s219 = smul.u32 4, %s20
        %p220 = scmp.lt.s32.totalorder %s219, 15
        %s221 = scalar_select %p220, %s219, 15
        %s222 = smul.addr %s221, 4
        %s223 = scalar_lea.vmem %s3, %s222
        %s224 = smul.u32 4, %s20
        %s225 = smul.u32 4, %s20
        %s226 = smul.u32 4, %s20
        %p227 = scmp.lt.s32.totalorder %s226, 15
        %s228 = scalar_select %p227, %s226, 15
        %s229 = smul.addr %s228, 4
        %s230 = scalar_lea.vmem %s3, %s229
        %s231 = smul.u32 4, %s20
        %v233 = vld [vmem:[%s0] sm:$0xf]
        %v234 = vld [vmem:[%s187] sm:$0xff]
        %v235 = vld [vmem:[%s187 + $0x8] sm:$0xff]
        %v236 = vld [vmem:[%s187 + $0x10] sm:$0xff]
        %v237 = vld [vmem:[%s187 + $0x18] sm:$0xff]
        %v238 = vld [vmem:[%s187 + $0x20] sm:$0xff]
        %v239 = vld [vmem:[%s187 + $0x28] sm:$0xff]
        %v240 = vld [vmem:[%s187 + $0x30] sm:$0xff]
        %v241 = vld [vmem:[%s187 + $0x38] sm:$0xff]
        %v242 = vld [vmem:[%s187 + $0x40] sm:$0xff]
        %v243 = vld [vmem:[%s187 + $0x48] sm:$0xff]
        %v244 = vld [vmem:[%s187 + $0x50] sm:$0xff]
        %v245 = vld [vmem:[%s187 + $0x58] sm:$0xff]
        %v246 = vld [vmem:[%s187 + $0x60] sm:$0xff]
        %v247 = vld [vmem:[%s187 + $0x68] sm:$0xff]
        %v248 = vld [vmem:[%s187 + $0x70] sm:$0xff]
        %v249 = vld [vmem:[%s187 + $0x78] sm:$0xff]
        %v250 = vld [vmem:[%s196] sm:$0xf]
        %v252 = vlaneseq
        %v253 = vshrl.u32 %v252, 7
        %v254 = vsub.s32 0, %v253
        %v255 = vrot.slane %v250, %v254
        %v256 = vlaneseq
        %v257 = vshrl.u32 %v256, 7
        %v258 = vsub.s32 1, %v257
        %v259 = vrot.slane %v250, %v258
        %v260 = vlaneseq
        %v261 = vshrl.u32 %v260, 7
        %v262 = vsub.s32 2, %v261
        %v263 = vrot.slane %v250, %v262
        %v264 = vlaneseq
        %v265 = vshrl.u32 %v264, 7
        %v266 = vsub.s32 3, %v265
        %v267 = vrot.slane %v250, %v266
        %v288 = vunpack.c.l.b16 %v234
        %v289 = vunpack.c.h.b16 %v234
        %v290 = vunpack.c.l.b16 %v235
        %v291 = vunpack.c.h.b16 %v235
        %v292 = vunpack.c.l.b16 %v236
        %v293 = vunpack.c.h.b16 %v236
        %v294 = vunpack.c.l.b16 %v237
        %v295 = vunpack.c.h.b16 %v237
        %v296 = vunpack.c.l.b16 %v238
        %v297 = vunpack.c.h.b16 %v238
        %v298 = vunpack.c.l.b16 %v239
        %v299 = vunpack.c.h.b16 %v239
        %v300 = vunpack.c.l.b16 %v240
        %v301 = vunpack.c.h.b16 %v240
        %v302 = vunpack.c.l.b16 %v241
        %v303 = vunpack.c.h.b16 %v241
        %v304 = vunpack.c.l.b16 %v242
        %v305 = vunpack.c.h.b16 %v242
        %v306 = vunpack.c.l.b16 %v243
        %v307 = vunpack.c.h.b16 %v243
        %v308 = vunpack.c.l.b16 %v244
        %v309 = vunpack.c.h.b16 %v244
        %v310 = vunpack.c.l.b16 %v245
        %v311 = vunpack.c.h.b16 %v245
        %v312 = vunpack.c.l.b16 %v246
        %v313 = vunpack.c.h.b16 %v246
        %v314 = vunpack.c.l.b16 %v247
        %v315 = vunpack.c.h.b16 %v247
        %v316 = vunpack.c.l.b16 %v248
        %v317 = vunpack.c.h.b16 %v248
        %v318 = vunpack.c.l.b16 %v249
        %v319 = vunpack.c.h.b16 %v249
        %v320 = vpack.c.b16 %v292, %v288
        %v321 = vpack.c.b16 %v293, %v289
        %v322 = vpack.c.b16 %v294, %v290
        %v323 = vpack.c.b16 %v295, %v291
        %v324 = vpack.c.b16 %v300, %v296
        %v325 = vpack.c.b16 %v301, %v297
        %v326 = vpack.c.b16 %v302, %v298
        %v327 = vpack.c.b16 %v303, %v299
        %v328 = vpack.c.b16 %v308, %v304
        %v329 = vpack.c.b16 %v309, %v305
        %v330 = vpack.c.b16 %v310, %v306
        %v331 = vpack.c.b16 %v311, %v307
        %v332 = vpack.c.b16 %v316, %v312
        %v333 = vpack.c.b16 %v317, %v313
        %v334 = vpack.c.b16 %v318, %v314
        %v335 = vpack.c.b16 %v319, %v315
        %vm352 = vcmask 523264
        %v354 = vsel %vm352, %v233, 0
        %356 = vmatprep.subr.bf16.mxu0 0
        %357 = vmatpush1.bf16.msra.mxu0 0
        %358 = vmatprep.subr.bf16.mxu0 0
        %359 = vmatpush1.bf16.msra.mxu0 0
        %360 = vmatprep.subr.bf16.mxu0 0
        %361 = vmatpush1.bf16.msra.mxu0 0
        %362 = vmatprep.subr.bf16.mxu0 0
        %363 = vmatpush1.bf16.msra.mxu0 0
        %364 = vmatprep.subr.bf16.mxu0 %v333
        %365 = vmatpush1.bf16.msra.mxu0 %v332
        %366 = vmatprep.subr.bf16.mxu0 %v329
        %367 = vmatpush1.bf16.msra.mxu0 %v328
        %368 = vmatprep.subr.bf16.mxu0 %v325
        %369 = vmatpush1.bf16.msra.mxu0 %v324
        %370 = vmatprep.subr.bf16.mxu0 %v321
        %371 = vmatpush1.bf16.msra.mxu0 %v320
        %372 = vmatprep.subr.bf16.mxu0 0
        %373 = vmatpush2.bf16.msra.mxu0 0
        %374 = vmatprep.subr.bf16.mxu0 0
        %375 = vmatpush2.bf16.msra.mxu0 0
        %376 = vmatprep.subr.bf16.mxu0 0
        %377 = vmatpush2.bf16.msra.mxu0 0
        %378 = vmatprep.subr.bf16.mxu0 0
        %379 = vmatpush2.bf16.msra.mxu0 0
        %380 = vmatprep.subr.bf16.mxu0 0
        %381 = vmatpush2.bf16.msra.mxu0 0
        %382 = vmatprep.subr.bf16.mxu0 0
        %383 = vmatpush2.bf16.msra.mxu0 0
        %384 = vmatprep.subr.bf16.mxu0 0
        %385 = vmatpush2.bf16.msra.mxu0 0
        %386 = vmatprep.subr.bf16.mxu0 0
        %387 = vmatpush2.bf16.msra.mxu0 0
        %388 = vmatprep.mubr.bf16.mxu0 0
        %389 = vmatmul.mubr.bf16.gmra.mxu0 %v354
        %v390 = vpop.f32.mrf.mxu0
        %v391 = vadd.f32 %v255, %v390
        %v392 = vpop.f32.mrf.mxu0
        %v393 = vadd.f32 %v259, %v392
        %v394 = vpop.f32.mrf.mxu0
        %v395 = vpop.f32.mrf.mxu0
        %396 = vdwg.mxu0
        %397 = vmatprep.subr.bf16.mxu0 0
        %398 = vmatpush1.bf16.msra.mxu0 0
        %399 = vmatprep.subr.bf16.mxu0 0
        %400 = vmatpush1.bf16.msra.mxu0 0
        %401 = vmatprep.subr.bf16.mxu0 0
        %402 = vmatpush1.bf16.msra.mxu0 0
        %403 = vmatprep.subr.bf16.mxu0 0
        %404 = vmatpush1.bf16.msra.mxu0 0
        %405 = vmatprep.subr.bf16.mxu0 %v335
        %406 = vmatpush1.bf16.msra.mxu0 %v334
        %407 = vmatprep.subr.bf16.mxu0 %v331
        %408 = vmatpush1.bf16.msra.mxu0 %v330
        %409 = vmatprep.subr.bf16.mxu0 %v327
        %410 = vmatpush1.bf16.msra.mxu0 %v326
        %411 = vmatprep.subr.bf16.mxu0 %v323
        %412 = vmatpush1.bf16.msra.mxu0 %v322
        %413 = vmatprep.subr.bf16.mxu0 0
        %414 = vmatpush2.bf16.msra.mxu0 0
        %415 = vmatprep.subr.bf16.mxu0 0
        %416 = vmatpush2.bf16.msra.mxu0 0
        %417 = vmatprep.subr.bf16.mxu0 0
        %418 = vmatpush2.bf16.msra.mxu0 0
        %419 = vmatprep.subr.bf16.mxu0 0
        %420 = vmatpush2.bf16.msra.mxu0 0
        %421 = vmatprep.subr.bf16.mxu0 0
        %422 = vmatpush2.bf16.msra.mxu0 0
        %423 = vmatprep.subr.bf16.mxu0 0
        %424 = vmatpush2.bf16.msra.mxu0 0
        %425 = vmatprep.subr.bf16.mxu0 0
        %426 = vmatpush2.bf16.msra.mxu0 0
        %427 = vmatprep.subr.bf16.mxu0 0
        %428 = vmatpush2.bf16.msra.mxu0 0
        %429 = vmatprep.mubr.bf16.mxu0 0
        %430 = vmatmul.mubr.bf16.gmra.mxu0 %v354
        %v431 = vpop.f32.mrf.mxu0
        %v432 = vadd.f32 %v263, %v431
        %v433 = vpop.f32.mrf.mxu0
        %v434 = vadd.f32 %v267, %v433
        %v435 = vpop.f32.mrf.mxu0
        %v436 = vpop.f32.mrf.mxu0
        %437 = vdwg.mxu0
        %v438 = vpack.c.bf16 %v391, %v391
        %v439 = vpack.c.bf16 %v393, %v393
        %v440 = vpack.c.bf16 %v432, %v432
        %v441 = vpack.c.bf16 %v434, %v434
        %v446 = vunpack.c.l.b16 %v438
        %v447 = vunpack.c.l.b16 %v439
        %v448 = vunpack.c.l.b16 %v440
        %v449 = vunpack.c.l.b16 %v441
        %v450 = vpack.c.b16 %v447, %v446
        %v451 = vpack.c.b16 %v449, %v448
        %454 = vst [vmem:[%s230] sm:$0xff] %v450
        %455 = vst [vmem:[%s230 + $0x8] sm:$0xff] %v451
        %s456 = smul.u32 4, %s20
        %p457 = scmp.lt.s32.totalorder %s456, 15
        %s458 = scalar_select %p457, %s456, 15
        %s459 = smul.addr %s458, 4
        %s460 = scalar_lea.vmem %s3, %s459
        // Predicated region
        $region41: #{init_single_band_subspacenet_forward.4} parent=31 // pred_check
          %p461 = pneg %p111
        $region42: #{init_single_band_subspacenet_forward.4} parent=31 // pred_check_branch
          %463 = sbr.rel (%p461) target = $region44
        $region43: #{init_single_band_subspacenet_forward.4} parent=31 // pred_region
          %s464 = smul.u32 4, %s20
        $region44: #{init_single_band_subspacenet_forward.4} parent=31 // pred_fallthru
          _
      $region32: #{init_single_band_subspacenet_forward.4} parent=5 // pred_fallthru
        _
      %p465 = scmp.le.s32.totalorder 2, %s15
      // Predicated region
      $region45: #{init_single_band_subspacenet_forward.4} parent=5 // pred_check
        %p466 = pneg %p465
      $region46: #{init_single_band_subspacenet_forward.4} parent=5 // pred_check_branch
        %468 = sbr.rel (%p466) target = $region48
      $region47: #{init_single_band_subspacenet_forward.4} parent=5 // pred_region
        %s469 = ssub.s32 %s15, 2
        // Predicated region
        $region49: #{init_single_band_subspacenet_forward.4} parent=47 // pred_check
          %p470 = pneg %p117
        $region50: #{init_single_band_subspacenet_forward.4} parent=47 // pred_check_branch
          %472 = sbr.rel (%p470) target = $region52
        $region51: #{init_single_band_subspacenet_forward.4} parent=47 // pred_region
          %s473 = smul.u32 4, %s21
          %p474 = scmp.lt.s32.totalorder %s473, 15
          %s475 = scalar_select %p474, %s473, 15
          %s476 = smul.addr %s475, 4
          %s477 = scalar_lea.vmem %s3, %s476
        $region52: #{init_single_band_subspacenet_forward.4} parent=47 // pred_fallthru
          _
      $region48: #{init_single_band_subspacenet_forward.4} parent=5 // pred_fallthru
        _
    $region6: #{init_single_band_subspacenet_forward.4} parent=1 // loop_footer
      %s19 = sadd.s32 1, %s15
    $region7: #{init_single_band_subspacenet_forward.4} parent=1 // loop_footer_branch
      %14 = sbr.rel target = $region3
    $region8: #{init_single_band_subspacenet_forward.4} parent=1 // loop_exit
      _
    %478 = vsyncpa [#allocation3], 1
    %s479 = scalar_lea.sflag [#allocation3], 1
    %480 = vsyncpa %s479, 1
    %481 = vsyncpa [#allocation5], 1
    %s482 = scalar_lea.sflag [#allocation5], 1
    %483 = vsyncpa %s482, 1

// kernel: init_single_band_subspacenet_forward.5
$region0: #{init_single_band_subspacenet_forward.5}
  #allocation0 [shape = 'u32[]', space=smem, size = 0x4, offset = 0x4, fixed_abs, tag = 'smem constant byte address 0x4 - core index']
  #allocation1 [shape = 'u32[144,128]{1,0:T(1,128)}', space=vmem, size = 0x12000, scoped, tag = 'internal scratch']
  %s0 = inlined_call_operand.vmem [shape: bf16[8,64], index: 0, kind: input, shape index: {}]
  %s1 = inlined_call_operand.hbm [shape: bf16[64,4096], index: 1, kind: input, shape index: {}]
  %s2 = inlined_call_operand.hbm [shape: f32[1,4096], index: 2, kind: input, shape index: {}]
  %s3 = inlined_call_operand.vmem [shape: bf16[8,4096], index: 3, kind: output, shape index: {}]
  %s4 = sld [smem:[#allocation0]]
  $region53: #{init_single_band_subspacenet_forward.5} parent=0
    _
  %s6 = ssub.s32 1, %s4
  %s7 = scalar_select 0, %s6, %s4
  $region1: #{init_single_band_subspacenet_forward.5} parent=0
    #allocation2 [shape = 'u8[131072]{0}', space=vmem, size = 0x20000, scoped, tag = 'input window, operand 1']
    #allocation3 [shape = 's32[2]{0}', space=sflag, size = 0x8, scoped, tag = 'scoped memory for init_single_band_subspacenet_forward.5']
    #allocation4 [shape = 'u8[4096]{0}', space=vmem, size = 0x1000, scoped, tag = 'input window, operand 2']
    #allocation5 [shape = 's32[2]{0}', space=sflag, size = 0x8, scoped, tag = 'scoped memory for init_single_band_subspacenet_forward.5']
    %8 = vsyncpa [#allocation3], 0
    %s9 = scalar_lea.sflag [#allocation3], 1
    %10 = vsyncpa %s9, 0
    %11 = vsyncpa [#allocation5], 0
    %s12 = scalar_lea.sflag [#allocation5], 1
    %13 = vsyncpa %s12, 0
    loop: start=0, step=1, limit=10
    $region2: #{init_single_band_subspacenet_forward.5} parent=1 // loop_pre_header
      _
    $region3: #{init_single_band_subspacenet_forward.5} parent=1 // loop_header
      %s15 = sphi 0, %s19
      %p16 = scmp.ge.s32.totalorder %s15, 10
      %s23 = sphi 0, %s23
      %s25 = sphi 0, %s23
      %s26 = sphi 0, %s25
      %s40 = sphi 0, %s26
      %s46 = sphi 0, %s48
      %s49 = sphi 0, %s46
      %s50 = sphi 0, %s49
      %s66 = sphi 0, %s50
      %s72 = sphi 0, %s74
      %s75 = sphi 0, %s72
      %s76 = sphi 0, %s75
      %s92 = sphi 0, %s76
      %s98 = sphi 0, %s100
      %s101 = sphi 0, %s98
      %s102 = sphi 0, %s101
      %s118 = sphi 0, %s102
    $region4: #{init_single_band_subspacenet_forward.5} parent=1 // loop_header_branch
      %18 = sbr.rel (%p16) target = $region8
    $region5: #{init_single_band_subspacenet_forward.5} parent=1 // loop_body
      %s20 = ssub.s32 %s15, 1
      %s21 = ssub.s32 %s15, 2
      %s22 = sadd.s32 %s15, 1
      %s24 = sadd.s32 %s23, 1
      %p27 = scmp.eq.s32.totalorder %s15, 7
      %p28 = scmp.ne.s32.totalorder %s23, %s25
      %p29 = scmp.eq.s32.totalorder %s15, 0
      %p30 = por %p28, %p29
      %p31 = scmp.ne.s32.totalorder %s23, %s25
      %p32 = scmp.eq.s32.totalorder %s20, 7
      %p33 = por %p31, %p32
      %p34 = scmp.ne.s32.totalorder %s25, %s26
      %p35 = scmp.eq.s32.totalorder %s20, 0
      %p36 = por %p34, %p35
      %p37 = scmp.ne.s32.totalorder %s25, %s26
      %p38 = scmp.eq.s32.totalorder %s21, 7
      %p39 = por %p37, %p38
      %p41 = scmp.ne.s32.totalorder %s26, %s40
      %p42 = scmp.eq.s32.totalorder %s21, 0
      %p43 = por %p41, %p42
      %s44 = ssub.s32 %s15, %s22
      %p45 = scmp.eq.s32.totalorder %s44, 0
      %s47 = sadd.s32 %s46, 1
      %s48 = scalar_select %p45, %s46, %s47
      %p51 = pneg %p45
      %p52 = scmp.eq.s32.totalorder %s15, 7
      %p53 = por %p51, %p52
      %p54 = scmp.ne.s32.totalorder %s46, %s49
      %p55 = scmp.eq.s32.totalorder %s15, 0
      %p56 = por %p54, %p55
      %p57 = scmp.ne.s32.totalorder %s46, %s49
      %p58 = scmp.eq.s32.totalorder %s20, 7
      %p59 = por %p57, %p58
      %p60 = scmp.ne.s32.totalorder %s49, %s50
      %p61 = scmp.eq.s32.totalorder %s20, 0
      %p62 = por %p60, %p61
      %p63 = scmp.ne.s32.totalorder %s49, %s50
      %p64 = scmp.eq.s32.totalorder %s21, 7
      %p65 = por %p63, %p64
      %p67 = scmp.ne.s32.totalorder %s50, %s66
      %p68 = scmp.eq.s32.totalorder %s21, 0
      %p69 = por %p67, %p68
      %s70 = ssub.s32 %s15, %s22
      %p71 = scmp.eq.s32.totalorder %s70, 0
      %s73 = sadd.s32 %s72, 1
      %s74 = scalar_select %p71, %s72, %s73
      %p77 = pneg %p71
      %p78 = scmp.eq.s32.totalorder %s15, 7
      %p79 = por %p77, %p78
      %p80 = scmp.ne.s32.totalorder %s72, %s75
      %p81 = scmp.eq.s32.totalorder %s15, 0
      %p82 = por %p80, %p81
      %p83 = scmp.ne.s32.totalorder %s72, %s75
      %p84 = scmp.eq.s32.totalorder %s20, 7
      %p85 = por %p83, %p84
      %p86 = scmp.ne.s32.totalorder %s75, %s76
      %p87 = scmp.eq.s32.totalorder %s20, 0
      %p88 = por %p86, %p87
      %p89 = scmp.ne.s32.totalorder %s75, %s76
      %p90 = scmp.eq.s32.totalorder %s21, 7
      %p91 = por %p89, %p90
      %p93 = scmp.ne.s32.totalorder %s76, %s92
      %p94 = scmp.eq.s32.totalorder %s21, 0
      %p95 = por %p93, %p94
      %s96 = ssub.s32 %s15, %s22
      %p97 = scmp.eq.s32.totalorder %s96, 0
      %s99 = sadd.s32 %s98, 1
      %s100 = scalar_select %p97, %s98, %s99
      %p103 = pneg %p97
      %p104 = scmp.eq.s32.totalorder %s15, 7
      %p105 = por %p103, %p104
      %p106 = scmp.ne.s32.totalorder %s98, %s101
      %p107 = scmp.eq.s32.totalorder %s15, 0
      %p108 = por %p106, %p107
      %p109 = scmp.ne.s32.totalorder %s98, %s101
      %p110 = scmp.eq.s32.totalorder %s20, 7
      %p111 = por %p109, %p110
      %p112 = scmp.ne.s32.totalorder %s101, %s102
      %p113 = scmp.eq.s32.totalorder %s20, 0
      %p114 = por %p112, %p113
      %p115 = scmp.ne.s32.totalorder %s101, %s102
      %p116 = scmp.eq.s32.totalorder %s21, 7
      %p117 = por %p115, %p116
      %p119 = scmp.ne.s32.totalorder %s102, %s118
      %p120 = scmp.eq.s32.totalorder %s21, 0
      %p121 = por %p119, %p120
      %p122 = scmp.le.s32.totalorder 1, %s15
      %p123 = scmp.lt.s32.totalorder %s15, 9
      %p124 = pnand %p122, %p123
      %p125 = pneg %p124
      // Predicated region
      $region9: #{init_single_band_subspacenet_forward.5} parent=5 // pred_check
        _
      $region10: #{init_single_band_subspacenet_forward.5} parent=5 // pred_check_branch
        %127 = sbr.rel (%p124) target = $region12
      $region11: #{init_single_band_subspacenet_forward.5} parent=5 // pred_region
        %s128 = ssub.s32 %s15, 1
        // Predicated region
        $region13: #{init_single_band_subspacenet_forward.5} parent=11 // pred_check
          %p129 = pneg %p36
        $region14: #{init_single_band_subspacenet_forward.5} parent=11 // pred_check_branch
          %131 = sbr.rel (%p129) target = $region16
        $region15: #{init_single_band_subspacenet_forward.5} parent=11 // pred_region
          _
        $region16: #{init_single_band_subspacenet_forward.5} parent=11 // pred_fallthru
          _
      $region12: #{init_single_band_subspacenet_forward.5} parent=5 // pred_fallthru
        _
      %p132 = scmp.lt.s32.totalorder %s15, 8
      // Predicated region
      $region17: #{init_single_band_subspacenet_forward.5} parent=5 // pred_check
        %p133 = pneg %p132
      $region18: #{init_single_band_subspacenet_forward.5} parent=5 // pred_check_branch
        %135 = sbr.rel (%p133) target = $region20
      $region19: #{init_single_band_subspacenet_forward.5} parent=5 // pred_region
        // Predicated region
        $region21: #{init_single_band_subspacenet_forward.5} parent=19 // pred_check
          %p136 = pneg %p56
        $region22: #{init_single_band_subspacenet_forward.5} parent=19 // pred_check_branch
          %138 = sbr.rel (%p136) target = $region24
        $region23: #{init_single_band_subspacenet_forward.5} parent=19 // pred_region
          %s139 = sand.u32 %s46, 1
          %s140 = scalar_lea.sflag [#allocation3], %s139
          %s141 = sand.u32 %s46, 1
          %s142 = smul.addr %s141, 128
          %s143 = scalar_lea.vmem [#allocation2], %s142
          %s144 = smul.u32 4, %s15
          %s146 = ssub.s32 2048, 2048
          %147 = vsyncadd %s140, %s146
          %s148 = smul.addr %s144, 64
          %s149 = scalar_lea.hbm %s1, %s148
          %s150 = sshll.u32 %s143, 4
          %s151 = int_to_ptr.vmem [resolvable:$true] %s150
          %156 = dma.hbm_to_vmem [thread:$0]  %s149, 2048, %s151, %s140, 2048, 256, 16
        $region24: #{init_single_band_subspacenet_forward.5} parent=19 // pred_fallthru
          _
        // Predicated region
        $region25: #{init_single_band_subspacenet_forward.5} parent=19 // pred_check
          %p157 = pneg %p82
        $region26: #{init_single_band_subspacenet_forward.5} parent=19 // pred_check_branch
          %159 = sbr.rel (%p157) target = $region28
        $region27: #{init_single_band_subspacenet_forward.5} parent=19 // pred_region
          %s160 = sand.u32 %s72, 1
          %s161 = scalar_lea.sflag [#allocation5], %s160
          %s162 = sand.u32 %s72, 1
          %s163 = smul.addr %s162, 4
          %s164 = scalar_lea.vmem [#allocation4], %s163
          %s165 = smul.u32 4, %s15
          %s167 = ssub.s32 64, 64
          %168 = vsyncadd %s161, %s167
          %s169 = smul.addr %s165, 16
          %s170 = scalar_lea.hbm %s2, %s169
          %s172 = sshll.u32 %s164, 4
          %s173 = int_to_ptr.vmem [resolvable:$true] %s172
          %175 = dma.hbm_to_vmem [thread:$0]  %s170, 64, %s173, %s161
        $region28: #{init_single_band_subspacenet_forward.5} parent=19 // pred_fallthru
          _
      $region20: #{init_single_band_subspacenet_forward.5} parent=5 // pred_fallthru
        _
      %p176 = scmp.le.s32.totalorder 1, %s15
      %p177 = scmp.lt.s32.totalorder %s15, 9
      %p178 = pnand %p176, %p177
      %p179 = pneg %p178
      // Predicated region
      $region29: #{init_single_band_subspacenet_forward.5} parent=5 // pred_check
        _
      $region30: #{init_single_band_subspacenet_forward.5} parent=5 // pred_check_branch
        %181 = sbr.rel (%p178) target = $region32
      $region31: #{init_single_band_subspacenet_forward.5} parent=5 // pred_region
        %s182 = ssub.s32 %s15, 1
        %s183 = sand.u32 %s49, 1
        %s184 = scalar_lea.sflag [#allocation3], %s183
        %s185 = sand.u32 %s49, 1
        %s186 = smul.addr %s185, 128
        %s187 = scalar_lea.vmem [#allocation2], %s186
        // Predicated region
        $region33: #{init_single_band_subspacenet_forward.5} parent=31 // pred_check
          %p188 = pneg %p62
        $region34: #{init_single_band_subspacenet_forward.5} parent=31 // pred_check_branch
          %190 = sbr.rel (%p188) target = $region36
        $region35: #{init_single_band_subspacenet_forward.5} parent=31 // pred_region
          %191 = dma.done %s184, 2048
        $region36: #{init_single_band_subspacenet_forward.5} parent=31 // pred_fallthru
          _
        %s192 = sand.u32 %s75, 1
        %s193 = scalar_lea.sflag [#allocation5], %s192
        %s194 = sand.u32 %s75, 1
        %s195 = smul.addr %s194, 4
        %s196 = scalar_lea.vmem [#allocation4], %s195
        // Predicated region
        $region37: #{init_single_band_subspacenet_forward.5} parent=31 // pred_check
          %p197 = pneg %p88
        $region38: #{init_single_band_subspacenet_forward.5} parent=31 // pred_check_branch
          %199 = sbr.rel (%p197) target = $region40
        $region39: #{init_single_band_subspacenet_forward.5} parent=31 // pred_region
          %200 = dma.done %s193, 64
        $region40: #{init_single_band_subspacenet_forward.5} parent=31 // pred_fallthru
          _
        %p201 = pneg %p36
        %p202 = pneg %p33
        %s203 = sand.u32 %s49, 1
        %s204 = scalar_lea.sflag [#allocation3], %s203
        %s205 = sand.u32 %s49, 1
        %s206 = smul.addr %s205, 128
        %s207 = scalar_lea.vmem [#allocation2], %s206
        %p208 = pneg %p62
        %p209 = pneg %p59
        %s210 = sand.u32 %s75, 1
        %s211 = scalar_lea.sflag [#allocation5], %s210
        %s212 = sand.u32 %s75, 1
        %s213 = smul.addr %s212, 4
        %s214 = scalar_lea.vmem [#allocation4], %s213
        %p215 = pneg %p88
        %p216 = pneg %p85
        %p217 = pneg %p114
        %p218 = pneg %p111
        %s219 = smul.u32 4, %s20
        %p220 = scmp.lt.s32.totalorder %s219, 31
        %s221 = scalar_select %p220, %s219, 31
        %s222 = smul.addr %s221, 4
        %s223 = scalar_lea.vmem %s3, %s222
        %s224 = smul.u32 4, %s20
        %s225 = smul.u32 4, %s20
        %s226 = smul.u32 4, %s20
        %p227 = scmp.lt.s32.totalorder %s226, 31
        %s228 = scalar_select %p227, %s226, 31
        %s229 = smul.addr %s228, 4
        %s230 = scalar_lea.vmem %s3, %s229
        %s231 = smul.u32 4, %s20
        %v233 = vld [vmem:[%s0] sm:$0xf]
        %v234 = vld [vmem:[%s187] sm:$0xff]
        %v235 = vld [vmem:[%s187 + $0x8] sm:$0xff]
        %v236 = vld [vmem:[%s187 + $0x10] sm:$0xff]
        %v237 = vld [vmem:[%s187 + $0x18] sm:$0xff]
        %v238 = vld [vmem:[%s187 + $0x20] sm:$0xff]
        %v239 = vld [vmem:[%s187 + $0x28] sm:$0xff]
        %v240 = vld [vmem:[%s187 + $0x30] sm:$0xff]
        %v241 = vld [vmem:[%s187 + $0x38] sm:$0xff]
        %v242 = vld [vmem:[%s187 + $0x40] sm:$0xff]
        %v243 = vld [vmem:[%s187 + $0x48] sm:$0xff]
        %v244 = vld [vmem:[%s187 + $0x50] sm:$0xff]
        %v245 = vld [vmem:[%s187 + $0x58] sm:$0xff]
        %v246 = vld [vmem:[%s187 + $0x60] sm:$0xff]
        %v247 = vld [vmem:[%s187 + $0x68] sm:$0xff]
        %v248 = vld [vmem:[%s187 + $0x70] sm:$0xff]
        %v249 = vld [vmem:[%s187 + $0x78] sm:$0xff]
        %v250 = vld [vmem:[%s196] sm:$0xf]
        %v252 = vlaneseq
        %v253 = vshrl.u32 %v252, 7
        %v254 = vsub.s32 0, %v253
        %v255 = vrot.slane %v250, %v254
        %v256 = vlaneseq
        %v257 = vshrl.u32 %v256, 7
        %v258 = vsub.s32 1, %v257
        %v259 = vrot.slane %v250, %v258
        %v260 = vlaneseq
        %v261 = vshrl.u32 %v260, 7
        %v262 = vsub.s32 2, %v261
        %v263 = vrot.slane %v250, %v262
        %v264 = vlaneseq
        %v265 = vshrl.u32 %v264, 7
        %v266 = vsub.s32 3, %v265
        %v267 = vrot.slane %v250, %v266
        %v288 = vunpack.c.l.b16 %v234
        %v289 = vunpack.c.h.b16 %v234
        %v290 = vunpack.c.l.b16 %v235
        %v291 = vunpack.c.h.b16 %v235
        %v292 = vunpack.c.l.b16 %v236
        %v293 = vunpack.c.h.b16 %v236
        %v294 = vunpack.c.l.b16 %v237
        %v295 = vunpack.c.h.b16 %v237
        %v296 = vunpack.c.l.b16 %v238
        %v297 = vunpack.c.h.b16 %v238
        %v298 = vunpack.c.l.b16 %v239
        %v299 = vunpack.c.h.b16 %v239
        %v300 = vunpack.c.l.b16 %v240
        %v301 = vunpack.c.h.b16 %v240
        %v302 = vunpack.c.l.b16 %v241
        %v303 = vunpack.c.h.b16 %v241
        %v304 = vunpack.c.l.b16 %v242
        %v305 = vunpack.c.h.b16 %v242
        %v306 = vunpack.c.l.b16 %v243
        %v307 = vunpack.c.h.b16 %v243
        %v308 = vunpack.c.l.b16 %v244
        %v309 = vunpack.c.h.b16 %v244
        %v310 = vunpack.c.l.b16 %v245
        %v311 = vunpack.c.h.b16 %v245
        %v312 = vunpack.c.l.b16 %v246
        %v313 = vunpack.c.h.b16 %v246
        %v314 = vunpack.c.l.b16 %v247
        %v315 = vunpack.c.h.b16 %v247
        %v316 = vunpack.c.l.b16 %v248
        %v317 = vunpack.c.h.b16 %v248
        %v318 = vunpack.c.l.b16 %v249
        %v319 = vunpack.c.h.b16 %v249
        %v320 = vpack.c.b16 %v292, %v288
        %v321 = vpack.c.b16 %v293, %v289
        %v322 = vpack.c.b16 %v294, %v290
        %v323 = vpack.c.b16 %v295, %v291
        %v324 = vpack.c.b16 %v300, %v296
        %v325 = vpack.c.b16 %v301, %v297
        %v326 = vpack.c.b16 %v302, %v298
        %v327 = vpack.c.b16 %v303, %v299
        %v328 = vpack.c.b16 %v308, %v304
        %v329 = vpack.c.b16 %v309, %v305
        %v330 = vpack.c.b16 %v310, %v306
        %v331 = vpack.c.b16 %v311, %v307
        %v332 = vpack.c.b16 %v316, %v312
        %v333 = vpack.c.b16 %v317, %v313
        %v334 = vpack.c.b16 %v318, %v314
        %v335 = vpack.c.b16 %v319, %v315
        %vm352 = vcmask 523264
        %v354 = vsel %vm352, %v233, 0
        %356 = vmatprep.subr.bf16.mxu0 0
        %357 = vmatpush1.bf16.msra.mxu0 0
        %358 = vmatprep.subr.bf16.mxu0 0
        %359 = vmatpush1.bf16.msra.mxu0 0
        %360 = vmatprep.subr.bf16.mxu0 0
        %361 = vmatpush1.bf16.msra.mxu0 0
        %362 = vmatprep.subr.bf16.mxu0 0
        %363 = vmatpush1.bf16.msra.mxu0 0
        %364 = vmatprep.subr.bf16.mxu0 %v333
        %365 = vmatpush1.bf16.msra.mxu0 %v332
        %366 = vmatprep.subr.bf16.mxu0 %v329
        %367 = vmatpush1.bf16.msra.mxu0 %v328
        %368 = vmatprep.subr.bf16.mxu0 %v325
        %369 = vmatpush1.bf16.msra.mxu0 %v324
        %370 = vmatprep.subr.bf16.mxu0 %v321
        %371 = vmatpush1.bf16.msra.mxu0 %v320
        %372 = vmatprep.subr.bf16.mxu0 0
        %373 = vmatpush2.bf16.msra.mxu0 0
        %374 = vmatprep.subr.bf16.mxu0 0
        %375 = vmatpush2.bf16.msra.mxu0 0
        %376 = vmatprep.subr.bf16.mxu0 0
        %377 = vmatpush2.bf16.msra.mxu0 0
        %378 = vmatprep.subr.bf16.mxu0 0
        %379 = vmatpush2.bf16.msra.mxu0 0
        %380 = vmatprep.subr.bf16.mxu0 0
        %381 = vmatpush2.bf16.msra.mxu0 0
        %382 = vmatprep.subr.bf16.mxu0 0
        %383 = vmatpush2.bf16.msra.mxu0 0
        %384 = vmatprep.subr.bf16.mxu0 0
        %385 = vmatpush2.bf16.msra.mxu0 0
        %386 = vmatprep.subr.bf16.mxu0 0
        %387 = vmatpush2.bf16.msra.mxu0 0
        %388 = vmatprep.mubr.bf16.mxu0 0
        %389 = vmatmul.mubr.bf16.gmra.mxu0 %v354
        %v390 = vpop.f32.mrf.mxu0
        %v391 = vadd.f32 %v255, %v390
        %v392 = vpop.f32.mrf.mxu0
        %v393 = vadd.f32 %v259, %v392
        %v394 = vpop.f32.mrf.mxu0
        %v395 = vpop.f32.mrf.mxu0
        %396 = vdwg.mxu0
        %397 = vmatprep.subr.bf16.mxu0 0
        %398 = vmatpush1.bf16.msra.mxu0 0
        %399 = vmatprep.subr.bf16.mxu0 0
        %400 = vmatpush1.bf16.msra.mxu0 0
        %401 = vmatprep.subr.bf16.mxu0 0
        %402 = vmatpush1.bf16.msra.mxu0 0
        %403 = vmatprep.subr.bf16.mxu0 0
        %404 = vmatpush1.bf16.msra.mxu0 0
        %405 = vmatprep.subr.bf16.mxu0 %v335
        %406 = vmatpush1.bf16.msra.mxu0 %v334
        %407 = vmatprep.subr.bf16.mxu0 %v331
        %408 = vmatpush1.bf16.msra.mxu0 %v330
        %409 = vmatprep.subr.bf16.mxu0 %v327
        %410 = vmatpush1.bf16.msra.mxu0 %v326
        %411 = vmatprep.subr.bf16.mxu0 %v323
        %412 = vmatpush1.bf16.msra.mxu0 %v322
        %413 = vmatprep.subr.bf16.mxu0 0
        %414 = vmatpush2.bf16.msra.mxu0 0
        %415 = vmatprep.subr.bf16.mxu0 0
        %416 = vmatpush2.bf16.msra.mxu0 0
        %417 = vmatprep.subr.bf16.mxu0 0
        %418 = vmatpush2.bf16.msra.mxu0 0
        %419 = vmatprep.subr.bf16.mxu0 0
        %420 = vmatpush2.bf16.msra.mxu0 0
        %421 = vmatprep.subr.bf16.mxu0 0
        %422 = vmatpush2.bf16.msra.mxu0 0
        %423 = vmatprep.subr.bf16.mxu0 0
        %424 = vmatpush2.bf16.msra.mxu0 0
        %425 = vmatprep.subr.bf16.mxu0 0
        %426 = vmatpush2.bf16.msra.mxu0 0
        %427 = vmatprep.subr.bf16.mxu0 0
        %428 = vmatpush2.bf16.msra.mxu0 0
        %429 = vmatprep.mubr.bf16.mxu0 0
        %430 = vmatmul.mubr.bf16.gmra.mxu0 %v354
        %v431 = vpop.f32.mrf.mxu0
        %v432 = vadd.f32 %v263, %v431
        %v433 = vpop.f32.mrf.mxu0
        %v434 = vadd.f32 %v267, %v433
        %v435 = vpop.f32.mrf.mxu0
        %v436 = vpop.f32.mrf.mxu0
        %437 = vdwg.mxu0
        %v438 = vpack.c.bf16 %v391, %v391
        %v439 = vpack.c.bf16 %v393, %v393
        %v440 = vpack.c.bf16 %v432, %v432
        %v441 = vpack.c.bf16 %v434, %v434
        %v446 = vunpack.c.l.b16 %v438
        %v447 = vunpack.c.l.b16 %v439
        %v448 = vunpack.c.l.b16 %v440
        %v449 = vunpack.c.l.b16 %v441
        %v450 = vpack.c.b16 %v447, %v446
        %v451 = vpack.c.b16 %v449, %v448
        %454 = vst [vmem:[%s230] sm:$0xff] %v450
        %455 = vst [vmem:[%s230 + $0x8] sm:$0xff] %v451
        %s456 = smul.u32 4, %s20
        %p457 = scmp.lt.s32.totalorder %s456, 31
        %s458 = scalar_select %p457, %s456, 31
        %s459 = smul.addr %s458, 4
        %s460 = scalar_lea.vmem %s3, %s459
        // Predicated region
        $region41: #{init_single_band_subspacenet_forward.5} parent=31 // pred_check
          %p461 = pneg %p111
        $region42: #{init_single_band_subspacenet_forward.5} parent=31 // pred_check_branch
          %463 = sbr.rel (%p461) target = $region44
        $region43: #{init_single_band_subspacenet_forward.5} parent=31 // pred_region
          %s464 = smul.u32 4, %s20
        $region44: #{init_single_band_subspacenet_forward.5} parent=31 // pred_fallthru
          _
      $region32: #{init_single_band_subspacenet_forward.5} parent=5 // pred_fallthru
        _
      %p465 = scmp.le.s32.totalorder 2, %s15
      // Predicated region
      $region45: #{init_single_band_subspacenet_forward.5} parent=5 // pred_check
        %p466 = pneg %p465
      $region46: #{init_single_band_subspacenet_forward.5} parent=5 // pred_check_branch
        %468 = sbr.rel (%p466) target = $region48
      $region47: #{init_single_band_subspacenet_forward.5} parent=5 // pred_region
        %s469 = ssub.s32 %s15, 2
        // Predicated region
        $region49: #{init_single_band_subspacenet_forward.5} parent=47 // pred_check
          %p470 = pneg %p117
        $region50: #{init_single_band_subspacenet_forward.5} parent=47 // pred_check_branch
          %472 = sbr.rel (%p470) target = $region52
        $region51: #{init_single_band_subspacenet_forward.5} parent=47 // pred_region
          %s473 = smul.u32 4, %s21
          %p474 = scmp.lt.s32.totalorder %s473, 31
          %s475 = scalar_select %p474, %s473, 31
          %s476 = smul.addr %s475, 4
          %s477 = scalar_lea.vmem %s3, %s476
        $region52: #{init_single_band_subspacenet_forward.5} parent=47 // pred_fallthru
          _
      $region48: #{init_single_band_subspacenet_forward.5} parent=5 // pred_fallthru
        _
    $region6: #{init_single_band_subspacenet_forward.5} parent=1 // loop_footer
      %s19 = sadd.s32 1, %s15
    $region7: #{init_single_band_subspacenet_forward.5} parent=1 // loop_footer_branch
      %14 = sbr.rel target = $region3
    $region8: #{init_single_band_subspacenet_forward.5} parent=1 // loop_exit
      _
    %478 = vsyncpa [#allocation3], 1
    %s479 = scalar_lea.sflag [#allocation3], 1
    %480 = vsyncpa %s479, 1
    %481 = vsyncpa [#allocation5], 1
    %s482 = scalar_lea.sflag [#allocation5], 1
    %483 = vsyncpa %s482, 1

// kernel: init_single_band_subspacenet_forward.7
$region0: #{init_single_band_subspacenet_forward.7}
  #allocation0 [shape = 'u32[]', space=smem, size = 0x4, offset = 0x4, fixed_abs, tag = 'smem constant byte address 0x4 - core index']
  #allocation1 [shape = 'u32[144,128]{1,0:T(1,128)}', space=vmem, size = 0x12000, scoped, tag = 'internal scratch']
  %s0 = inlined_call_operand.vmem [shape: f32[2,16,16], index: 0, kind: input, shape index: {}]
  %s1 = inlined_call_operand.vmem [shape: f32[2,16,16], index: 1, kind: input, shape index: {}]
  %s2 = inlined_call_operand.vmem [shape: f32[2,16,16], index: 2, kind: input, shape index: {}]
  %s3 = inlined_call_operand.vmem [shape: f32[2,16,16], index: 3, kind: input, shape index: {}]
  %s4 = inlined_call_operand.vmem [shape: f32[2,16,16], index: 4, kind: output, shape index: {0}]
  %s5 = inlined_call_operand.vmem [shape: f32[2,16,16], index: 5, kind: output, shape index: {1}]
  %6 = xla_tuple %s4, %s5
  %s7 = sld [smem:[#allocation0]]
  $region57: #{init_single_band_subspacenet_forward.7} parent=0
    _
  %s9 = ssub.s32 1, %s7
  %s10 = scalar_select 0, %s9, %s7
  loop: start=0, step=1, limit=4
  $region2: #{init_single_band_subspacenet_forward.7} parent=0 // loop_pre_header
    _
  $region3: #{init_single_band_subspacenet_forward.7} parent=0 // loop_header
    %s12 = sphi 0, %s16
    %p13 = scmp.ge.s32.totalorder %s12, 4
    %s22 = sphi 0, %s24
    %s25 = sphi 0, %s22
    %s26 = sphi 0, %s25
    %s42 = sphi 0, %s26
    %s48 = sphi 0, %s50
    %s51 = sphi 0, %s48
    %s52 = sphi 0, %s51
    %s68 = sphi 0, %s52
    %s74 = sphi 0, %s76
    %s77 = sphi 0, %s74
    %s78 = sphi 0, %s77
    %s94 = sphi 0, %s78
    %s100 = sphi 0, %s102
    %s103 = sphi 0, %s100
    %s104 = sphi 0, %s103
    %s120 = sphi 0, %s104
    %s126 = sphi 0, %s128
    %s129 = sphi 0, %s126
    %s130 = sphi 0, %s129
    %s146 = sphi 0, %s130
    %s152 = sphi 0, %s154
    %s155 = sphi 0, %s152
    %s156 = sphi 0, %s155
    %s172 = sphi 0, %s156
  $region4: #{init_single_band_subspacenet_forward.7} parent=0 // loop_header_branch
    %15 = sbr.rel (%p13) target = $region8
  $region5: #{init_single_band_subspacenet_forward.7} parent=0 // loop_body
    %s17 = ssub.s32 %s12, 1
    %s18 = ssub.s32 %s12, 2
    %s19 = sadd.s32 %s12, 1
    %s20 = ssub.s32 %s12, %s19
    %p21 = scmp.eq.s32.totalorder %s20, 0
    %s23 = sadd.s32 %s22, 1
    %s24 = scalar_select %p21, %s22, %s23
    %p27 = pneg %p21
    %p28 = scmp.eq.s32.totalorder %s12, 1
    %p29 = por %p27, %p28
    %p30 = scmp.ne.s32.totalorder %s22, %s25
    %p31 = scmp.eq.s32.totalorder %s12, 0
    %p32 = por %p30, %p31
    %p33 = scmp.ne.s32.totalorder %s22, %s25
    %p34 = scmp.eq.s32.totalorder %s17, 1
    %p35 = por %p33, %p34
    %p36 = scmp.ne.s32.totalorder %s25, %s26
    %p37 = scmp.eq.s32.totalorder %s17, 0
    %p38 = por %p36, %p37
    %p39 = scmp.ne.s32.totalorder %s25, %s26
    %p40 = scmp.eq.s32.totalorder %s18, 1
    %p41 = por %p39, %p40
    %p43 = scmp.ne.s32.totalorder %s26, %s42
    %p44 = scmp.eq.s32.totalorder %s18, 0
    %p45 = por %p43, %p44
    %s46 = ssub.s32 %s12, %s19
    %p47 = scmp.eq.s32.totalorder %s46, 0
    %s49 = sadd.s32 %s48, 1
    %s50 = scalar_select %p47, %s48, %s49
    %p53 = pneg %p47
    %p54 = scmp.eq.s32.totalorder %s12, 1
    %p55 = por %p53, %p54
    %p56 = scmp.ne.s32.totalorder %s48, %s51
    %p57 = scmp.eq.s32.totalorder %s12, 0
    %p58 = por %p56, %p57
    %p59 = scmp.ne.s32.totalorder %s48, %s51
    %p60 = scmp.eq.s32.totalorder %s17, 1
    %p61 = por %p59, %p60
    %p62 = scmp.ne.s32.totalorder %s51, %s52
    %p63 = scmp.eq.s32.totalorder %s17, 0
    %p64 = por %p62, %p63
    %p65 = scmp.ne.s32.totalorder %s51, %s52
    %p66 = scmp.eq.s32.totalorder %s18, 1
    %p67 = por %p65, %p66
    %p69 = scmp.ne.s32.totalorder %s52, %s68
    %p70 = scmp.eq.s32.totalorder %s18, 0
    %p71 = por %p69, %p70
    %s72 = ssub.s32 %s12, %s19
    %p73 = scmp.eq.s32.totalorder %s72, 0
    %s75 = sadd.s32 %s74, 1
    %s76 = scalar_select %p73, %s74, %s75
    %p79 = pneg %p73
    %p80 = scmp.eq.s32.totalorder %s12, 1
    %p81 = por %p79, %p80
    %p82 = scmp.ne.s32.totalorder %s74, %s77
    %p83 = scmp.eq.s32.totalorder %s12, 0
    %p84 = por %p82, %p83
    %p85 = scmp.ne.s32.totalorder %s74, %s77
    %p86 = scmp.eq.s32.totalorder %s17, 1
    %p87 = por %p85, %p86
    %p88 = scmp.ne.s32.totalorder %s77, %s78
    %p89 = scmp.eq.s32.totalorder %s17, 0
    %p90 = por %p88, %p89
    %p91 = scmp.ne.s32.totalorder %s77, %s78
    %p92 = scmp.eq.s32.totalorder %s18, 1
    %p93 = por %p91, %p92
    %p95 = scmp.ne.s32.totalorder %s78, %s94
    %p96 = scmp.eq.s32.totalorder %s18, 0
    %p97 = por %p95, %p96
    %s98 = ssub.s32 %s12, %s19
    %p99 = scmp.eq.s32.totalorder %s98, 0
    %s101 = sadd.s32 %s100, 1
    %s102 = scalar_select %p99, %s100, %s101
    %p105 = pneg %p99
    %p106 = scmp.eq.s32.totalorder %s12, 1
    %p107 = por %p105, %p106
    %p108 = scmp.ne.s32.totalorder %s100, %s103
    %p109 = scmp.eq.s32.totalorder %s12, 0
    %p110 = por %p108, %p109
    %p111 = scmp.ne.s32.totalorder %s100, %s103
    %p112 = scmp.eq.s32.totalorder %s17, 1
    %p113 = por %p111, %p112
    %p114 = scmp.ne.s32.totalorder %s103, %s104
    %p115 = scmp.eq.s32.totalorder %s17, 0
    %p116 = por %p114, %p115
    %p117 = scmp.ne.s32.totalorder %s103, %s104
    %p118 = scmp.eq.s32.totalorder %s18, 1
    %p119 = por %p117, %p118
    %p121 = scmp.ne.s32.totalorder %s104, %s120
    %p122 = scmp.eq.s32.totalorder %s18, 0
    %p123 = por %p121, %p122
    %s124 = ssub.s32 %s12, %s19
    %p125 = scmp.eq.s32.totalorder %s124, 0
    %s127 = sadd.s32 %s126, 1
    %s128 = scalar_select %p125, %s126, %s127
    %p131 = pneg %p125
    %p132 = scmp.eq.s32.totalorder %s12, 1
    %p133 = por %p131, %p132
    %p134 = scmp.ne.s32.totalorder %s126, %s129
    %p135 = scmp.eq.s32.totalorder %s12, 0
    %p136 = por %p134, %p135
    %p137 = scmp.ne.s32.totalorder %s126, %s129
    %p138 = scmp.eq.s32.totalorder %s17, 1
    %p139 = por %p137, %p138
    %p140 = scmp.ne.s32.totalorder %s129, %s130
    %p141 = scmp.eq.s32.totalorder %s17, 0
    %p142 = por %p140, %p141
    %p143 = scmp.ne.s32.totalorder %s129, %s130
    %p144 = scmp.eq.s32.totalorder %s18, 1
    %p145 = por %p143, %p144
    %p147 = scmp.ne.s32.totalorder %s130, %s146
    %p148 = scmp.eq.s32.totalorder %s18, 0
    %p149 = por %p147, %p148
    %s150 = ssub.s32 %s12, %s19
    %p151 = scmp.eq.s32.totalorder %s150, 0
    %s153 = sadd.s32 %s152, 1
    %s154 = scalar_select %p151, %s152, %s153
    %p157 = pneg %p151
    %p158 = scmp.eq.s32.totalorder %s12, 1
    %p159 = por %p157, %p158
    %p160 = scmp.ne.s32.totalorder %s152, %s155
    %p161 = scmp.eq.s32.totalorder %s12, 0
    %p162 = por %p160, %p161
    %p163 = scmp.ne.s32.totalorder %s152, %s155
    %p164 = scmp.eq.s32.totalorder %s17, 1
    %p165 = por %p163, %p164
    %p166 = scmp.ne.s32.totalorder %s155, %s156
    %p167 = scmp.eq.s32.totalorder %s17, 0
    %p168 = por %p166, %p167
    %p169 = scmp.ne.s32.totalorder %s155, %s156
    %p170 = scmp.eq.s32.totalorder %s18, 1
    %p171 = por %p169, %p170
    %p173 = scmp.ne.s32.totalorder %s156, %s172
    %p174 = scmp.eq.s32.totalorder %s18, 0
    %p175 = por %p173, %p174
    %p176 = scmp.le.s32.totalorder 1, %s12
    %p177 = scmp.lt.s32.totalorder %s12, 3
    %p178 = pnand %p176, %p177
    %p179 = pneg %p178
    // Predicated region
    $region9: #{init_single_band_subspacenet_forward.7} parent=5 // pred_check
      _
    $region10: #{init_single_band_subspacenet_forward.7} parent=5 // pred_check_branch
      %181 = sbr.rel (%p178) target = $region12
    $region11: #{init_single_band_subspacenet_forward.7} parent=5 // pred_region
      %s182 = ssub.s32 %s12, 1
    $region12: #{init_single_band_subspacenet_forward.7} parent=5 // pred_fallthru
      _
    %p183 = scmp.lt.s32.totalorder %s12, 2
    // Predicated region
    $region13: #{init_single_band_subspacenet_forward.7} parent=5 // pred_check
      %p184 = pneg %p183
    $region14: #{init_single_band_subspacenet_forward.7} parent=5 // pred_check_branch
      %186 = sbr.rel (%p184) target = $region16
    $region15: #{init_single_band_subspacenet_forward.7} parent=5 // pred_region
      // Predicated region
      $region17: #{init_single_band_subspacenet_forward.7} parent=15 // pred_check
        %p187 = pneg %p32
      $region18: #{init_single_band_subspacenet_forward.7} parent=15 // pred_check_branch
        %189 = sbr.rel (%p187) target = $region20
      $region19: #{init_single_band_subspacenet_forward.7} parent=15 // pred_region
        %p190 = scmp.lt.s32.totalorder %s12, 1
        %s191 = scalar_select %p190, %s12, 1
        %s192 = smul.addr %s191, 2
        %s193 = smul.addr %s192, 8
        %s194 = scalar_lea.vmem %s0, %s193
      $region20: #{init_single_band_subspacenet_forward.7} parent=15 // pred_fallthru
        _
      // Predicated region
      $region21: #{init_single_band_subspacenet_forward.7} parent=15 // pred_check
        %p195 = pneg %p58
      $region22: #{init_single_band_subspacenet_forward.7} parent=15 // pred_check_branch
        %197 = sbr.rel (%p195) target = $region24
      $region23: #{init_single_band_subspacenet_forward.7} parent=15 // pred_region
        %p198 = scmp.lt.s32.totalorder %s12, 1
        %s199 = scalar_select %p198, %s12, 1
        %s200 = smul.addr %s199, 2
        %s201 = smul.addr %s200, 8
        %s202 = scalar_lea.vmem %s1, %s201
      $region24: #{init_single_band_subspacenet_forward.7} parent=15 // pred_fallthru
        _
      // Predicated region
      $region25: #{init_single_band_subspacenet_forward.7} parent=15 // pred_check
        %p203 = pneg %p84
      $region26: #{init_single_band_subspacenet_forward.7} parent=15 // pred_check_branch
        %205 = sbr.rel (%p203) target = $region28
      $region27: #{init_single_band_subspacenet_forward.7} parent=15 // pred_region
        %p206 = scmp.lt.s32.totalorder %s12, 1
        %s207 = scalar_select %p206, %s12, 1
        %s208 = smul.addr %s207, 2
        %s209 = smul.addr %s208, 8
        %s210 = scalar_lea.vmem %s2, %s209
      $region28: #{init_single_band_subspacenet_forward.7} parent=15 // pred_fallthru
        _
      // Predicated region
      $region29: #{init_single_band_subspacenet_forward.7} parent=15 // pred_check
        %p211 = pneg %p110
      $region30: #{init_single_band_subspacenet_forward.7} parent=15 // pred_check_branch
        %213 = sbr.rel (%p211) target = $region32
      $region31: #{init_single_band_subspacenet_forward.7} parent=15 // pred_region
        %p214 = scmp.lt.s32.totalorder %s12, 1
        %s215 = scalar_select %p214, %s12, 1
        %s216 = smul.addr %s215, 2
        %s217 = smul.addr %s216, 8
        %s218 = scalar_lea.vmem %s3, %s217
      $region32: #{init_single_band_subspacenet_forward.7} parent=15 // pred_fallthru
        _
    $region16: #{init_single_band_subspacenet_forward.7} parent=5 // pred_fallthru
      _
    %p219 = scmp.le.s32.totalorder 1, %s12
    %p220 = scmp.lt.s32.totalorder %s12, 3
    %p221 = pnand %p219, %p220
    %p222 = pneg %p221
    // Predicated region
    $region33: #{init_single_band_subspacenet_forward.7} parent=5 // pred_check
      _
    $region34: #{init_single_band_subspacenet_forward.7} parent=5 // pred_check_branch
      %224 = sbr.rel (%p221) target = $region36
    $region35: #{init_single_band_subspacenet_forward.7} parent=5 // pred_region
      %s225 = ssub.s32 %s12, 1
      %p226 = scmp.lt.s32.totalorder %s17, 1
      %s227 = scalar_select %p226, %s17, 1
      %s228 = smul.addr %s227, 2
      %s229 = smul.addr %s228, 8
      %s230 = scalar_lea.vmem %s0, %s229
      %p231 = pneg %p38
      %p232 = pneg %p35
      %p233 = scmp.lt.s32.totalorder %s17, 1
      %s234 = scalar_select %p233, %s17, 1
      %s235 = smul.addr %s234, 2
      %s236 = smul.addr %s235, 8
      %s237 = scalar_lea.vmem %s1, %s236
      %p238 = pneg %p64
      %p239 = pneg %p61
      %p240 = scmp.lt.s32.totalorder %s17, 1
      %s241 = scalar_select %p240, %s17, 1
      %s242 = smul.addr %s241, 2
      %s243 = smul.addr %s242, 8
      %s244 = scalar_lea.vmem %s2, %s243
      %p245 = pneg %p90
      %p246 = pneg %p87
      %p247 = scmp.lt.s32.totalorder %s17, 1
      %s248 = scalar_select %p247, %s17, 1
      %s249 = smul.addr %s248, 2
      %s250 = smul.addr %s249, 8
      %s251 = scalar_lea.vmem %s3, %s250
      %p252 = pneg %p116
      %p253 = pneg %p113
      %p254 = pneg %p142
      %p255 = pneg %p139
      %p256 = scmp.lt.s32.totalorder %s17, 1
      %s257 = scalar_select %p256, %s17, 1
      %s258 = smul.addr %s257, 2
      %s259 = smul.addr %s258, 8
      %s260 = scalar_lea.vmem %s4, %s259
      %p261 = pneg %p168
      %p262 = pneg %p165
      %p263 = scmp.lt.s32.totalorder %s17, 1
      %s264 = scalar_select %p263, %s17, 1
      %s265 = smul.addr %s264, 2
      %s266 = smul.addr %s265, 8
      %s267 = scalar_lea.vmem %s5, %s266
      %p268 = scmp.lt.s32.totalorder %s17, 1
      %s269 = scalar_select %p268, %s17, 1
      %s270 = smul.addr %s269, 2
      %s271 = smul.addr %s270, 8
      %s272 = scalar_lea.vmem %s0, %s271
      %p273 = scmp.lt.s32.totalorder %s17, 1
      %s274 = scalar_select %p273, %s17, 1
      %s275 = smul.addr %s274, 2
      %s276 = smul.addr %s275, 8
      %s277 = scalar_lea.vmem %s1, %s276
      %p278 = scmp.lt.s32.totalorder %s17, 1
      %s279 = scalar_select %p278, %s17, 1
      %s280 = smul.addr %s279, 2
      %s281 = smul.addr %s280, 8
      %s282 = scalar_lea.vmem %s2, %s281
      %p283 = scmp.lt.s32.totalorder %s17, 1
      %s284 = scalar_select %p283, %s17, 1
      %s285 = smul.addr %s284, 2
      %s286 = smul.addr %s285, 8
      %s287 = scalar_lea.vmem %s3, %s286
      %p288 = scmp.lt.s32.totalorder %s17, 1
      %s289 = scalar_select %p288, %s17, 1
      %s290 = smul.addr %s289, 2
      %s291 = smul.addr %s290, 8
      %s292 = scalar_lea.vmem %s4, %s291
      %p293 = scmp.lt.s32.totalorder %s17, 1
      %s294 = scalar_select %p293, %s17, 1
      %s295 = smul.addr %s294, 2
      %s296 = smul.addr %s295, 8
      %s297 = scalar_lea.vmem %s5, %s296
      %v298 = vld [vmem:[%s272] sm:$0xff]
      %v299 = vld [vmem:[%s272 + $0x8] sm:$0xff]
      %v300 = vld [vmem:[%s277] sm:$0xff]
      %v301 = vld [vmem:[%s277 + $0x8] sm:$0xff]
      %v302 = vadd.f32 %v298, %v300
      %v303 = vadd.f32 %v299, %v301
      %v304 = vmul.f32 %v302, 0.5
      %v305 = vmul.f32 %v303, 0.5
      %v306 = vld [vmem:[%s282] sm:$0xff]
      %v307 = vld [vmem:[%s282 + $0x8] sm:$0xff]
      %v308 = vld [vmem:[%s287] sm:$0xff]
      %v309 = vld [vmem:[%s287 + $0x8] sm:$0xff]
      %v310 = vsub.f32 %v306, %v308
      %v311 = vsub.f32 %v307, %v309
      %v312 = vmul.f32 %v310, 0.5
      %v313 = vmul.f32 %v311, 0.5
      %v314 = vmul.f32 %v304, %v304
      %v315 = vmul.f32 %v305, %v305
      %v316 = vmul.f32 %v312, %v312
      %v317 = vmul.f32 %v313, %v313
      %v318 = vadd.f32 %v314, %v316
      %v319 = vadd.f32 %v315, %v317
      %vm320 = vcmask 130048
      %v321 = vsel %vm320, %v318, 0.0
      %v322 = vsel %vm320, %v319, 0.0
      %v323 = vadd.f32 %v321, %v322
      %324 = vadd.xlane.f32.xlu0 %v323
      %v325 = vpop.xlane.xlu0 %324
      %v326 = vrot.slane %v325, 4
      %v327 = vadd.f32 %v325, %v326
      %v328 = vrot.slane %v327, 2
      %v329 = vadd.f32 %v327, %v328
      %v330 = vrot.slane %v329, 1
      %v331 = vadd.f32 %v329, %v330
      %v332 = vrsqrt.pop %v331
      %v333 = vmul.f32 %v331, %v332
      %vm334 = vcmp.eq.f32.partialorder %v331, inf
      %v335 = vsel %vm334, %v331, %v333
      %vm336 = vcmp.eq.f32.partialorder %v331, 0.0
      %v337 = vand.u32 %v331, 2147483648
      %v338 = vsel %vm336, %v337, %v335
      %v339 = vmax.f32 %v338, 1e-12
      %v340 = vrcp.pop %v339
      %v341 = vmul.f32 1.0, %v340
      %v342 = vlaneseq
      %v343 = vshrl.u32 %v342, 7
      %v344 = vadd.s32 %v343, 8
      %v345 = vlaneseq
      %v346 = vand.u32 %v345, 127
      %vm347 = vcmp.eq.s32.totalorder %v343, %v346
      %vm348 = vcmp.eq.s32.totalorder %v344, %v346
      %v349 = vsel %vm347, 1, 0
      %v350 = vsel %vm348, 1, 0
      %v351 = vcvt.s32.f32 %v349
      %v352 = vcvt.s32.f32 %v350
      %v353 = vmul.f32 %v304, %v341
      %v354 = vmul.f32 %v305, %v341
      %v355 = vadd.f32 %v353, %v351
      %v356 = vadd.f32 %v354, %v352
      %357 = vst.msk [vmem:[%s292] sm:$0xff] %vm320, %v355
      %358 = vst.msk [vmem:[%s292 + $0x8] sm:$0xff] %vm320, %v356
      %v359 = vmul.f32 %v312, %v341
      %v360 = vmul.f32 %v313, %v341
      %361 = vst.msk [vmem:[%s297] sm:$0xff] %vm320, %v359
      %362 = vst.msk [vmem:[%s297 + $0x8] sm:$0xff] %vm320, %v360
      %p363 = scmp.lt.s32.totalorder %s17, 1
      %s364 = scalar_select %p363, %s17, 1
      %s365 = smul.addr %s364, 2
      %s366 = smul.addr %s365, 8
      %s367 = scalar_lea.vmem %s4, %s366
      %p368 = scmp.lt.s32.totalorder %s17, 1
      %s369 = scalar_select %p368, %s17, 1
      %s370 = smul.addr %s369, 2
      %s371 = smul.addr %s370, 8
      %s372 = scalar_lea.vmem %s5, %s371
      // Predicated region
      $region37: #{init_single_band_subspacenet_forward.7} parent=35 // pred_check
        %p373 = pneg %p139
      $region38: #{init_single_band_subspacenet_forward.7} parent=35 // pred_check_branch
        %375 = sbr.rel (%p373) target = $region40
      $region39: #{init_single_band_subspacenet_forward.7} parent=35 // pred_region
        _
      $region40: #{init_single_band_subspacenet_forward.7} parent=35 // pred_fallthru
        _
      // Predicated region
      $region41: #{init_single_band_subspacenet_forward.7} parent=35 // pred_check
        %p376 = pneg %p165
      $region42: #{init_single_band_subspacenet_forward.7} parent=35 // pred_check_branch
        %378 = sbr.rel (%p376) target = $region44
      $region43: #{init_single_band_subspacenet_forward.7} parent=35 // pred_region
        _
      $region44: #{init_single_band_subspacenet_forward.7} parent=35 // pred_fallthru
        _
    $region36: #{init_single_band_subspacenet_forward.7} parent=5 // pred_fallthru
      _
    %p379 = scmp.le.s32.totalorder 2, %s12
    // Predicated region
    $region45: #{init_single_band_subspacenet_forward.7} parent=5 // pred_check
      %p380 = pneg %p379
    $region46: #{init_single_band_subspacenet_forward.7} parent=5 // pred_check_branch
      %382 = sbr.rel (%p380) target = $region48
    $region47: #{init_single_band_subspacenet_forward.7} parent=5 // pred_region
      %s383 = ssub.s32 %s12, 2
      // Predicated region
      $region49: #{init_single_band_subspacenet_forward.7} parent=47 // pred_check
        %p384 = pneg %p145
      $region50: #{init_single_band_subspacenet_forward.7} parent=47 // pred_check_branch
        %386 = sbr.rel (%p384) target = $region52
      $region51: #{init_single_band_subspacenet_forward.7} parent=47 // pred_region
        %p387 = scmp.lt.s32.totalorder %s18, 1
        %s388 = scalar_select %p387, %s18, 1
        %s389 = smul.addr %s388, 2
        %s390 = smul.addr %s389, 8
        %s391 = scalar_lea.vmem %s4, %s390
      $region52: #{init_single_band_subspacenet_forward.7} parent=47 // pred_fallthru
        _
      // Predicated region
      $region53: #{init_single_band_subspacenet_forward.7} parent=47 // pred_check
        %p392 = pneg %p171
      $region54: #{init_single_band_subspacenet_forward.7} parent=47 // pred_check_branch
        %394 = sbr.rel (%p392) target = $region56
      $region55: #{init_single_band_subspacenet_forward.7} parent=47 // pred_region
        %p395 = scmp.lt.s32.totalorder %s18, 1
        %s396 = scalar_select %p395, %s18, 1
        %s397 = smul.addr %s396, 2
        %s398 = smul.addr %s397, 8
        %s399 = scalar_lea.vmem %s5, %s398
      $region56: #{init_single_band_subspacenet_forward.7} parent=47 // pred_fallthru
        _
    $region48: #{init_single_band_subspacenet_forward.7} parent=5 // pred_fallthru
      _
  $region6: #{init_single_band_subspacenet_forward.7} parent=0 // loop_footer
    %s16 = sadd.s32 1, %s12
  $region7: #{init_single_band_subspacenet_forward.7} parent=0 // loop_footer_branch
    %11 = sbr.rel target = $region3
  $region8: #{init_single_band_subspacenet_forward.7} parent=0 // loop_exit
    _

// kernel: custom-call
$region0: #{custom-call}
  %s0 = inlined_call_operand.vmem [shape: f32[2,16,16], index: 0, kind: input, shape index: {}]
  %s1 = inlined_call_operand.vmem [shape: f32[2,16,16], index: 1, kind: input, shape index: {}]
  %s2 = inlined_call_operand.hbm [shape: c64[2,16,16], index: 2, kind: output, shape index: {}]
  %s3 = scalar_lea.hbm %s2, 512
  $region1: #{custom-call} parent=0
    #allocation0 [shape = 's32[1]{0}', space=sflag, size = 0x4, scoped, tag = 'scoped memory for custom-call']
    %4 = vsyncpa [#allocation0], 0
    %s5 = sshll.u32 %s0, 4
    %s6 = int_to_ptr.vmem [resolvable:$true] %s5
    %8 = dma.vmem_to_hbm [thread:$0]  %s6, 512, %s2, [#allocation0]
    %9 = dma.done [#allocation0], 512
    %10 = vsyncpa [#allocation0], 1
  $region2: #{custom-call} parent=0
    #allocation1 [shape = 's32[1]{0}', space=sflag, size = 0x4, scoped, tag = 'scoped memory for custom-call']
    %11 = vsyncpa [#allocation1], 0
    %s12 = sshll.u32 %s1, 4
    %s13 = int_to_ptr.vmem [resolvable:$true] %s12
    %15 = dma.vmem_to_hbm [thread:$0]  %s13, 512, %s3, [#allocation1]
    %16 = dma.done [#allocation1], 512
    %17 = vsyncpa [#allocation1], 1

// kernel: init_single_band_subspacenet_forward.6
$region0: #{init_single_band_subspacenet_forward.6}
  #allocation0 [shape = 'u32[]', space=smem, size = 0x4, offset = 0x4, fixed_abs, tag = 'smem constant byte address 0x4 - core index']
  #allocation1 [shape = 'u32[144,128]{1,0:T(1,128)}', space=vmem, size = 0x12000, scoped, tag = 'internal scratch']
  %s0 = inlined_call_operand.vmem [shape: bf16[8,512], index: 0, kind: input, shape index: {}]
  %s1 = inlined_call_operand.vmem [shape: bf16[8,1024], index: 1, kind: input, shape index: {}]
  %s2 = inlined_call_operand.vmem [shape: bf16[512,512], index: 2, kind: input, shape index: {}]
  %s3 = inlined_call_operand.vmem [shape: f32[1,512], index: 3, kind: input, shape index: {}]
  %s4 = inlined_call_operand.vmem [shape: bf16[256,256], index: 4, kind: input, shape index: {}]
  %s5 = inlined_call_operand.vmem [shape: f32[1,256], index: 5, kind: input, shape index: {}]
  %s6 = inlined_call_operand.vmem [shape: bf16[1024,128], index: 6, kind: input, shape index: {}]
  %s7 = inlined_call_operand.vmem [shape: f32[1,128], index: 7, kind: input, shape index: {}]
  %s8 = inlined_call_operand.vmem [shape: f32[8,128], index: 8, kind: output, shape index: {}]
  %s9 = sld [smem:[#allocation0]]
  $region42: #{init_single_band_subspacenet_forward.6} parent=0
    _
  %s11 = ssub.s32 1, %s9
  %s12 = scalar_select 0, %s11, %s9
  // Predicated region
  $region2: #{init_single_band_subspacenet_forward.6} parent=0 // pred_check
    _
  $region3: #{init_single_band_subspacenet_forward.6} parent=0 // pred_check_branch
    %14 = sbr.rel (0) target = $region5
  $region4: #{init_single_band_subspacenet_forward.6} parent=0 // pred_region
    _
  $region5: #{init_single_band_subspacenet_forward.6} parent=0 // pred_fallthru
    _
  // Predicated region
  $region6: #{init_single_band_subspacenet_forward.6} parent=0 // pred_check
    _
  $region7: #{init_single_band_subspacenet_forward.6} parent=0 // pred_check_branch
    %16 = sbr.rel (0) target = $region9
  $region8: #{init_single_band_subspacenet_forward.6} parent=0 // pred_region
    _
  $region9: #{init_single_band_subspacenet_forward.6} parent=0 // pred_fallthru
    _
  // Predicated region
  $region10: #{init_single_band_subspacenet_forward.6} parent=0 // pred_check
    _
  $region11: #{init_single_band_subspacenet_forward.6} parent=0 // pred_check_branch
    %18 = sbr.rel (0) target = $region13
  $region12: #{init_single_band_subspacenet_forward.6} parent=0 // pred_region
    _
  $region13: #{init_single_band_subspacenet_forward.6} parent=0 // pred_fallthru
    _
  // Predicated region
  $region14: #{init_single_band_subspacenet_forward.6} parent=0 // pred_check
    _
  $region15: #{init_single_band_subspacenet_forward.6} parent=0 // pred_check_branch
    %20 = sbr.rel (0) target = $region17
  $region16: #{init_single_band_subspacenet_forward.6} parent=0 // pred_region
    _
  $region17: #{init_single_band_subspacenet_forward.6} parent=0 // pred_fallthru
    _
  // Predicated region
  $region18: #{init_single_band_subspacenet_forward.6} parent=0 // pred_check
    _
  $region19: #{init_single_band_subspacenet_forward.6} parent=0 // pred_check_branch
    %22 = sbr.rel (0) target = $region21
  $region20: #{init_single_band_subspacenet_forward.6} parent=0 // pred_region
    _
  $region21: #{init_single_band_subspacenet_forward.6} parent=0 // pred_fallthru
    _
  // Predicated region
  $region22: #{init_single_band_subspacenet_forward.6} parent=0 // pred_check
    _
  $region23: #{init_single_band_subspacenet_forward.6} parent=0 // pred_check_branch
    %24 = sbr.rel (0) target = $region25
  $region24: #{init_single_band_subspacenet_forward.6} parent=0 // pred_region
    _
  $region25: #{init_single_band_subspacenet_forward.6} parent=0 // pred_fallthru
    _
  // Predicated region
  $region26: #{init_single_band_subspacenet_forward.6} parent=0 // pred_check
    _
  $region27: #{init_single_band_subspacenet_forward.6} parent=0 // pred_check_branch
    %26 = sbr.rel (0) target = $region29
  $region28: #{init_single_band_subspacenet_forward.6} parent=0 // pred_region
    _
  $region29: #{init_single_band_subspacenet_forward.6} parent=0 // pred_fallthru
    _
  // Predicated region
  $region30: #{init_single_band_subspacenet_forward.6} parent=0 // pred_check
    _
  $region31: #{init_single_band_subspacenet_forward.6} parent=0 // pred_check_branch
    %28 = sbr.rel (0) target = $region33
  $region32: #{init_single_band_subspacenet_forward.6} parent=0 // pred_region
    _
  $region33: #{init_single_band_subspacenet_forward.6} parent=0 // pred_fallthru
    _
  %v30 = vld [vmem:[%s0] sm:$0xff]
  %v31 = vld [vmem:[%s0 + $0x8] sm:$0xff]
  %v32 = vld [vmem:[%s2] sm:$0xff]
  %v33 = vld [vmem:[%s2 + $0x8] sm:$0xff]
  %v34 = vld [vmem:[%s2 + $0x10] sm:$0xff]
  %v35 = vld [vmem:[%s2 + $0x18] sm:$0xff]
  %v36 = vld [vmem:[%s2 + $0x20] sm:$0xff]
  %v37 = vld [vmem:[%s2 + $0x28] sm:$0xff]
  %v38 = vld [vmem:[%s2 + $0x30] sm:$0xff]
  %v39 = vld [vmem:[%s2 + $0x38] sm:$0xff]
  %v40 = vld [vmem:[%s2 + $0x40] sm:$0xff]
  %v41 = vld [vmem:[%s2 + $0x48] sm:$0xff]
  %v42 = vld [vmem:[%s2 + $0x50] sm:$0xff]
  %v43 = vld [vmem:[%s2 + $0x58] sm:$0xff]
  %v44 = vld [vmem:[%s2 + $0x60] sm:$0xff]
  %v45 = vld [vmem:[%s2 + $0x68] sm:$0xff]
  %v46 = vld [vmem:[%s2 + $0x70] sm:$0xff]
  %v47 = vld [vmem:[%s2 + $0x78] sm:$0xff]
  %v48 = vld [vmem:[%s2 + $0x80] sm:$0xff]
  %v49 = vld [vmem:[%s2 + $0x88] sm:$0xff]
  %v50 = vld [vmem:[%s2 + $0x90] sm:$0xff]
  %v51 = vld [vmem:[%s2 + $0x98] sm:$0xff]
  %v52 = vld [vmem:[%s2 + $0xa0] sm:$0xff]
  %v53 = vld [vmem:[%s2 + $0xa8] sm:$0xff]
  %v54 = vld [vmem:[%s2 + $0xb0] sm:$0xff]
  %v55 = vld [vmem:[%s2 + $0xb8] sm:$0xff]
  %v56 = vld [vmem:[%s2 + $0xc0] sm:$0xff]
  %v57 = vld [vmem:[%s2 + $0xc8] sm:$0xff]
  %v58 = vld [vmem:[%s2 + $0xd0] sm:$0xff]
  %v59 = vld [vmem:[%s2 + $0xd8] sm:$0xff]
  %v60 = vld [vmem:[%s2 + $0xe0] sm:$0xff]
  %v61 = vld [vmem:[%s2 + $0xe8] sm:$0xff]
  %v62 = vld [vmem:[%s2 + $0xf0] sm:$0xff]
  %v63 = vld [vmem:[%s2 + $0xf8] sm:$0xff]
  %v64 = vld [vmem:[%s2 + $0x100] sm:$0xff]
  %v65 = vld [vmem:[%s2 + $0x108] sm:$0xff]
  %v66 = vld [vmem:[%s2 + $0x110] sm:$0xff]
  %v67 = vld [vmem:[%s2 + $0x118] sm:$0xff]
  %v68 = vld [vmem:[%s2 + $0x120] sm:$0xff]
  %v69 = vld [vmem:[%s2 + $0x128] sm:$0xff]
  %v70 = vld [vmem:[%s2 + $0x130] sm:$0xff]
  %v71 = vld [vmem:[%s2 + $0x138] sm:$0xff]
  %v72 = vld [vmem:[%s2 + $0x140] sm:$0xff]
  %v73 = vld [vmem:[%s2 + $0x148] sm:$0xff]
  %v74 = vld [vmem:[%s2 + $0x150] sm:$0xff]
  %v75 = vld [vmem:[%s2 + $0x158] sm:$0xff]
  %v76 = vld [vmem:[%s2 + $0x160] sm:$0xff]
  %v77 = vld [vmem:[%s2 + $0x168] sm:$0xff]
  %v78 = vld [vmem:[%s2 + $0x170] sm:$0xff]
  %v79 = vld [vmem:[%s2 + $0x178] sm:$0xff]
  %v80 = vld [vmem:[%s2 + $0x180] sm:$0xff]
  %v81 = vld [vmem:[%s2 + $0x188] sm:$0xff]
  %v82 = vld [vmem:[%s2 + $0x190] sm:$0xff]
  %v83 = vld [vmem:[%s2 + $0x198] sm:$0xff]
  %v84 = vld [vmem:[%s2 + $0x1a0] sm:$0xff]
  %v85 = vld [vmem:[%s2 + $0x1a8] sm:$0xff]
  %v86 = vld [vmem:[%s2 + $0x1b0] sm:$0xff]
  %v87 = vld [vmem:[%s2 + $0x1b8] sm:$0xff]
  %v88 = vld [vmem:[%s2 + $0x1c0] sm:$0xff]
  %v89 = vld [vmem:[%s2 + $0x1c8] sm:$0xff]
  %v90 = vld [vmem:[%s2 + $0x1d0] sm:$0xff]
  %v91 = vld [vmem:[%s2 + $0x1d8] sm:$0xff]
  %v92 = vld [vmem:[%s2 + $0x1e0] sm:$0xff]
  %v93 = vld [vmem:[%s2 + $0x1e8] sm:$0xff]
  %v94 = vld [vmem:[%s2 + $0x1f0] sm:$0xff]
  %v95 = vld [vmem:[%s2 + $0x1f8] sm:$0xff]
  %v96 = vld [vmem:[%s2 + $0x200] sm:$0xff]
  %v97 = vld [vmem:[%s2 + $0x208] sm:$0xff]
  %v98 = vld [vmem:[%s2 + $0x210] sm:$0xff]
  %v99 = vld [vmem:[%s2 + $0x218] sm:$0xff]
  %v100 = vld [vmem:[%s2 + $0x220] sm:$0xff]
  %v101 = vld [vmem:[%s2 + $0x228] sm:$0xff]
  %v102 = vld [vmem:[%s2 + $0x230] sm:$0xff]
  %v103 = vld [vmem:[%s2 + $0x238] sm:$0xff]
  %v104 = vld [vmem:[%s2 + $0x240] sm:$0xff]
  %v105 = vld [vmem:[%s2 + $0x248] sm:$0xff]
  %v106 = vld [vmem:[%s2 + $0x250] sm:$0xff]
  %v107 = vld [vmem:[%s2 + $0x258] sm:$0xff]
  %v108 = vld [vmem:[%s2 + $0x260] sm:$0xff]
  %v109 = vld [vmem:[%s2 + $0x268] sm:$0xff]
  %v110 = vld [vmem:[%s2 + $0x270] sm:$0xff]
  %v111 = vld [vmem:[%s2 + $0x278] sm:$0xff]
  %v112 = vld [vmem:[%s2 + $0x280] sm:$0xff]
  %v113 = vld [vmem:[%s2 + $0x288] sm:$0xff]
  %v114 = vld [vmem:[%s2 + $0x290] sm:$0xff]
  %v115 = vld [vmem:[%s2 + $0x298] sm:$0xff]
  %v116 = vld [vmem:[%s2 + $0x2a0] sm:$0xff]
  %v117 = vld [vmem:[%s2 + $0x2a8] sm:$0xff]
  %v118 = vld [vmem:[%s2 + $0x2b0] sm:$0xff]
  %v119 = vld [vmem:[%s2 + $0x2b8] sm:$0xff]
  %v120 = vld [vmem:[%s2 + $0x2c0] sm:$0xff]
  %v121 = vld [vmem:[%s2 + $0x2c8] sm:$0xff]
  %v122 = vld [vmem:[%s2 + $0x2d0] sm:$0xff]
  %v123 = vld [vmem:[%s2 + $0x2d8] sm:$0xff]
  %v124 = vld [vmem:[%s2 + $0x2e0] sm:$0xff]
  %v125 = vld [vmem:[%s2 + $0x2e8] sm:$0xff]
  %v126 = vld [vmem:[%s2 + $0x2f0] sm:$0xff]
  %v127 = vld [vmem:[%s2 + $0x2f8] sm:$0xff]
  %v128 = vld [vmem:[%s2 + $0x300] sm:$0xff]
  %v129 = vld [vmem:[%s2 + $0x308] sm:$0xff]
  %v130 = vld [vmem:[%s2 + $0x310] sm:$0xff]
  %v131 = vld [vmem:[%s2 + $0x318] sm:$0xff]
  %v132 = vld [vmem:[%s2 + $0x320] sm:$0xff]
  %v133 = vld [vmem:[%s2 + $0x328] sm:$0xff]
  %v134 = vld [vmem:[%s2 + $0x330] sm:$0xff]
  %v135 = vld [vmem:[%s2 + $0x338] sm:$0xff]
  %v136 = vld [vmem:[%s2 + $0x340] sm:$0xff]
  %v137 = vld [vmem:[%s2 + $0x348] sm:$0xff]
  %v138 = vld [vmem:[%s2 + $0x350] sm:$0xff]
  %v139 = vld [vmem:[%s2 + $0x358] sm:$0xff]
  %v140 = vld [vmem:[%s2 + $0x360] sm:$0xff]
  %v141 = vld [vmem:[%s2 + $0x368] sm:$0xff]
  %v142 = vld [vmem:[%s2 + $0x370] sm:$0xff]
  %v143 = vld [vmem:[%s2 + $0x378] sm:$0xff]
  %v144 = vld [vmem:[%s2 + $0x380] sm:$0xff]
  %v145 = vld [vmem:[%s2 + $0x388] sm:$0xff]
  %v146 = vld [vmem:[%s2 + $0x390] sm:$0xff]
  %v147 = vld [vmem:[%s2 + $0x398] sm:$0xff]
  %v148 = vld [vmem:[%s2 + $0x3a0] sm:$0xff]
  %v149 = vld [vmem:[%s2 + $0x3a8] sm:$0xff]
  %v150 = vld [vmem:[%s2 + $0x3b0] sm:$0xff]
  %v151 = vld [vmem:[%s2 + $0x3b8] sm:$0xff]
  %v152 = vld [vmem:[%s2 + $0x3c0] sm:$0xff]
  %v153 = vld [vmem:[%s2 + $0x3c8] sm:$0xff]
  %v154 = vld [vmem:[%s2 + $0x3d0] sm:$0xff]
  %v155 = vld [vmem:[%s2 + $0x3d8] sm:$0xff]
  %v156 = vld [vmem:[%s2 + $0x3e0] sm:$0xff]
  %v157 = vld [vmem:[%s2 + $0x3e8] sm:$0xff]
  %v158 = vld [vmem:[%s2 + $0x3f0] sm:$0xff]
  %v159 = vld [vmem:[%s2 + $0x3f8] sm:$0xff]
  %v160 = vld [vmem:[%s3] sm:$0xf]
  %v162 = vlaneseq
  %v163 = vshrl.u32 %v162, 7
  %v164 = vsub.s32 0, %v163
  %v165 = vrot.slane %v160, %v164
  %v166 = vlaneseq
  %v167 = vshrl.u32 %v166, 7
  %v168 = vsub.s32 1, %v167
  %v169 = vrot.slane %v160, %v168
  %v170 = vlaneseq
  %v171 = vshrl.u32 %v170, 7
  %v172 = vsub.s32 2, %v171
  %v173 = vrot.slane %v160, %v172
  %v174 = vlaneseq
  %v175 = vshrl.u32 %v174, 7
  %v176 = vsub.s32 3, %v175
  %v177 = vrot.slane %v160, %v176
  %v184 = vunpack.c.l.b16 %v30
  %v185 = vunpack.c.h.b16 %v30
  %v186 = vunpack.c.l.b16 %v31
  %v187 = vunpack.c.h.b16 %v31
  %v188 = vpack.c.b16 %v184, %v184
  %v189 = vpack.c.b16 %v185, %v185
  %v190 = vpack.c.b16 %v186, %v186
  %v191 = vpack.c.b16 %v187, %v187
  %v324 = vunpack.c.l.b16 %v32
  %v325 = vunpack.c.h.b16 %v32
  %v326 = vunpack.c.l.b16 %v33
  %v327 = vunpack.c.h.b16 %v33
  %v328 = vunpack.c.l.b16 %v34
  %v329 = vunpack.c.h.b16 %v34
  %v330 = vunpack.c.l.b16 %v35
  %v331 = vunpack.c.h.b16 %v35
  %v332 = vunpack.c.l.b16 %v36
  %v333 = vunpack.c.h.b16 %v36
  %v334 = vunpack.c.l.b16 %v37
  %v335 = vunpack.c.h.b16 %v37
  %v336 = vunpack.c.l.b16 %v38
  %v337 = vunpack.c.h.b16 %v38
  %v338 = vunpack.c.l.b16 %v39
  %v339 = vunpack.c.h.b16 %v39
  %v340 = vunpack.c.l.b16 %v40
  %v341 = vunpack.c.h.b16 %v40
  %v342 = vunpack.c.l.b16 %v41
  %v343 = vunpack.c.h.b16 %v41
  %v344 = vunpack.c.l.b16 %v42
  %v345 = vunpack.c.h.b16 %v42
  %v346 = vunpack.c.l.b16 %v43
  %v347 = vunpack.c.h.b16 %v43
  %v348 = vunpack.c.l.b16 %v44
  %v349 = vunpack.c.h.b16 %v44
  %v350 = vunpack.c.l.b16 %v45
  %v351 = vunpack.c.h.b16 %v45
  %v352 = vunpack.c.l.b16 %v46
  %v353 = vunpack.c.h.b16 %v46
  %v354 = vunpack.c.l.b16 %v47
  %v355 = vunpack.c.h.b16 %v47
  %v356 = vunpack.c.l.b16 %v48
  %v357 = vunpack.c.h.b16 %v48
  %v358 = vunpack.c.l.b16 %v49
  %v359 = vunpack.c.h.b16 %v49
  %v360 = vunpack.c.l.b16 %v50
  %v361 = vunpack.c.h.b16 %v50
  %v362 = vunpack.c.l.b16 %v51
  %v363 = vunpack.c.h.b16 %v51
  %v364 = vunpack.c.l.b16 %v52
  %v365 = vunpack.c.h.b16 %v52
  %v366 = vunpack.c.l.b16 %v53
  %v367 = vunpack.c.h.b16 %v53
  %v368 = vunpack.c.l.b16 %v54
  %v369 = vunpack.c.h.b16 %v54
  %v370 = vunpack.c.l.b16 %v55
  %v371 = vunpack.c.h.b16 %v55
  %v372 = vunpack.c.l.b16 %v56
  %v373 = vunpack.c.h.b16 %v56
  %v374 = vunpack.c.l.b16 %v57
  %v375 = vunpack.c.h.b16 %v57
  %v376 = vunpack.c.l.b16 %v58
  %v377 = vunpack.c.h.b16 %v58
  %v378 = vunpack.c.l.b16 %v59
  %v379 = vunpack.c.h.b16 %v59
  %v380 = vunpack.c.l.b16 %v60
  %v381 = vunpack.c.h.b16 %v60
  %v382 = vunpack.c.l.b16 %v61
  %v383 = vunpack.c.h.b16 %v61
  %v384 = vunpack.c.l.b16 %v62
  %v385 = vunpack.c.h.b16 %v62
  %v386 = vunpack.c.l.b16 %v63
  %v387 = vunpack.c.h.b16 %v63
  %v388 = vunpack.c.l.b16 %v64
  %v389 = vunpack.c.h.b16 %v64
  %v390 = vunpack.c.l.b16 %v65
  %v391 = vunpack.c.h.b16 %v65
  %v392 = vunpack.c.l.b16 %v66
  %v393 = vunpack.c.h.b16 %v66
  %v394 = vunpack.c.l.b16 %v67
  %v395 = vunpack.c.h.b16 %v67
  %v396 = vunpack.c.l.b16 %v68
  %v397 = vunpack.c.h.b16 %v68
  %v398 = vunpack.c.l.b16 %v69
  %v399 = vunpack.c.h.b16 %v69
  %v400 = vunpack.c.l.b16 %v70
  %v401 = vunpack.c.h.b16 %v70
  %v402 = vunpack.c.l.b16 %v71
  %v403 = vunpack.c.h.b16 %v71
  %v404 = vunpack.c.l.b16 %v72
  %v405 = vunpack.c.h.b16 %v72
  %v406 = vunpack.c.l.b16 %v73
  %v407 = vunpack.c.h.b16 %v73
  %v408 = vunpack.c.l.b16 %v74
  %v409 = vunpack.c.h.b16 %v74
  %v410 = vunpack.c.l.b16 %v75
  %v411 = vunpack.c.h.b16 %v75
  %v412 = vunpack.c.l.b16 %v76
  %v413 = vunpack.c.h.b16 %v76
  %v414 = vunpack.c.l.b16 %v77
  %v415 = vunpack.c.h.b16 %v77
  %v416 = vunpack.c.l.b16 %v78
  %v417 = vunpack.c.h.b16 %v78
  %v418 = vunpack.c.l.b16 %v79
  %v419 = vunpack.c.h.b16 %v79
  %v420 = vunpack.c.l.b16 %v80
  %v421 = vunpack.c.h.b16 %v80
  %v422 = vunpack.c.l.b16 %v81
  %v423 = vunpack.c.h.b16 %v81
  %v424 = vunpack.c.l.b16 %v82
  %v425 = vunpack.c.h.b16 %v82
  %v426 = vunpack.c.l.b16 %v83
  %v427 = vunpack.c.h.b16 %v83
  %v428 = vunpack.c.l.b16 %v84
  %v429 = vunpack.c.h.b16 %v84
  %v430 = vunpack.c.l.b16 %v85
  %v431 = vunpack.c.h.b16 %v85
  %v432 = vunpack.c.l.b16 %v86
  %v433 = vunpack.c.h.b16 %v86
  %v434 = vunpack.c.l.b16 %v87
  %v435 = vunpack.c.h.b16 %v87
  %v436 = vunpack.c.l.b16 %v88
  %v437 = vunpack.c.h.b16 %v88
  %v438 = vunpack.c.l.b16 %v89
  %v439 = vunpack.c.h.b16 %v89
  %v440 = vunpack.c.l.b16 %v90
  %v441 = vunpack.c.h.b16 %v90
  %v442 = vunpack.c.l.b16 %v91
  %v443 = vunpack.c.h.b16 %v91
  %v444 = vunpack.c.l.b16 %v92
  %v445 = vunpack.c.h.b16 %v92
  %v446 = vunpack.c.l.b16 %v93
  %v447 = vunpack.c.h.b16 %v93
  %v448 = vunpack.c.l.b16 %v94
  %v449 = vunpack.c.h.b16 %v94
  %v450 = vunpack.c.l.b16 %v95
  %v451 = vunpack.c.h.b16 %v95
  %v452 = vunpack.c.l.b16 %v96
  %v453 = vunpack.c.h.b16 %v96
  %v454 = vunpack.c.l.b16 %v97
  %v455 = vunpack.c.h.b16 %v97
  %v456 = vunpack.c.l.b16 %v98
  %v457 = vunpack.c.h.b16 %v98
  %v458 = vunpack.c.l.b16 %v99
  %v459 = vunpack.c.h.b16 %v99
  %v460 = vunpack.c.l.b16 %v100
  %v461 = vunpack.c.h.b16 %v100
  %v462 = vunpack.c.l.b16 %v101
  %v463 = vunpack.c.h.b16 %v101
  %v464 = vunpack.c.l.b16 %v102
  %v465 = vunpack.c.h.b16 %v102
  %v466 = vunpack.c.l.b16 %v103
  %v467 = vunpack.c.h.b16 %v103
  %v468 = vunpack.c.l.b16 %v104
  %v469 = vunpack.c.h.b16 %v104
  %v470 = vunpack.c.l.b16 %v105
  %v471 = vunpack.c.h.b16 %v105
  %v472 = vunpack.c.l.b16 %v106
  %v473 = vunpack.c.h.b16 %v106
  %v474 = vunpack.c.l.b16 %v107
  %v475 = vunpack.c.h.b16 %v107
  %v476 = vunpack.c.l.b16 %v108
  %v477 = vunpack.c.h.b16 %v108
  %v478 = vunpack.c.l.b16 %v109
  %v479 = vunpack.c.h.b16 %v109
  %v480 = vunpack.c.l.b16 %v110
  %v481 = vunpack.c.h.b16 %v110
  %v482 = vunpack.c.l.b16 %v111
  %v483 = vunpack.c.h.b16 %v111
  %v484 = vunpack.c.l.b16 %v112
  %v485 = vunpack.c.h.b16 %v112
  %v486 = vunpack.c.l.b16 %v113
  %v487 = vunpack.c.h.b16 %v113
  %v488 = vunpack.c.l.b16 %v114
  %v489 = vunpack.c.h.b16 %v114
  %v490 = vunpack.c.l.b16 %v115
  %v491 = vunpack.c.h.b16 %v115
  %v492 = vunpack.c.l.b16 %v116
  %v493 = vunpack.c.h.b16 %v116
  %v494 = vunpack.c.l.b16 %v117
  %v495 = vunpack.c.h.b16 %v117
  %v496 = vunpack.c.l.b16 %v118
  %v497 = vunpack.c.h.b16 %v118
  %v498 = vunpack.c.l.b16 %v119
  %v499 = vunpack.c.h.b16 %v119
  %v500 = vunpack.c.l.b16 %v120
  %v501 = vunpack.c.h.b16 %v120
  %v502 = vunpack.c.l.b16 %v121
  %v503 = vunpack.c.h.b16 %v121
  %v504 = vunpack.c.l.b16 %v122
  %v505 = vunpack.c.h.b16 %v122
  %v506 = vunpack.c.l.b16 %v123
  %v507 = vunpack.c.h.b16 %v123
  %v508 = vunpack.c.l.b16 %v124
  %v509 = vunpack.c.h.b16 %v124
  %v510 = vunpack.c.l.b16 %v125
  %v511 = vunpack.c.h.b16 %v125
  %v512 = vunpack.c.l.b16 %v126
  %v513 = vunpack.c.h.b16 %v126
  %v514 = vunpack.c.l.b16 %v127
  %v515 = vunpack.c.h.b16 %v127
  %v516 = vunpack.c.l.b16 %v128
  %v517 = vunpack.c.h.b16 %v128
  %v518 = vunpack.c.l.b16 %v129
  %v519 = vunpack.c.h.b16 %v129
  %v520 = vunpack.c.l.b16 %v130
  %v521 = vunpack.c.h.b16 %v130
  %v522 = vunpack.c.l.b16 %v131
  %v523 = vunpack.c.h.b16 %v131
  %v524 = vunpack.c.l.b16 %v132
  %v525 = vunpack.c.h.b16 %v132
  %v526 = vunpack.c.l.b16 %v133
  %v527 = vunpack.c.h.b16 %v133
  %v528 = vunpack.c.l.b16 %v134
  %v529 = vunpack.c.h.b16 %v134
  %v530 = vunpack.c.l.b16 %v135
  %v531 = vunpack.c.h.b16 %v135
  %v532 = vunpack.c.l.b16 %v136
  %v533 = vunpack.c.h.b16 %v136
  %v534 = vunpack.c.l.b16 %v137
  %v535 = vunpack.c.h.b16 %v137
  %v536 = vunpack.c.l.b16 %v138
  %v537 = vunpack.c.h.b16 %v138
  %v538 = vunpack.c.l.b16 %v139
  %v539 = vunpack.c.h.b16 %v139
  %v540 = vunpack.c.l.b16 %v140
  %v541 = vunpack.c.h.b16 %v140
  %v542 = vunpack.c.l.b16 %v141
  %v543 = vunpack.c.h.b16 %v141
  %v544 = vunpack.c.l.b16 %v142
  %v545 = vunpack.c.h.b16 %v142
  %v546 = vunpack.c.l.b16 %v143
  %v547 = vunpack.c.h.b16 %v143
  %v548 = vunpack.c.l.b16 %v144
  %v549 = vunpack.c.h.b16 %v144
  %v550 = vunpack.c.l.b16 %v145
  %v551 = vunpack.c.h.b16 %v145
  %v552 = vunpack.c.l.b16 %v146
  %v553 = vunpack.c.h.b16 %v146
  %v554 = vunpack.c.l.b16 %v147
  %v555 = vunpack.c.h.b16 %v147
  %v556 = vunpack.c.l.b16 %v148
  %v557 = vunpack.c.h.b16 %v148
  %v558 = vunpack.c.l.b16 %v149
  %v559 = vunpack.c.h.b16 %v149
  %v560 = vunpack.c.l.b16 %v150
  %v561 = vunpack.c.h.b16 %v150
  %v562 = vunpack.c.l.b16 %v151
  %v563 = vunpack.c.h.b16 %v151
  %v564 = vunpack.c.l.b16 %v152
  %v565 = vunpack.c.h.b16 %v152
  %v566 = vunpack.c.l.b16 %v153
  %v567 = vunpack.c.h.b16 %v153
  %v568 = vunpack.c.l.b16 %v154
  %v569 = vunpack.c.h.b16 %v154
  %v570 = vunpack.c.l.b16 %v155
  %v571 = vunpack.c.h.b16 %v155
  %v572 = vunpack.c.l.b16 %v156
  %v573 = vunpack.c.h.b16 %v156
  %v574 = vunpack.c.l.b16 %v157
  %v575 = vunpack.c.h.b16 %v157
  %v576 = vunpack.c.l.b16 %v158
  %v577 = vunpack.c.h.b16 %v158
  %v578 = vunpack.c.l.b16 %v159
  %v579 = vunpack.c.h.b16 %v159
  %v580 = vpack.c.b16 %v328, %v324
  %v581 = vpack.c.b16 %v329, %v325
  %v582 = vpack.c.b16 %v330, %v326
  %v583 = vpack.c.b16 %v331, %v327
  %v584 = vpack.c.b16 %v336, %v332
  %v585 = vpack.c.b16 %v337, %v333
  %v586 = vpack.c.b16 %v338, %v334
  %v587 = vpack.c.b16 %v339, %v335
  %v588 = vpack.c.b16 %v344, %v340
  %v589 = vpack.c.b16 %v345, %v341
  %v590 = vpack.c.b16 %v346, %v342
  %v591 = vpack.c.b16 %v347, %v343
  %v592 = vpack.c.b16 %v352, %v348
  %v593 = vpack.c.b16 %v353, %v349
  %v594 = vpack.c.b16 %v354, %v350
  %v595 = vpack.c.b16 %v355, %v351
  %v596 = vpack.c.b16 %v360, %v356
  %v597 = vpack.c.b16 %v361, %v357
  %v598 = vpack.c.b16 %v362, %v358
  %v599 = vpack.c.b16 %v363, %v359
  %v600 = vpack.c.b16 %v368, %v364
  %v601 = vpack.c.b16 %v369, %v365
  %v602 = vpack.c.b16 %v370, %v366
  %v603 = vpack.c.b16 %v371, %v367
  %v604 = vpack.c.b16 %v376, %v372
  %v605 = vpack.c.b16 %v377, %v373
  %v606 = vpack.c.b16 %v378, %v374
  %v607 = vpack.c.b16 %v379, %v375
  %v608 = vpack.c.b16 %v384, %v380
  %v609 = vpack.c.b16 %v385, %v381
  %v610 = vpack.c.b16 %v386, %v382
  %v611 = vpack.c.b16 %v387, %v383
  %v612 = vpack.c.b16 %v392, %v388
  %v613 = vpack.c.b16 %v393, %v389
  %v614 = vpack.c.b16 %v394, %v390
  %v615 = vpack.c.b16 %v395, %v391
  %v616 = vpack.c.b16 %v400, %v396
  %v617 = vpack.c.b16 %v401, %v397
  %v618 = vpack.c.b16 %v402, %v398
  %v619 = vpack.c.b16 %v403, %v399
  %v620 = vpack.c.b16 %v408, %v404
  %v621 = vpack.c.b16 %v409, %v405
  %v622 = vpack.c.b16 %v410, %v406
  %v623 = vpack.c.b16 %v411, %v407
  %v624 = vpack.c.b16 %v416, %v412
  %v625 = vpack.c.b16 %v417, %v413
  %v626 = vpack.c.b16 %v418, %v414
  %v627 = vpack.c.b16 %v419, %v415
  %v628 = vpack.c.b16 %v424, %v420
  %v629 = vpack.c.b16 %v425, %v421
  %v630 = vpack.c.b16 %v426, %v422
  %v631 = vpack.c.b16 %v427, %v423
  %v632 = vpack.c.b16 %v432, %v428
  %v633 = vpack.c.b16 %v433, %v429
  %v634 = vpack.c.b16 %v434, %v430
  %v635 = vpack.c.b16 %v435, %v431
  %v636 = vpack.c.b16 %v440, %v436
  %v637 = vpack.c.b16 %v441, %v437
  %v638 = vpack.c.b16 %v442, %v438
  %v639 = vpack.c.b16 %v443, %v439
  %v640 = vpack.c.b16 %v448, %v444
  %v641 = vpack.c.b16 %v449, %v445
  %v642 = vpack.c.b16 %v450, %v446
  %v643 = vpack.c.b16 %v451, %v447
  %v644 = vpack.c.b16 %v456, %v452
  %v645 = vpack.c.b16 %v457, %v453
  %v646 = vpack.c.b16 %v458, %v454
  %v647 = vpack.c.b16 %v459, %v455
  %v648 = vpack.c.b16 %v464, %v460
  %v649 = vpack.c.b16 %v465, %v461
  %v650 = vpack.c.b16 %v466, %v462
  %v651 = vpack.c.b16 %v467, %v463
  %v652 = vpack.c.b16 %v472, %v468
  %v653 = vpack.c.b16 %v473, %v469
  %v654 = vpack.c.b16 %v474, %v470
  %v655 = vpack.c.b16 %v475, %v471
  %v656 = vpack.c.b16 %v480, %v476
  %v657 = vpack.c.b16 %v481, %v477
  %v658 = vpack.c.b16 %v482, %v478
  %v659 = vpack.c.b16 %v483, %v479
  %v660 = vpack.c.b16 %v488, %v484
  %v661 = vpack.c.b16 %v489, %v485
  %v662 = vpack.c.b16 %v490, %v486
  %v663 = vpack.c.b16 %v491, %v487
  %v664 = vpack.c.b16 %v496, %v492
  %v665 = vpack.c.b16 %v497, %v493
  %v666 = vpack.c.b16 %v498, %v494
  %v667 = vpack.c.b16 %v499, %v495
  %v668 = vpack.c.b16 %v504, %v500
  %v669 = vpack.c.b16 %v505, %v501
  %v670 = vpack.c.b16 %v506, %v502
  %v671 = vpack.c.b16 %v507, %v503
  %v672 = vpack.c.b16 %v512, %v508
  %v673 = vpack.c.b16 %v513, %v509
  %v674 = vpack.c.b16 %v514, %v510
  %v675 = vpack.c.b16 %v515, %v511
  %v676 = vpack.c.b16 %v520, %v516
  %v677 = vpack.c.b16 %v521, %v517
  %v678 = vpack.c.b16 %v522, %v518
  %v679 = vpack.c.b16 %v523, %v519
  %v680 = vpack.c.b16 %v528, %v524
  %v681 = vpack.c.b16 %v529, %v525
  %v682 = vpack.c.b16 %v530, %v526
  %v683 = vpack.c.b16 %v531, %v527
  %v684 = vpack.c.b16 %v536, %v532
  %v685 = vpack.c.b16 %v537, %v533
  %v686 = vpack.c.b16 %v538, %v534
  %v687 = vpack.c.b16 %v539, %v535
  %v688 = vpack.c.b16 %v544, %v540
  %v689 = vpack.c.b16 %v545, %v541
  %v690 = vpack.c.b16 %v546, %v542
  %v691 = vpack.c.b16 %v547, %v543
  %v692 = vpack.c.b16 %v552, %v548
  %v693 = vpack.c.b16 %v553, %v549
  %v694 = vpack.c.b16 %v554, %v550
  %v695 = vpack.c.b16 %v555, %v551
  %v696 = vpack.c.b16 %v560, %v556
  %v697 = vpack.c.b16 %v561, %v557
  %v698 = vpack.c.b16 %v562, %v558
  %v699 = vpack.c.b16 %v563, %v559
  %v700 = vpack.c.b16 %v568, %v564
  %v701 = vpack.c.b16 %v569, %v565
  %v702 = vpack.c.b16 %v570, %v566
  %v703 = vpack.c.b16 %v571, %v567
  %v704 = vpack.c.b16 %v576, %v572
  %v705 = vpack.c.b16 %v577, %v573
  %v706 = vpack.c.b16 %v578, %v574
  %v707 = vpack.c.b16 %v579, %v575
  %836 = vmatprep.subr.bf16.mxu0 %v609
  %837 = vmatpush1.bf16.msra.mxu0 %v608
  %838 = vmatprep.subr.bf16.mxu0 %v605
  %839 = vmatpush1.bf16.msra.mxu0 %v604
  %840 = vmatprep.subr.bf16.mxu0 %v601
  %841 = vmatpush1.bf16.msra.mxu0 %v600
  %842 = vmatprep.subr.bf16.mxu0 %v597
  %843 = vmatpush1.bf16.msra.mxu0 %v596
  %844 = vmatprep.subr.bf16.mxu0 %v593
  %845 = vmatpush1.bf16.msra.mxu0 %v592
  %846 = vmatprep.subr.bf16.mxu0 %v589
  %847 = vmatpush1.bf16.msra.mxu0 %v588
  %848 = vmatprep.subr.bf16.mxu0 %v585
  %849 = vmatpush1.bf16.msra.mxu0 %v584
  %850 = vmatprep.subr.bf16.mxu0 %v581
  %851 = vmatpush1.bf16.msra.mxu0 %v580
  %852 = vmatprep.subr.bf16.mxu0 %v641
  %853 = vmatpush2.bf16.msra.mxu0 %v640
  %854 = vmatprep.subr.bf16.mxu0 %v637
  %855 = vmatpush2.bf16.msra.mxu0 %v636
  %856 = vmatprep.subr.bf16.mxu0 %v633
  %857 = vmatpush2.bf16.msra.mxu0 %v632
  %858 = vmatprep.subr.bf16.mxu0 %v629
  %859 = vmatpush2.bf16.msra.mxu0 %v628
  %860 = vmatprep.subr.bf16.mxu0 %v625
  %861 = vmatpush2.bf16.msra.mxu0 %v624
  %862 = vmatprep.subr.bf16.mxu0 %v621
  %863 = vmatpush2.bf16.msra.mxu0 %v620
  %864 = vmatprep.subr.bf16.mxu0 %v617
  %865 = vmatpush2.bf16.msra.mxu0 %v616
  %866 = vmatprep.subr.bf16.mxu0 %v613
  %867 = vmatpush2.bf16.msra.mxu0 %v612
  %868 = vmatprep.mubr.bf16.mxu0 %v189
  %869 = vmatmul.mubr.bf16.gmra.mxu0 %v188
  %v870 = vpop.f32.mrf.mxu0
  %v871 = vadd.f32 %v165, %v870
  %v872 = vpop.f32.mrf.mxu0
  %v873 = vadd.f32 %v169, %v872
  %v874 = vpop.f32.mrf.mxu0
  %v875 = vpop.f32.mrf.mxu0
  %876 = vdwg.mxu0
  %877 = vmatprep.subr.bf16.mxu0 %v673
  %878 = vmatpush1.bf16.msra.mxu0 %v672
  %879 = vmatprep.subr.bf16.mxu0 %v669
  %880 = vmatpush1.bf16.msra.mxu0 %v668
  %881 = vmatprep.subr.bf16.mxu0 %v665
  %882 = vmatpush1.bf16.msra.mxu0 %v664
  %883 = vmatprep.subr.bf16.mxu0 %v661
  %884 = vmatpush1.bf16.msra.mxu0 %v660
  %885 = vmatprep.subr.bf16.mxu0 %v657
  %886 = vmatpush1.bf16.msra.mxu0 %v656
  %887 = vmatprep.subr.bf16.mxu0 %v653
  %888 = vmatpush1.bf16.msra.mxu0 %v652
  %889 = vmatprep.subr.bf16.mxu0 %v649
  %890 = vmatpush1.bf16.msra.mxu0 %v648
  %891 = vmatprep.subr.bf16.mxu0 %v645
  %892 = vmatpush1.bf16.msra.mxu0 %v644
  %893 = vmatprep.subr.bf16.mxu0 %v705
  %894 = vmatpush2.bf16.msra.mxu0 %v704
  %895 = vmatprep.subr.bf16.mxu0 %v701
  %896 = vmatpush2.bf16.msra.mxu0 %v700
  %897 = vmatprep.subr.bf16.mxu0 %v697
  %898 = vmatpush2.bf16.msra.mxu0 %v696
  %899 = vmatprep.subr.bf16.mxu0 %v693
  %900 = vmatpush2.bf16.msra.mxu0 %v692
  %901 = vmatprep.subr.bf16.mxu0 %v689
  %902 = vmatpush2.bf16.msra.mxu0 %v688
  %903 = vmatprep.subr.bf16.mxu0 %v685
  %904 = vmatpush2.bf16.msra.mxu0 %v684
  %905 = vmatprep.subr.bf16.mxu0 %v681
  %906 = vmatpush2.bf16.msra.mxu0 %v680
  %907 = vmatprep.subr.bf16.mxu0 %v677
  %908 = vmatpush2.bf16.msra.mxu0 %v676
  %909 = vmatprep.mubr.bf16.mxu0 %v191
  %910 = vmatmul.mubr.bf16.gmra.mxu0 %v190
  %v911 = vpop.f32.mrf.mxu0
  %v912 = vadd.f32 %v871, %v911
  %v913 = vpop.f32.mrf.mxu0
  %v914 = vadd.f32 %v873, %v913
  %v915 = vpop.f32.mrf.mxu0
  %v916 = vpop.f32.mrf.mxu0
  %917 = vdwg.mxu0
  %918 = vmatprep.subr.bf16.mxu0 %v611
  %919 = vmatpush1.bf16.msra.mxu0 %v610
  %920 = vmatprep.subr.bf16.mxu0 %v607
  %921 = vmatpush1.bf16.msra.mxu0 %v606
  %922 = vmatprep.subr.bf16.mxu0 %v603
  %923 = vmatpush1.bf16.msra.mxu0 %v602
  %924 = vmatprep.subr.bf16.mxu0 %v599
  %925 = vmatpush1.bf16.msra.mxu0 %v598
  %926 = vmatprep.subr.bf16.mxu0 %v595
  %927 = vmatpush1.bf16.msra.mxu0 %v594
  %928 = vmatprep.subr.bf16.mxu0 %v591
  %929 = vmatpush1.bf16.msra.mxu0 %v590
  %930 = vmatprep.subr.bf16.mxu0 %v587
  %931 = vmatpush1.bf16.msra.mxu0 %v586
  %932 = vmatprep.subr.bf16.mxu0 %v583
  %933 = vmatpush1.bf16.msra.mxu0 %v582
  %934 = vmatprep.subr.bf16.mxu0 %v643
  %935 = vmatpush2.bf16.msra.mxu0 %v642
  %936 = vmatprep.subr.bf16.mxu0 %v639
  %937 = vmatpush2.bf16.msra.mxu0 %v638
  %938 = vmatprep.subr.bf16.mxu0 %v635
  %939 = vmatpush2.bf16.msra.mxu0 %v634
  %940 = vmatprep.subr.bf16.mxu0 %v631
  %941 = vmatpush2.bf16.msra.mxu0 %v630
  %942 = vmatprep.subr.bf16.mxu0 %v627
  %943 = vmatpush2.bf16.msra.mxu0 %v626
  %944 = vmatprep.subr.bf16.mxu0 %v623
  %945 = vmatpush2.bf16.msra.mxu0 %v622
  %946 = vmatprep.subr.bf16.mxu0 %v619
  %947 = vmatpush2.bf16.msra.mxu0 %v618
  %948 = vmatprep.subr.bf16.mxu0 %v615
  %949 = vmatpush2.bf16.msra.mxu0 %v614
  %950 = vmatprep.mubr.bf16.mxu0 %v189
  %951 = vmatmul.mubr.bf16.gmra.mxu0 %v188
  %v952 = vpop.f32.mrf.mxu0
  %v953 = vadd.f32 %v173, %v952
  %v954 = vpop.f32.mrf.mxu0
  %v955 = vadd.f32 %v177, %v954
  %v956 = vpop.f32.mrf.mxu0
  %v957 = vpop.f32.mrf.mxu0
  %958 = vdwg.mxu0
  %959 = vmatprep.subr.bf16.mxu0 %v675
  %960 = vmatpush1.bf16.msra.mxu0 %v674
  %961 = vmatprep.subr.bf16.mxu0 %v671
  %962 = vmatpush1.bf16.msra.mxu0 %v670
  %963 = vmatprep.subr.bf16.mxu0 %v667
  %964 = vmatpush1.bf16.msra.mxu0 %v666
  %965 = vmatprep.subr.bf16.mxu0 %v663
  %966 = vmatpush1.bf16.msra.mxu0 %v662
  %967 = vmatprep.subr.bf16.mxu0 %v659
  %968 = vmatpush1.bf16.msra.mxu0 %v658
  %969 = vmatprep.subr.bf16.mxu0 %v655
  %970 = vmatpush1.bf16.msra.mxu0 %v654
  %971 = vmatprep.subr.bf16.mxu0 %v651
  %972 = vmatpush1.bf16.msra.mxu0 %v650
  %973 = vmatprep.subr.bf16.mxu0 %v647
  %974 = vmatpush1.bf16.msra.mxu0 %v646
  %975 = vmatprep.subr.bf16.mxu0 %v707
  %976 = vmatpush2.bf16.msra.mxu0 %v706
  %977 = vmatprep.subr.bf16.mxu0 %v703
  %978 = vmatpush2.bf16.msra.mxu0 %v702
  %979 = vmatprep.subr.bf16.mxu0 %v699
  %980 = vmatpush2.bf16.msra.mxu0 %v698
  %981 = vmatprep.subr.bf16.mxu0 %v695
  %982 = vmatpush2.bf16.msra.mxu0 %v694
  %983 = vmatprep.subr.bf16.mxu0 %v691
  %984 = vmatpush2.bf16.msra.mxu0 %v690
  %985 = vmatprep.subr.bf16.mxu0 %v687
  %986 = vmatpush2.bf16.msra.mxu0 %v686
  %987 = vmatprep.subr.bf16.mxu0 %v683
  %988 = vmatpush2.bf16.msra.mxu0 %v682
  %989 = vmatprep.subr.bf16.mxu0 %v679
  %990 = vmatpush2.bf16.msra.mxu0 %v678
  %991 = vmatprep.mubr.bf16.mxu0 %v191
  %992 = vmatmul.mubr.bf16.gmra.mxu0 %v190
  %v993 = vpop.f32.mrf.mxu0
  %v994 = vadd.f32 %v953, %v993
  %v995 = vpop.f32.mrf.mxu0
  %v996 = vadd.f32 %v955, %v995
  %v997 = vpop.f32.mrf.mxu0
  %v998 = vpop.f32.mrf.mxu0
  %999 = vdwg.mxu0
  %v1000 = vld [vmem:[%s4] sm:$0xff]
  %v1001 = vld [vmem:[%s4 + $0x8] sm:$0xff]
  %v1002 = vld [vmem:[%s4 + $0x10] sm:$0xff]
  %v1003 = vld [vmem:[%s4 + $0x18] sm:$0xff]
  %v1004 = vld [vmem:[%s4 + $0x20] sm:$0xff]
  %v1005 = vld [vmem:[%s4 + $0x28] sm:$0xff]
  %v1006 = vld [vmem:[%s4 + $0x30] sm:$0xff]
  %v1007 = vld [vmem:[%s4 + $0x38] sm:$0xff]
  %v1008 = vld [vmem:[%s4 + $0x40] sm:$0xff]
  %v1009 = vld [vmem:[%s4 + $0x48] sm:$0xff]
  %v1010 = vld [vmem:[%s4 + $0x50] sm:$0xff]
  %v1011 = vld [vmem:[%s4 + $0x58] sm:$0xff]
  %v1012 = vld [vmem:[%s4 + $0x60] sm:$0xff]
  %v1013 = vld [vmem:[%s4 + $0x68] sm:$0xff]
  %v1014 = vld [vmem:[%s4 + $0x70] sm:$0xff]
  %v1015 = vld [vmem:[%s4 + $0x78] sm:$0xff]
  %v1016 = vld [vmem:[%s4 + $0x80] sm:$0xff]
  %v1017 = vld [vmem:[%s4 + $0x88] sm:$0xff]
  %v1018 = vld [vmem:[%s4 + $0x90] sm:$0xff]
  %v1019 = vld [vmem:[%s4 + $0x98] sm:$0xff]
  %v1020 = vld [vmem:[%s4 + $0xa0] sm:$0xff]
  %v1021 = vld [vmem:[%s4 + $0xa8] sm:$0xff]
  %v1022 = vld [vmem:[%s4 + $0xb0] sm:$0xff]
  %v1023 = vld [vmem:[%s4 + $0xb8] sm:$0xff]
  %v1024 = vld [vmem:[%s4 + $0xc0] sm:$0xff]
  %v1025 = vld [vmem:[%s4 + $0xc8] sm:$0xff]
  %v1026 = vld [vmem:[%s4 + $0xd0] sm:$0xff]
  %v1027 = vld [vmem:[%s4 + $0xd8] sm:$0xff]
  %v1028 = vld [vmem:[%s4 + $0xe0] sm:$0xff]
  %v1029 = vld [vmem:[%s4 + $0xe8] sm:$0xff]
  %v1030 = vld [vmem:[%s4 + $0xf0] sm:$0xff]
  %v1031 = vld [vmem:[%s4 + $0xf8] sm:$0xff]
  %v1032 = vld [vmem:[%s5] sm:$0x3]
  %v1033 = vld [vmem:[%s1] sm:$0xff]
  %v1034 = vunpack.c.l.bf16 %v1033
  %v1035 = vunpack.c.h.bf16 %v1033
  %v1036 = vmax.f32 %v912, 0.0
  %v1037 = vadd.f32 %v1036, %v1034
  %v1038 = vsub.f32 0.0, %v912
  %v1039 = vmax.f32 %v1038, 0.0
  %v1040 = vadd.f32 %v1039, %v1035
  %v1041 = vpack.c.bf16 %v1037, %v1037
  %v1042 = vpack.c.bf16 %v1040, %v1040
  %v1044 = vlaneseq
  %v1045 = vshrl.u32 %v1044, 7
  %v1046 = vsub.s32 0, %v1045
  %v1047 = vrot.slane %v1032, %v1046
  %v1048 = vlaneseq
  %v1049 = vshrl.u32 %v1048, 7
  %v1050 = vsub.s32 1, %v1049
  %v1051 = vrot.slane %v1032, %v1050
  %v1086 = vunpack.c.l.b16 %v1000
  %v1087 = vunpack.c.h.b16 %v1000
  %v1088 = vunpack.c.l.b16 %v1001
  %v1089 = vunpack.c.h.b16 %v1001
  %v1090 = vunpack.c.l.b16 %v1002
  %v1091 = vunpack.c.h.b16 %v1002
  %v1092 = vunpack.c.l.b16 %v1003
  %v1093 = vunpack.c.h.b16 %v1003
  %v1094 = vunpack.c.l.b16 %v1004
  %v1095 = vunpack.c.h.b16 %v1004
  %v1096 = vunpack.c.l.b16 %v1005
  %v1097 = vunpack.c.h.b16 %v1005
  %v1098 = vunpack.c.l.b16 %v1006
  %v1099 = vunpack.c.h.b16 %v1006
  %v1100 = vunpack.c.l.b16 %v1007
  %v1101 = vunpack.c.h.b16 %v1007
  %v1102 = vunpack.c.l.b16 %v1008
  %v1103 = vunpack.c.h.b16 %v1008
  %v1104 = vunpack.c.l.b16 %v1009
  %v1105 = vunpack.c.h.b16 %v1009
  %v1106 = vunpack.c.l.b16 %v1010
  %v1107 = vunpack.c.h.b16 %v1010
  %v1108 = vunpack.c.l.b16 %v1011
  %v1109 = vunpack.c.h.b16 %v1011
  %v1110 = vunpack.c.l.b16 %v1012
  %v1111 = vunpack.c.h.b16 %v1012
  %v1112 = vunpack.c.l.b16 %v1013
  %v1113 = vunpack.c.h.b16 %v1013
  %v1114 = vunpack.c.l.b16 %v1014
  %v1115 = vunpack.c.h.b16 %v1014
  %v1116 = vunpack.c.l.b16 %v1015
  %v1117 = vunpack.c.h.b16 %v1015
  %v1118 = vunpack.c.l.b16 %v1016
  %v1119 = vunpack.c.h.b16 %v1016
  %v1120 = vunpack.c.l.b16 %v1017
  %v1121 = vunpack.c.h.b16 %v1017
  %v1122 = vunpack.c.l.b16 %v1018
  %v1123 = vunpack.c.h.b16 %v1018
  %v1124 = vunpack.c.l.b16 %v1019
  %v1125 = vunpack.c.h.b16 %v1019
  %v1126 = vunpack.c.l.b16 %v1020
  %v1127 = vunpack.c.h.b16 %v1020
  %v1128 = vunpack.c.l.b16 %v1021
  %v1129 = vunpack.c.h.b16 %v1021
  %v1130 = vunpack.c.l.b16 %v1022
  %v1131 = vunpack.c.h.b16 %v1022
  %v1132 = vunpack.c.l.b16 %v1023
  %v1133 = vunpack.c.h.b16 %v1023
  %v1134 = vunpack.c.l.b16 %v1024
  %v1135 = vunpack.c.h.b16 %v1024
  %v1136 = vunpack.c.l.b16 %v1025
  %v1137 = vunpack.c.h.b16 %v1025
  %v1138 = vunpack.c.l.b16 %v1026
  %v1139 = vunpack.c.h.b16 %v1026
  %v1140 = vunpack.c.l.b16 %v1027
  %v1141 = vunpack.c.h.b16 %v1027
  %v1142 = vunpack.c.l.b16 %v1028
  %v1143 = vunpack.c.h.b16 %v1028
  %v1144 = vunpack.c.l.b16 %v1029
  %v1145 = vunpack.c.h.b16 %v1029
  %v1146 = vunpack.c.l.b16 %v1030
  %v1147 = vunpack.c.h.b16 %v1030
  %v1148 = vunpack.c.l.b16 %v1031
  %v1149 = vunpack.c.h.b16 %v1031
  %v1150 = vpack.c.b16 %v1088, %v1086
  %v1151 = vpack.c.b16 %v1089, %v1087
  %v1152 = vpack.c.b16 %v1092, %v1090
  %v1153 = vpack.c.b16 %v1093, %v1091
  %v1154 = vpack.c.b16 %v1096, %v1094
  %v1155 = vpack.c.b16 %v1097, %v1095
  %v1156 = vpack.c.b16 %v1100, %v1098
  %v1157 = vpack.c.b16 %v1101, %v1099
  %v1158 = vpack.c.b16 %v1104, %v1102
  %v1159 = vpack.c.b16 %v1105, %v1103
  %v1160 = vpack.c.b16 %v1108, %v1106
  %v1161 = vpack.c.b16 %v1109, %v1107
  %v1162 = vpack.c.b16 %v1112, %v1110
  %v1163 = vpack.c.b16 %v1113, %v1111
  %v1164 = vpack.c.b16 %v1116, %v1114
  %v1165 = vpack.c.b16 %v1117, %v1115
  %v1166 = vpack.c.b16 %v1120, %v1118
  %v1167 = vpack.c.b16 %v1121, %v1119
  %v1168 = vpack.c.b16 %v1124, %v1122
  %v1169 = vpack.c.b16 %v1125, %v1123
  %v1170 = vpack.c.b16 %v1128, %v1126
  %v1171 = vpack.c.b16 %v1129, %v1127
  %v1172 = vpack.c.b16 %v1132, %v1130
  %v1173 = vpack.c.b16 %v1133, %v1131
  %v1174 = vpack.c.b16 %v1136, %v1134
  %v1175 = vpack.c.b16 %v1137, %v1135
  %v1176 = vpack.c.b16 %v1140, %v1138
  %v1177 = vpack.c.b16 %v1141, %v1139
  %v1178 = vpack.c.b16 %v1144, %v1142
  %v1179 = vpack.c.b16 %v1145, %v1143
  %v1180 = vpack.c.b16 %v1148, %v1146
  %v1181 = vpack.c.b16 %v1149, %v1147
  %1214 = vmatprep.subr.bf16.mxu0 %v1165
  %1215 = vmatpush1.bf16.msra.mxu0 %v1164
  %1216 = vmatprep.subr.bf16.mxu0 %v1163
  %1217 = vmatpush1.bf16.msra.mxu0 %v1162
  %1218 = vmatprep.subr.bf16.mxu0 %v1161
  %1219 = vmatpush1.bf16.msra.mxu0 %v1160
  %1220 = vmatprep.subr.bf16.mxu0 %v1159
  %1221 = vmatpush1.bf16.msra.mxu0 %v1158
  %1222 = vmatprep.subr.bf16.mxu0 %v1157
  %1223 = vmatpush1.bf16.msra.mxu0 %v1156
  %1224 = vmatprep.subr.bf16.mxu0 %v1155
  %1225 = vmatpush1.bf16.msra.mxu0 %v1154
  %1226 = vmatprep.subr.bf16.mxu0 %v1153
  %1227 = vmatpush1.bf16.msra.mxu0 %v1152
  %1228 = vmatprep.subr.bf16.mxu0 %v1151
  %1229 = vmatpush1.bf16.msra.mxu0 %v1150
  %1230 = vmatprep.subr.bf16.mxu0 %v1181
  %1231 = vmatpush2.bf16.msra.mxu0 %v1180
  %1232 = vmatprep.subr.bf16.mxu0 %v1179
  %1233 = vmatpush2.bf16.msra.mxu0 %v1178
  %1234 = vmatprep.subr.bf16.mxu0 %v1177
  %1235 = vmatpush2.bf16.msra.mxu0 %v1176
  %1236 = vmatprep.subr.bf16.mxu0 %v1175
  %1237 = vmatpush2.bf16.msra.mxu0 %v1174
  %1238 = vmatprep.subr.bf16.mxu0 %v1173
  %1239 = vmatpush2.bf16.msra.mxu0 %v1172
  %1240 = vmatprep.subr.bf16.mxu0 %v1171
  %1241 = vmatpush2.bf16.msra.mxu0 %v1170
  %1242 = vmatprep.subr.bf16.mxu0 %v1169
  %1243 = vmatpush2.bf16.msra.mxu0 %v1168
  %1244 = vmatprep.subr.bf16.mxu0 %v1167
  %1245 = vmatpush2.bf16.msra.mxu0 %v1166
  %1246 = vmatprep.mubr.bf16.mxu0 %v1042
  %1247 = vmatmul.mubr.bf16.gmra.mxu0 %v1041
  %v1248 = vpop.f32.mrf.mxu0
  %v1249 = vadd.f32 %v1047, %v1248
  %v1250 = vpop.f32.mrf.mxu0
  %v1251 = vadd.f32 %v1051, %v1250
  %v1252 = vpop.f32.mrf.mxu0
  %v1253 = vpop.f32.mrf.mxu0
  %1254 = vdwg.mxu0
  %v1255 = vmax.f32 %v1249, 0.0
  %v1256 = vmax.f32 %v1251, 0.0
  %v1257 = vld [vmem:[%s1 + $0x8] sm:$0xff]
  %v1258 = vunpack.c.l.bf16 %v1257
  %v1259 = vunpack.c.h.bf16 %v1257
  %v1260 = vmax.f32 %v914, 0.0
  %v1261 = vadd.f32 %v1260, %v1258
  %v1262 = vsub.f32 0.0, %v914
  %v1263 = vmax.f32 %v1262, 0.0
  %v1264 = vadd.f32 %v1263, %v1259
  %v1265 = vpack.c.bf16 %v1261, %v1261
  %v1266 = vpack.c.bf16 %v1264, %v1264
  %1267 = vmatprep.subr.bf16.mxu0 %v1165
  %1268 = vmatpush1.bf16.msra.mxu0 %v1164
  %1269 = vmatprep.subr.bf16.mxu0 %v1163
  %1270 = vmatpush1.bf16.msra.mxu0 %v1162
  %1271 = vmatprep.subr.bf16.mxu0 %v1161
  %1272 = vmatpush1.bf16.msra.mxu0 %v1160
  %1273 = vmatprep.subr.bf16.mxu0 %v1159
  %1274 = vmatpush1.bf16.msra.mxu0 %v1158
  %1275 = vmatprep.subr.bf16.mxu0 %v1157
  %1276 = vmatpush1.bf16.msra.mxu0 %v1156
  %1277 = vmatprep.subr.bf16.mxu0 %v1155
  %1278 = vmatpush1.bf16.msra.mxu0 %v1154
  %1279 = vmatprep.subr.bf16.mxu0 %v1153
  %1280 = vmatpush1.bf16.msra.mxu0 %v1152
  %1281 = vmatprep.subr.bf16.mxu0 %v1151
  %1282 = vmatpush1.bf16.msra.mxu0 %v1150
  %1283 = vmatprep.subr.bf16.mxu0 %v1181
  %1284 = vmatpush2.bf16.msra.mxu0 %v1180
  %1285 = vmatprep.subr.bf16.mxu0 %v1179
  %1286 = vmatpush2.bf16.msra.mxu0 %v1178
  %1287 = vmatprep.subr.bf16.mxu0 %v1177
  %1288 = vmatpush2.bf16.msra.mxu0 %v1176
  %1289 = vmatprep.subr.bf16.mxu0 %v1175
  %1290 = vmatpush2.bf16.msra.mxu0 %v1174
  %1291 = vmatprep.subr.bf16.mxu0 %v1173
  %1292 = vmatpush2.bf16.msra.mxu0 %v1172
  %1293 = vmatprep.subr.bf16.mxu0 %v1171
  %1294 = vmatpush2.bf16.msra.mxu0 %v1170
  %1295 = vmatprep.subr.bf16.mxu0 %v1169
  %1296 = vmatpush2.bf16.msra.mxu0 %v1168
  %1297 = vmatprep.subr.bf16.mxu0 %v1167
  %1298 = vmatpush2.bf16.msra.mxu0 %v1166
  %1299 = vmatprep.mubr.bf16.mxu0 %v1266
  %1300 = vmatmul.mubr.bf16.gmra.mxu0 %v1265
  %v1301 = vpop.f32.mrf.mxu0
  %v1302 = vadd.f32 %v1047, %v1301
  %v1303 = vpop.f32.mrf.mxu0
  %v1304 = vadd.f32 %v1051, %v1303
  %v1305 = vpop.f32.mrf.mxu0
  %v1306 = vpop.f32.mrf.mxu0
  %1307 = vdwg.mxu0
  %v1308 = vmax.f32 %v1302, 0.0
  %v1309 = vmax.f32 %v1304, 0.0
  %v1310 = vld [vmem:[%s1 + $0x10] sm:$0xff]
  %v1311 = vunpack.c.l.bf16 %v1310
  %v1312 = vunpack.c.h.bf16 %v1310
  %v1313 = vmax.f32 %v994, 0.0
  %v1314 = vadd.f32 %v1313, %v1311
  %v1315 = vsub.f32 0.0, %v994
  %v1316 = vmax.f32 %v1315, 0.0
  %v1317 = vadd.f32 %v1316, %v1312
  %v1318 = vpack.c.bf16 %v1314, %v1314
  %v1319 = vpack.c.bf16 %v1317, %v1317
  %1320 = vmatprep.subr.bf16.mxu0 %v1165
  %1321 = vmatpush1.bf16.msra.mxu0 %v1164
  %1322 = vmatprep.subr.bf16.mxu0 %v1163
  %1323 = vmatpush1.bf16.msra.mxu0 %v1162
  %1324 = vmatprep.subr.bf16.mxu0 %v1161
  %1325 = vmatpush1.bf16.msra.mxu0 %v1160
  %1326 = vmatprep.subr.bf16.mxu0 %v1159
  %1327 = vmatpush1.bf16.msra.mxu0 %v1158
  %1328 = vmatprep.subr.bf16.mxu0 %v1157
  %1329 = vmatpush1.bf16.msra.mxu0 %v1156
  %1330 = vmatprep.subr.bf16.mxu0 %v1155
  %1331 = vmatpush1.bf16.msra.mxu0 %v1154
  %1332 = vmatprep.subr.bf16.mxu0 %v1153
  %1333 = vmatpush1.bf16.msra.mxu0 %v1152
  %1334 = vmatprep.subr.bf16.mxu0 %v1151
  %1335 = vmatpush1.bf16.msra.mxu0 %v1150
  %1336 = vmatprep.subr.bf16.mxu0 %v1181
  %1337 = vmatpush2.bf16.msra.mxu0 %v1180
  %1338 = vmatprep.subr.bf16.mxu0 %v1179
  %1339 = vmatpush2.bf16.msra.mxu0 %v1178
  %1340 = vmatprep.subr.bf16.mxu0 %v1177
  %1341 = vmatpush2.bf16.msra.mxu0 %v1176
  %1342 = vmatprep.subr.bf16.mxu0 %v1175
  %1343 = vmatpush2.bf16.msra.mxu0 %v1174
  %1344 = vmatprep.subr.bf16.mxu0 %v1173
  %1345 = vmatpush2.bf16.msra.mxu0 %v1172
  %1346 = vmatprep.subr.bf16.mxu0 %v1171
  %1347 = vmatpush2.bf16.msra.mxu0 %v1170
  %1348 = vmatprep.subr.bf16.mxu0 %v1169
  %1349 = vmatpush2.bf16.msra.mxu0 %v1168
  %1350 = vmatprep.subr.bf16.mxu0 %v1167
  %1351 = vmatpush2.bf16.msra.mxu0 %v1166
  %1352 = vmatprep.mubr.bf16.mxu0 %v1319
  %1353 = vmatmul.mubr.bf16.gmra.mxu0 %v1318
  %v1354 = vpop.f32.mrf.mxu0
  %v1355 = vadd.f32 %v1047, %v1354
  %v1356 = vpop.f32.mrf.mxu0
  %v1357 = vadd.f32 %v1051, %v1356
  %v1358 = vpop.f32.mrf.mxu0
  %v1359 = vpop.f32.mrf.mxu0
  %1360 = vdwg.mxu0
  %v1361 = vmax.f32 %v1355, 0.0
  %v1362 = vmax.f32 %v1357, 0.0
  %v1363 = vld [vmem:[%s1 + $0x18] sm:$0xff]
  %v1364 = vunpack.c.l.bf16 %v1363
  %v1365 = vunpack.c.h.bf16 %v1363
  %v1366 = vmax.f32 %v996, 0.0
  %v1367 = vadd.f32 %v1366, %v1364
  %v1368 = vsub.f32 0.0, %v996
  %v1369 = vmax.f32 %v1368, 0.0
  %v1370 = vadd.f32 %v1369, %v1365
  %v1371 = vpack.c.bf16 %v1367, %v1367
  %v1372 = vpack.c.bf16 %v1370, %v1370
  %1373 = vmatprep.subr.bf16.mxu0 %v1165
  %1374 = vmatpush1.bf16.msra.mxu0 %v1164
  %1375 = vmatprep.subr.bf16.mxu0 %v1163
  %1376 = vmatpush1.bf16.msra.mxu0 %v1162
  %1377 = vmatprep.subr.bf16.mxu0 %v1161
  %1378 = vmatpush1.bf16.msra.mxu0 %v1160
  %1379 = vmatprep.subr.bf16.mxu0 %v1159
  %1380 = vmatpush1.bf16.msra.mxu0 %v1158
  %1381 = vmatprep.subr.bf16.mxu0 %v1157
  %1382 = vmatpush1.bf16.msra.mxu0 %v1156
  %1383 = vmatprep.subr.bf16.mxu0 %v1155
  %1384 = vmatpush1.bf16.msra.mxu0 %v1154
  %1385 = vmatprep.subr.bf16.mxu0 %v1153
  %1386 = vmatpush1.bf16.msra.mxu0 %v1152
  %1387 = vmatprep.subr.bf16.mxu0 %v1151
  %1388 = vmatpush1.bf16.msra.mxu0 %v1150
  %1389 = vmatprep.subr.bf16.mxu0 %v1181
  %1390 = vmatpush2.bf16.msra.mxu0 %v1180
  %1391 = vmatprep.subr.bf16.mxu0 %v1179
  %1392 = vmatpush2.bf16.msra.mxu0 %v1178
  %1393 = vmatprep.subr.bf16.mxu0 %v1177
  %1394 = vmatpush2.bf16.msra.mxu0 %v1176
  %1395 = vmatprep.subr.bf16.mxu0 %v1175
  %1396 = vmatpush2.bf16.msra.mxu0 %v1174
  %1397 = vmatprep.subr.bf16.mxu0 %v1173
  %1398 = vmatpush2.bf16.msra.mxu0 %v1172
  %1399 = vmatprep.subr.bf16.mxu0 %v1171
  %1400 = vmatpush2.bf16.msra.mxu0 %v1170
  %1401 = vmatprep.subr.bf16.mxu0 %v1169
  %1402 = vmatpush2.bf16.msra.mxu0 %v1168
  %1403 = vmatprep.subr.bf16.mxu0 %v1167
  %1404 = vmatpush2.bf16.msra.mxu0 %v1166
  %1405 = vmatprep.mubr.bf16.mxu0 %v1372
  %1406 = vmatmul.mubr.bf16.gmra.mxu0 %v1371
  %v1407 = vpop.f32.mrf.mxu0
  %v1408 = vadd.f32 %v1047, %v1407
  %v1409 = vpop.f32.mrf.mxu0
  %v1410 = vadd.f32 %v1051, %v1409
  %v1411 = vpop.f32.mrf.mxu0
  %v1412 = vpop.f32.mrf.mxu0
  %1413 = vdwg.mxu0
  %v1414 = vmax.f32 %v1408, 0.0
  %v1415 = vmax.f32 %v1410, 0.0
  %v1416 = vpack.c.bf16 %v1255, %v1255
  %v1417 = vpack.c.bf16 %v1256, %v1256
  %v1418 = vpack.c.bf16 %v1308, %v1308
  %v1419 = vpack.c.bf16 %v1309, %v1309
  %v1420 = vpack.c.bf16 %v1361, %v1361
  %v1421 = vpack.c.bf16 %v1362, %v1362
  %v1422 = vpack.c.bf16 %v1414, %v1414
  %v1423 = vpack.c.bf16 %v1415, %v1415
  %v1424 = vld [vmem:[%s6] sm:$0xf]
  %v1425 = vld [vmem:[%s6 + $0x4] sm:$0xf]
  %v1426 = vld [vmem:[%s6 + $0x8] sm:$0xf]
  %v1427 = vld [vmem:[%s6 + $0xc] sm:$0xf]
  %v1428 = vld [vmem:[%s6 + $0x10] sm:$0xf]
  %v1429 = vld [vmem:[%s6 + $0x14] sm:$0xf]
  %v1430 = vld [vmem:[%s6 + $0x18] sm:$0xf]
  %v1431 = vld [vmem:[%s6 + $0x1c] sm:$0xf]
  %v1432 = vld [vmem:[%s6 + $0x20] sm:$0xf]
  %v1433 = vld [vmem:[%s6 + $0x24] sm:$0xf]
  %v1434 = vld [vmem:[%s6 + $0x28] sm:$0xf]
  %v1435 = vld [vmem:[%s6 + $0x2c] sm:$0xf]
  %v1436 = vld [vmem:[%s6 + $0x30] sm:$0xf]
  %v1437 = vld [vmem:[%s6 + $0x34] sm:$0xf]
  %v1438 = vld [vmem:[%s6 + $0x38] sm:$0xf]
  %v1439 = vld [vmem:[%s6 + $0x3c] sm:$0xf]
  %v1440 = vld [vmem:[%s6 + $0x40] sm:$0xf]
  %v1441 = vld [vmem:[%s6 + $0x44] sm:$0xf]
  %v1442 = vld [vmem:[%s6 + $0x48] sm:$0xf]
  %v1443 = vld [vmem:[%s6 + $0x4c] sm:$0xf]
  %v1444 = vld [vmem:[%s6 + $0x50] sm:$0xf]
  %v1445 = vld [vmem:[%s6 + $0x54] sm:$0xf]
  %v1446 = vld [vmem:[%s6 + $0x58] sm:$0xf]
  %v1447 = vld [vmem:[%s6 + $0x5c] sm:$0xf]
  %v1448 = vld [vmem:[%s6 + $0x60] sm:$0xf]
  %v1449 = vld [vmem:[%s6 + $0x64] sm:$0xf]
  %v1450 = vld [vmem:[%s6 + $0x68] sm:$0xf]
  %v1451 = vld [vmem:[%s6 + $0x6c] sm:$0xf]
  %v1452 = vld [vmem:[%s6 + $0x70] sm:$0xf]
  %v1453 = vld [vmem:[%s6 + $0x74] sm:$0xf]
  %v1454 = vld [vmem:[%s6 + $0x78] sm:$0xf]
  %v1455 = vld [vmem:[%s6 + $0x7c] sm:$0xf]
  %v1456 = vld [vmem:[%s6 + $0x80] sm:$0xf]
  %v1457 = vld [vmem:[%s6 + $0x84] sm:$0xf]
  %v1458 = vld [vmem:[%s6 + $0x88] sm:$0xf]
  %v1459 = vld [vmem:[%s6 + $0x8c] sm:$0xf]
  %v1460 = vld [vmem:[%s6 + $0x90] sm:$0xf]
  %v1461 = vld [vmem:[%s6 + $0x94] sm:$0xf]
  %v1462 = vld [vmem:[%s6 + $0x98] sm:$0xf]
  %v1463 = vld [vmem:[%s6 + $0x9c] sm:$0xf]
  %v1464 = vld [vmem:[%s6 + $0xa0] sm:$0xf]
  %v1465 = vld [vmem:[%s6 + $0xa4] sm:$0xf]
  %v1466 = vld [vmem:[%s6 + $0xa8] sm:$0xf]
  %v1467 = vld [vmem:[%s6 + $0xac] sm:$0xf]
  %v1468 = vld [vmem:[%s6 + $0xb0] sm:$0xf]
  %v1469 = vld [vmem:[%s6 + $0xb4] sm:$0xf]
  %v1470 = vld [vmem:[%s6 + $0xb8] sm:$0xf]
  %v1471 = vld [vmem:[%s6 + $0xbc] sm:$0xf]
  %v1472 = vld [vmem:[%s6 + $0xc0] sm:$0xf]
  %v1473 = vld [vmem:[%s6 + $0xc4] sm:$0xf]
  %v1474 = vld [vmem:[%s6 + $0xc8] sm:$0xf]
  %v1475 = vld [vmem:[%s6 + $0xcc] sm:$0xf]
  %v1476 = vld [vmem:[%s6 + $0xd0] sm:$0xf]
  %v1477 = vld [vmem:[%s6 + $0xd4] sm:$0xf]
  %v1478 = vld [vmem:[%s6 + $0xd8] sm:$0xf]
  %v1479 = vld [vmem:[%s6 + $0xdc] sm:$0xf]
  %v1480 = vld [vmem:[%s6 + $0xe0] sm:$0xf]
  %v1481 = vld [vmem:[%s6 + $0xe4] sm:$0xf]
  %v1482 = vld [vmem:[%s6 + $0xe8] sm:$0xf]
  %v1483 = vld [vmem:[%s6 + $0xec] sm:$0xf]
  %v1484 = vld [vmem:[%s6 + $0xf0] sm:$0xf]
  %v1485 = vld [vmem:[%s6 + $0xf4] sm:$0xf]
  %v1486 = vld [vmem:[%s6 + $0xf8] sm:$0xf]
  %v1487 = vld [vmem:[%s6 + $0xfc] sm:$0xf]
  %v1488 = vld [vmem:[%s6 + $0x100] sm:$0xf]
  %v1489 = vld [vmem:[%s6 + $0x104] sm:$0xf]
  %v1490 = vld [vmem:[%s6 + $0x108] sm:$0xf]
  %v1491 = vld [vmem:[%s6 + $0x10c] sm:$0xf]
  %v1492 = vld [vmem:[%s6 + $0x110] sm:$0xf]
  %v1493 = vld [vmem:[%s6 + $0x114] sm:$0xf]
  %v1494 = vld [vmem:[%s6 + $0x118] sm:$0xf]
  %v1495 = vld [vmem:[%s6 + $0x11c] sm:$0xf]
  %v1496 = vld [vmem:[%s6 + $0x120] sm:$0xf]
  %v1497 = vld [vmem:[%s6 + $0x124] sm:$0xf]
  %v1498 = vld [vmem:[%s6 + $0x128] sm:$0xf]
  %v1499 = vld [vmem:[%s6 + $0x12c] sm:$0xf]
  %v1500 = vld [vmem:[%s6 + $0x130] sm:$0xf]
  %v1501 = vld [vmem:[%s6 + $0x134] sm:$0xf]
  %v1502 = vld [vmem:[%s6 + $0x138] sm:$0xf]
  %v1503 = vld [vmem:[%s6 + $0x13c] sm:$0xf]
  %v1504 = vld [vmem:[%s6 + $0x140] sm:$0xf]
  %v1505 = vld [vmem:[%s6 + $0x144] sm:$0xf]
  %v1506 = vld [vmem:[%s6 + $0x148] sm:$0xf]
  %v1507 = vld [vmem:[%s6 + $0x14c] sm:$0xf]
  %v1508 = vld [vmem:[%s6 + $0x150] sm:$0xf]
  %v1509 = vld [vmem:[%s6 + $0x154] sm:$0xf]
  %v1510 = vld [vmem:[%s6 + $0x158] sm:$0xf]
  %v1511 = vld [vmem:[%s6 + $0x15c] sm:$0xf]
  %v1512 = vld [vmem:[%s6 + $0x160] sm:$0xf]
  %v1513 = vld [vmem:[%s6 + $0x164] sm:$0xf]
  %v1514 = vld [vmem:[%s6 + $0x168] sm:$0xf]
  %v1515 = vld [vmem:[%s6 + $0x16c] sm:$0xf]
  %v1516 = vld [vmem:[%s6 + $0x170] sm:$0xf]
  %v1517 = vld [vmem:[%s6 + $0x174] sm:$0xf]
  %v1518 = vld [vmem:[%s6 + $0x178] sm:$0xf]
  %v1519 = vld [vmem:[%s6 + $0x17c] sm:$0xf]
  %v1520 = vld [vmem:[%s6 + $0x180] sm:$0xf]
  %v1521 = vld [vmem:[%s6 + $0x184] sm:$0xf]
  %v1522 = vld [vmem:[%s6 + $0x188] sm:$0xf]
  %v1523 = vld [vmem:[%s6 + $0x18c] sm:$0xf]
  %v1524 = vld [vmem:[%s6 + $0x190] sm:$0xf]
  %v1525 = vld [vmem:[%s6 + $0x194] sm:$0xf]
  %v1526 = vld [vmem:[%s6 + $0x198] sm:$0xf]
  %v1527 = vld [vmem:[%s6 + $0x19c] sm:$0xf]
  %v1528 = vld [vmem:[%s6 + $0x1a0] sm:$0xf]
  %v1529 = vld [vmem:[%s6 + $0x1a4] sm:$0xf]
  %v1530 = vld [vmem:[%s6 + $0x1a8] sm:$0xf]
  %v1531 = vld [vmem:[%s6 + $0x1ac] sm:$0xf]
  %v1532 = vld [vmem:[%s6 + $0x1b0] sm:$0xf]
  %v1533 = vld [vmem:[%s6 + $0x1b4] sm:$0xf]
  %v1534 = vld [vmem:[%s6 + $0x1b8] sm:$0xf]
  %v1535 = vld [vmem:[%s6 + $0x1bc] sm:$0xf]
  %v1536 = vld [vmem:[%s6 + $0x1c0] sm:$0xf]
  %v1537 = vld [vmem:[%s6 + $0x1c4] sm:$0xf]
  %v1538 = vld [vmem:[%s6 + $0x1c8] sm:$0xf]
  %v1539 = vld [vmem:[%s6 + $0x1cc] sm:$0xf]
  %v1540 = vld [vmem:[%s6 + $0x1d0] sm:$0xf]
  %v1541 = vld [vmem:[%s6 + $0x1d4] sm:$0xf]
  %v1542 = vld [vmem:[%s6 + $0x1d8] sm:$0xf]
  %v1543 = vld [vmem:[%s6 + $0x1dc] sm:$0xf]
  %v1544 = vld [vmem:[%s6 + $0x1e0] sm:$0xf]
  %v1545 = vld [vmem:[%s6 + $0x1e4] sm:$0xf]
  %v1546 = vld [vmem:[%s6 + $0x1e8] sm:$0xf]
  %v1547 = vld [vmem:[%s6 + $0x1ec] sm:$0xf]
  %v1548 = vld [vmem:[%s6 + $0x1f0] sm:$0xf]
  %v1549 = vld [vmem:[%s6 + $0x1f4] sm:$0xf]
  %v1550 = vld [vmem:[%s6 + $0x1f8] sm:$0xf]
  %v1551 = vld [vmem:[%s6 + $0x1fc] sm:$0xf]
  %v1552 = vld [vmem:[%s7] sm:$0x1]
  %v1554 = vlaneseq
  %v1555 = vshrl.u32 %v1554, 7
  %v1556 = vsub.s32 0, %v1555
  %v1557 = vrot.slane %v1552, %v1556
  %v1687 = vunpack.c.l.b16 %v1424
  %v1688 = vunpack.c.l.b16 %v1425
  %v1689 = vunpack.c.l.b16 %v1426
  %v1690 = vunpack.c.l.b16 %v1427
  %v1691 = vunpack.c.l.b16 %v1428
  %v1692 = vunpack.c.l.b16 %v1429
  %v1693 = vunpack.c.l.b16 %v1430
  %v1694 = vunpack.c.l.b16 %v1431
  %v1695 = vunpack.c.l.b16 %v1432
  %v1696 = vunpack.c.l.b16 %v1433
  %v1697 = vunpack.c.l.b16 %v1434
  %v1698 = vunpack.c.l.b16 %v1435
  %v1699 = vunpack.c.l.b16 %v1436
  %v1700 = vunpack.c.l.b16 %v1437
  %v1701 = vunpack.c.l.b16 %v1438
  %v1702 = vunpack.c.l.b16 %v1439
  %v1703 = vunpack.c.l.b16 %v1440
  %v1704 = vunpack.c.l.b16 %v1441
  %v1705 = vunpack.c.l.b16 %v1442
  %v1706 = vunpack.c.l.b16 %v1443
  %v1707 = vunpack.c.l.b16 %v1444
  %v1708 = vunpack.c.l.b16 %v1445
  %v1709 = vunpack.c.l.b16 %v1446
  %v1710 = vunpack.c.l.b16 %v1447
  %v1711 = vunpack.c.l.b16 %v1448
  %v1712 = vunpack.c.l.b16 %v1449
  %v1713 = vunpack.c.l.b16 %v1450
  %v1714 = vunpack.c.l.b16 %v1451
  %v1715 = vunpack.c.l.b16 %v1452
  %v1716 = vunpack.c.l.b16 %v1453
  %v1717 = vunpack.c.l.b16 %v1454
  %v1718 = vunpack.c.l.b16 %v1455
  %v1719 = vunpack.c.l.b16 %v1456
  %v1720 = vunpack.c.l.b16 %v1457
  %v1721 = vunpack.c.l.b16 %v1458
  %v1722 = vunpack.c.l.b16 %v1459
  %v1723 = vunpack.c.l.b16 %v1460
  %v1724 = vunpack.c.l.b16 %v1461
  %v1725 = vunpack.c.l.b16 %v1462
  %v1726 = vunpack.c.l.b16 %v1463
  %v1727 = vunpack.c.l.b16 %v1464
  %v1728 = vunpack.c.l.b16 %v1465
  %v1729 = vunpack.c.l.b16 %v1466
  %v1730 = vunpack.c.l.b16 %v1467
  %v1731 = vunpack.c.l.b16 %v1468
  %v1732 = vunpack.c.l.b16 %v1469
  %v1733 = vunpack.c.l.b16 %v1470
  %v1734 = vunpack.c.l.b16 %v1471
  %v1735 = vunpack.c.l.b16 %v1472
  %v1736 = vunpack.c.l.b16 %v1473
  %v1737 = vunpack.c.l.b16 %v1474
  %v1738 = vunpack.c.l.b16 %v1475
  %v1739 = vunpack.c.l.b16 %v1476
  %v1740 = vunpack.c.l.b16 %v1477
  %v1741 = vunpack.c.l.b16 %v1478
  %v1742 = vunpack.c.l.b16 %v1479
  %v1743 = vunpack.c.l.b16 %v1480
  %v1744 = vunpack.c.l.b16 %v1481
  %v1745 = vunpack.c.l.b16 %v1482
  %v1746 = vunpack.c.l.b16 %v1483
  %v1747 = vunpack.c.l.b16 %v1484
  %v1748 = vunpack.c.l.b16 %v1485
  %v1749 = vunpack.c.l.b16 %v1486
  %v1750 = vunpack.c.l.b16 %v1487
  %v1751 = vunpack.c.l.b16 %v1488
  %v1752 = vunpack.c.l.b16 %v1489
  %v1753 = vunpack.c.l.b16 %v1490
  %v1754 = vunpack.c.l.b16 %v1491
  %v1755 = vunpack.c.l.b16 %v1492
  %v1756 = vunpack.c.l.b16 %v1493
  %v1757 = vunpack.c.l.b16 %v1494
  %v1758 = vunpack.c.l.b16 %v1495
  %v1759 = vunpack.c.l.b16 %v1496
  %v1760 = vunpack.c.l.b16 %v1497
  %v1761 = vunpack.c.l.b16 %v1498
  %v1762 = vunpack.c.l.b16 %v1499
  %v1763 = vunpack.c.l.b16 %v1500
  %v1764 = vunpack.c.l.b16 %v1501
  %v1765 = vunpack.c.l.b16 %v1502
  %v1766 = vunpack.c.l.b16 %v1503
  %v1767 = vunpack.c.l.b16 %v1504
  %v1768 = vunpack.c.l.b16 %v1505
  %v1769 = vunpack.c.l.b16 %v1506
  %v1770 = vunpack.c.l.b16 %v1507
  %v1771 = vunpack.c.l.b16 %v1508
  %v1772 = vunpack.c.l.b16 %v1509
  %v1773 = vunpack.c.l.b16 %v1510
  %v1774 = vunpack.c.l.b16 %v1511
  %v1775 = vunpack.c.l.b16 %v1512
  %v1776 = vunpack.c.l.b16 %v1513
  %v1777 = vunpack.c.l.b16 %v1514
  %v1778 = vunpack.c.l.b16 %v1515
  %v1779 = vunpack.c.l.b16 %v1516
  %v1780 = vunpack.c.l.b16 %v1517
  %v1781 = vunpack.c.l.b16 %v1518
  %v1782 = vunpack.c.l.b16 %v1519
  %v1783 = vunpack.c.l.b16 %v1520
  %v1784 = vunpack.c.l.b16 %v1521
  %v1785 = vunpack.c.l.b16 %v1522
  %v1786 = vunpack.c.l.b16 %v1523
  %v1787 = vunpack.c.l.b16 %v1524
  %v1788 = vunpack.c.l.b16 %v1525
  %v1789 = vunpack.c.l.b16 %v1526
  %v1790 = vunpack.c.l.b16 %v1527
  %v1791 = vunpack.c.l.b16 %v1528
  %v1792 = vunpack.c.l.b16 %v1529
  %v1793 = vunpack.c.l.b16 %v1530
  %v1794 = vunpack.c.l.b16 %v1531
  %v1795 = vunpack.c.l.b16 %v1532
  %v1796 = vunpack.c.l.b16 %v1533
  %v1797 = vunpack.c.l.b16 %v1534
  %v1798 = vunpack.c.l.b16 %v1535
  %v1799 = vunpack.c.l.b16 %v1536
  %v1800 = vunpack.c.l.b16 %v1537
  %v1801 = vunpack.c.l.b16 %v1538
  %v1802 = vunpack.c.l.b16 %v1539
  %v1803 = vunpack.c.l.b16 %v1540
  %v1804 = vunpack.c.l.b16 %v1541
  %v1805 = vunpack.c.l.b16 %v1542
  %v1806 = vunpack.c.l.b16 %v1543
  %v1807 = vunpack.c.l.b16 %v1544
  %v1808 = vunpack.c.l.b16 %v1545
  %v1809 = vunpack.c.l.b16 %v1546
  %v1810 = vunpack.c.l.b16 %v1547
  %v1811 = vunpack.c.l.b16 %v1548
  %v1812 = vunpack.c.l.b16 %v1549
  %v1813 = vunpack.c.l.b16 %v1550
  %v1814 = vunpack.c.l.b16 %v1551
  %v1815 = vpack.c.b16 %v1688, %v1687
  %v1816 = vpack.c.b16 %v1690, %v1689
  %v1817 = vpack.c.b16 %v1692, %v1691
  %v1818 = vpack.c.b16 %v1694, %v1693
  %v1819 = vpack.c.b16 %v1696, %v1695
  %v1820 = vpack.c.b16 %v1698, %v1697
  %v1821 = vpack.c.b16 %v1700, %v1699
  %v1822 = vpack.c.b16 %v1702, %v1701
  %v1823 = vpack.c.b16 %v1704, %v1703
  %v1824 = vpack.c.b16 %v1706, %v1705
  %v1825 = vpack.c.b16 %v1708, %v1707
  %v1826 = vpack.c.b16 %v1710, %v1709
  %v1827 = vpack.c.b16 %v1712, %v1711
  %v1828 = vpack.c.b16 %v1714, %v1713
  %v1829 = vpack.c.b16 %v1716, %v1715
  %v1830 = vpack.c.b16 %v1718, %v1717
  %v1831 = vpack.c.b16 %v1720, %v1719
  %v1832 = vpack.c.b16 %v1722, %v1721
  %v1833 = vpack.c.b16 %v1724, %v1723
  %v1834 = vpack.c.b16 %v1726, %v1725
  %v1835 = vpack.c.b16 %v1728, %v1727
  %v1836 = vpack.c.b16 %v1730, %v1729
  %v1837 = vpack.c.b16 %v1732, %v1731
  %v1838 = vpack.c.b16 %v1734, %v1733
  %v1839 = vpack.c.b16 %v1736, %v1735
  %v1840 = vpack.c.b16 %v1738, %v1737
  %v1841 = vpack.c.b16 %v1740, %v1739
  %v1842 = vpack.c.b16 %v1742, %v1741
  %v1843 = vpack.c.b16 %v1744, %v1743
  %v1844 = vpack.c.b16 %v1746, %v1745
  %v1845 = vpack.c.b16 %v1748, %v1747
  %v1846 = vpack.c.b16 %v1750, %v1749
  %v1847 = vpack.c.b16 %v1752, %v1751
  %v1848 = vpack.c.b16 %v1754, %v1753
  %v1849 = vpack.c.b16 %v1756, %v1755
  %v1850 = vpack.c.b16 %v1758, %v1757
  %v1851 = vpack.c.b16 %v1760, %v1759
  %v1852 = vpack.c.b16 %v1762, %v1761
  %v1853 = vpack.c.b16 %v1764, %v1763
  %v1854 = vpack.c.b16 %v1766, %v1765
  %v1855 = vpack.c.b16 %v1768, %v1767
  %v1856 = vpack.c.b16 %v1770, %v1769
  %v1857 = vpack.c.b16 %v1772, %v1771
  %v1858 = vpack.c.b16 %v1774, %v1773
  %v1859 = vpack.c.b16 %v1776, %v1775
  %v1860 = vpack.c.b16 %v1778, %v1777
  %v1861 = vpack.c.b16 %v1780, %v1779
  %v1862 = vpack.c.b16 %v1782, %v1781
  %v1863 = vpack.c.b16 %v1784, %v1783
  %v1864 = vpack.c.b16 %v1786, %v1785
  %v1865 = vpack.c.b16 %v1788, %v1787
  %v1866 = vpack.c.b16 %v1790, %v1789
  %v1867 = vpack.c.b16 %v1792, %v1791
  %v1868 = vpack.c.b16 %v1794, %v1793
  %v1869 = vpack.c.b16 %v1796, %v1795
  %v1870 = vpack.c.b16 %v1798, %v1797
  %v1871 = vpack.c.b16 %v1800, %v1799
  %v1872 = vpack.c.b16 %v1802, %v1801
  %v1873 = vpack.c.b16 %v1804, %v1803
  %v1874 = vpack.c.b16 %v1806, %v1805
  %v1875 = vpack.c.b16 %v1808, %v1807
  %v1876 = vpack.c.b16 %v1810, %v1809
  %v1877 = vpack.c.b16 %v1812, %v1811
  %v1878 = vpack.c.b16 %v1814, %v1813
  %1943 = vmatprep.subr.bf16.mxu0 0
  %1944 = vmatpush1.bf16.msra.mxu0 %v1822
  %1945 = vmatprep.subr.bf16.mxu0 0
  %1946 = vmatpush1.bf16.msra.mxu0 %v1821
  %1947 = vmatprep.subr.bf16.mxu0 0
  %1948 = vmatpush1.bf16.msra.mxu0 %v1820
  %1949 = vmatprep.subr.bf16.mxu0 0
  %1950 = vmatpush1.bf16.msra.mxu0 %v1819
  %1951 = vmatprep.subr.bf16.mxu0 0
  %1952 = vmatpush1.bf16.msra.mxu0 %v1818
  %1953 = vmatprep.subr.bf16.mxu0 0
  %1954 = vmatpush1.bf16.msra.mxu0 %v1817
  %1955 = vmatprep.subr.bf16.mxu0 0
  %1956 = vmatpush1.bf16.msra.mxu0 %v1816
  %1957 = vmatprep.subr.bf16.mxu0 0
  %1958 = vmatpush1.bf16.msra.mxu0 %v1815
  %1959 = vmatprep.subr.bf16.mxu0 0
  %1960 = vmatpush2.bf16.msra.mxu0 %v1830
  %1961 = vmatprep.subr.bf16.mxu0 0
  %1962 = vmatpush2.bf16.msra.mxu0 %v1829
  %1963 = vmatprep.subr.bf16.mxu0 0
  %1964 = vmatpush2.bf16.msra.mxu0 %v1828
  %1965 = vmatprep.subr.bf16.mxu0 0
  %1966 = vmatpush2.bf16.msra.mxu0 %v1827
  %1967 = vmatprep.subr.bf16.mxu0 0
  %1968 = vmatpush2.bf16.msra.mxu0 %v1826
  %1969 = vmatprep.subr.bf16.mxu0 0
  %1970 = vmatpush2.bf16.msra.mxu0 %v1825
  %1971 = vmatprep.subr.bf16.mxu0 0
  %1972 = vmatpush2.bf16.msra.mxu0 %v1824
  %1973 = vmatprep.subr.bf16.mxu0 0
  %1974 = vmatpush2.bf16.msra.mxu0 %v1823
  %1975 = vmatprep.mubr.bf16.mxu0 %v1417
  %1976 = vmatmul.mubr.bf16.gmra.mxu0 %v1416
  %v1977 = vpop.f32.mrf.mxu0
  %v1978 = vadd.f32 %v1557, %v1977
  %v1979 = vpop.f32.mrf.mxu0
  %v1980 = vpop.f32.mrf.mxu0
  %v1981 = vpop.f32.mrf.mxu0
  %1982 = vdwg.mxu0
  %1983 = vmatprep.subr.bf16.mxu0 0
  %1984 = vmatpush1.bf16.msra.mxu0 %v1838
  %1985 = vmatprep.subr.bf16.mxu0 0
  %1986 = vmatpush1.bf16.msra.mxu0 %v1837
  %1987 = vmatprep.subr.bf16.mxu0 0
  %1988 = vmatpush1.bf16.msra.mxu0 %v1836
  %1989 = vmatprep.subr.bf16.mxu0 0
  %1990 = vmatpush1.bf16.msra.mxu0 %v1835
  %1991 = vmatprep.subr.bf16.mxu0 0
  %1992 = vmatpush1.bf16.msra.mxu0 %v1834
  %1993 = vmatprep.subr.bf16.mxu0 0
  %1994 = vmatpush1.bf16.msra.mxu0 %v1833
  %1995 = vmatprep.subr.bf16.mxu0 0
  %1996 = vmatpush1.bf16.msra.mxu0 %v1832
  %1997 = vmatprep.subr.bf16.mxu0 0
  %1998 = vmatpush1.bf16.msra.mxu0 %v1831
  %1999 = vmatprep.subr.bf16.mxu0 0
  %2000 = vmatpush2.bf16.msra.mxu0 %v1846
  %2001 = vmatprep.subr.bf16.mxu0 0
  %2002 = vmatpush2.bf16.msra.mxu0 %v1845
  %2003 = vmatprep.subr.bf16.mxu0 0
  %2004 = vmatpush2.bf16.msra.mxu0 %v1844
  %2005 = vmatprep.subr.bf16.mxu0 0
  %2006 = vmatpush2.bf16.msra.mxu0 %v1843
  %2007 = vmatprep.subr.bf16.mxu0 0
  %2008 = vmatpush2.bf16.msra.mxu0 %v1842
  %2009 = vmatprep.subr.bf16.mxu0 0
  %2010 = vmatpush2.bf16.msra.mxu0 %v1841
  %2011 = vmatprep.subr.bf16.mxu0 0
  %2012 = vmatpush2.bf16.msra.mxu0 %v1840
  %2013 = vmatprep.subr.bf16.mxu0 0
  %2014 = vmatpush2.bf16.msra.mxu0 %v1839
  %2015 = vmatprep.mubr.bf16.mxu0 %v1419
  %2016 = vmatmul.mubr.bf16.gmra.mxu0 %v1418
  %v2017 = vpop.f32.mrf.mxu0
  %v2018 = vadd.f32 %v1978, %v2017
  %v2019 = vpop.f32.mrf.mxu0
  %v2020 = vpop.f32.mrf.mxu0
  %v2021 = vpop.f32.mrf.mxu0
  %2022 = vdwg.mxu0
  %2023 = vmatprep.subr.bf16.mxu0 0
  %2024 = vmatpush1.bf16.msra.mxu0 %v1854
  %2025 = vmatprep.subr.bf16.mxu0 0
  %2026 = vmatpush1.bf16.msra.mxu0 %v1853
  %2027 = vmatprep.subr.bf16.mxu0 0
  %2028 = vmatpush1.bf16.msra.mxu0 %v1852
  %2029 = vmatprep.subr.bf16.mxu0 0
  %2030 = vmatpush1.bf16.msra.mxu0 %v1851
  %2031 = vmatprep.subr.bf16.mxu0 0
  %2032 = vmatpush1.bf16.msra.mxu0 %v1850
  %2033 = vmatprep.subr.bf16.mxu0 0
  %2034 = vmatpush1.bf16.msra.mxu0 %v1849
  %2035 = vmatprep.subr.bf16.mxu0 0
  %2036 = vmatpush1.bf16.msra.mxu0 %v1848
  %2037 = vmatprep.subr.bf16.mxu0 0
  %2038 = vmatpush1.bf16.msra.mxu0 %v1847
  %2039 = vmatprep.subr.bf16.mxu0 0
  %2040 = vmatpush2.bf16.msra.mxu0 %v1862
  %2041 = vmatprep.subr.bf16.mxu0 0
  %2042 = vmatpush2.bf16.msra.mxu0 %v1861
  %2043 = vmatprep.subr.bf16.mxu0 0
  %2044 = vmatpush2.bf16.msra.mxu0 %v1860
  %2045 = vmatprep.subr.bf16.mxu0 0
  %2046 = vmatpush2.bf16.msra.mxu0 %v1859
  %2047 = vmatprep.subr.bf16.mxu0 0
  %2048 = vmatpush2.bf16.msra.mxu0 %v1858
  %2049 = vmatprep.subr.bf16.mxu0 0
  %2050 = vmatpush2.bf16.msra.mxu0 %v1857
  %2051 = vmatprep.subr.bf16.mxu0 0
  %2052 = vmatpush2.bf16.msra.mxu0 %v1856
  %2053 = vmatprep.subr.bf16.mxu0 0
  %2054 = vmatpush2.bf16.msra.mxu0 %v1855
  %2055 = vmatprep.mubr.bf16.mxu0 %v1421
  %2056 = vmatmul.mubr.bf16.gmra.mxu0 %v1420
  %v2057 = vpop.f32.mrf.mxu0
  %v2058 = vadd.f32 %v2018, %v2057
  %v2059 = vpop.f32.mrf.mxu0
  %v2060 = vpop.f32.mrf.mxu0
  %v2061 = vpop.f32.mrf.mxu0
  %2062 = vdwg.mxu0
  %2063 = vmatprep.subr.bf16.mxu0 0
  %2064 = vmatpush1.bf16.msra.mxu0 %v1870
  %2065 = vmatprep.subr.bf16.mxu0 0
  %2066 = vmatpush1.bf16.msra.mxu0 %v1869
  %2067 = vmatprep.subr.bf16.mxu0 0
  %2068 = vmatpush1.bf16.msra.mxu0 %v1868
  %2069 = vmatprep.subr.bf16.mxu0 0
  %2070 = vmatpush1.bf16.msra.mxu0 %v1867
  %2071 = vmatprep.subr.bf16.mxu0 0
  %2072 = vmatpush1.bf16.msra.mxu0 %v1866
  %2073 = vmatprep.subr.bf16.mxu0 0
  %2074 = vmatpush1.bf16.msra.mxu0 %v1865
  %2075 = vmatprep.subr.bf16.mxu0 0
  %2076 = vmatpush1.bf16.msra.mxu0 %v1864
  %2077 = vmatprep.subr.bf16.mxu0 0
  %2078 = vmatpush1.bf16.msra.mxu0 %v1863
  %2079 = vmatprep.subr.bf16.mxu0 0
  %2080 = vmatpush2.bf16.msra.mxu0 %v1878
  %2081 = vmatprep.subr.bf16.mxu0 0
  %2082 = vmatpush2.bf16.msra.mxu0 %v1877
  %2083 = vmatprep.subr.bf16.mxu0 0
  %2084 = vmatpush2.bf16.msra.mxu0 %v1876
  %2085 = vmatprep.subr.bf16.mxu0 0
  %2086 = vmatpush2.bf16.msra.mxu0 %v1875
  %2087 = vmatprep.subr.bf16.mxu0 0
  %2088 = vmatpush2.bf16.msra.mxu0 %v1874
  %2089 = vmatprep.subr.bf16.mxu0 0
  %2090 = vmatpush2.bf16.msra.mxu0 %v1873
  %2091 = vmatprep.subr.bf16.mxu0 0
  %2092 = vmatpush2.bf16.msra.mxu0 %v1872
  %2093 = vmatprep.subr.bf16.mxu0 0
  %2094 = vmatpush2.bf16.msra.mxu0 %v1871
  %2095 = vmatprep.mubr.bf16.mxu0 %v1423
  %2096 = vmatmul.mubr.bf16.gmra.mxu0 %v1422
  %v2097 = vpop.f32.mrf.mxu0
  %v2098 = vadd.f32 %v2058, %v2097
  %v2099 = vpop.f32.mrf.mxu0
  %v2100 = vpop.f32.mrf.mxu0
  %v2101 = vpop.f32.mrf.mxu0
  %2102 = vdwg.mxu0
  %2103 = vst [vmem:[%s8] sm:$0xff] %v2098
  // Predicated region
  $region34: #{init_single_band_subspacenet_forward.6} parent=0 // pred_check
    _
  $region35: #{init_single_band_subspacenet_forward.6} parent=0 // pred_check_branch
    %2105 = sbr.rel (0) target = $region37
  $region36: #{init_single_band_subspacenet_forward.6} parent=0 // pred_region
    _
  $region37: #{init_single_band_subspacenet_forward.6} parent=0 // pred_fallthru
    _
  // Predicated region
  $region38: #{init_single_band_subspacenet_forward.6} parent=0 // pred_check
    _
  $region39: #{init_single_band_subspacenet_forward.6} parent=0 // pred_check_branch
    %2107 = sbr.rel (0) target = $region41
  $region40: #{init_single_band_subspacenet_forward.6} parent=0 // pred_region
    _
  $region41: #{init_single_band_subspacenet_forward.6} parent=0 // pred_fallthru
    _

</llo_original>
